<compile_context>
chip_gen: v6e
topology: v6e:2x2x1
jax: 0.10.0
libtpu: 0.0.40
codegen_flags: <defaults>
</compile_context>

<pallas_src>
import jax
import jax.numpy as jnp
from jax.experimental import pallas as pl
from jax.experimental.pallas import tpu as pltpu

# ----------------------------- cfg (synthetic) ------------------------------
FIL_SIZE = (3, 3)
N_LAYERS = 3
IN_CHANNELS = 2
N_CLASSES = 3
DIL_M = (2, 3)
BN_EPS = 1e-5


# ------------------------- static network structure -------------------------
def _block_configs():
    """Per-block (cin, cout, kernel, dilation, pad, relu) of the MSDNet forward."""
    cfgs = [dict(cin=IN_CHANNELS, cout=1, kh=FIL_SIZE[0], kw=FIL_SIZE[1],
                 d1=1, d2=1, relu=True)]
    for il in range(N_LAYERS):
        cfgs.append(dict(cin=il + 1, cout=1, kh=FIL_SIZE[0], kw=FIL_SIZE[1],
                         d1=il % DIL_M[0] + 1, d2=il % DIL_M[1] + 1, relu=True))
    cfgs.append(dict(cin=N_LAYERS + 1 + IN_CHANNELS, cout=N_CLASSES,
                     kh=1, kw=1, d1=1, d2=1, relu=False))
    for c in cfgs:
        c["s1"] = (c["kh"] - 1) // 2 * c["d1"]
        c["s2"] = (c["kw"] - 1) // 2 * c["d2"]
    return cfgs


def _param_offsets(cfgs):
    w_off, bn_off, wo, bo = [], [], 0, 0
    for c in cfgs:
        w_off.append(wo)
        bn_off.append(bo)
        wo += c["cout"] * c["cin"] * c["kh"] * c["kw"]
        bo += c["cout"]
    return w_off, bn_off


# ------------------------------ fused kernel ---------------------------------
def _make_msdnet_kernel(N, H, W, cfgs, w_off, bn_off):
    inv_nhw = 1.0 / float(N * H * W)

    def pad_feature(f, s1, s2):
        # f: (N, H, W) value.  Circular pad along H, then replicate pad along W
        # (same order/semantics as F.pad 'circular' then 'replicate').
        if s1 > 0:
            f = jnp.concatenate([f[:, H - s1:, :], f, f[:, :s1, :]], axis=1)
        if s2 > 0:
            hp = H + 2 * s1
            left = jnp.broadcast_to(f[:, :, 0:1], (N, hp, s2))
            right = jnp.broadcast_to(f[:, :, W - 1:W], (N, hp, s2))
            f = jnp.concatenate([left, f, right], axis=2)
        return f

    def kernel(x_ref, w_ref, g_ref, be_ref, o_ref):
        # x_ref : (N, IN_CHANNELS, H, W)  VMEM
        # w_ref : (total_weights,)        SMEM  (all conv weights, flat)
        # g_ref : (total_bn_channels,)    SMEM  (BN gamma, flat)
        # be_ref: (total_bn_channels,)    SMEM  (BN beta, flat)
        # o_ref : (N, N_CLASSES, H, W)    VMEM
        in_feats = [x_ref[:, c, :, :] for c in range(IN_CHANNELS)]  # (N,H,W) each
        dense = []  # block outputs f0..f{N_LAYERS}, kept resident (never to HBM)

        for bi, c in enumerate(cfgs):
            is_final = bi == len(cfgs) - 1
            if bi == 0:
                feats = in_feats
            elif is_final:
                feats = dense + in_feats            # [f0..f3, x0, x1]
            else:
                feats = list(dense)                 # dense concat so far
            assert len(feats) == c["cin"]

            KH, KW, d1, d2 = c["kh"], c["kw"], c["d1"], c["d2"]
            padded = [pad_feature(f, c["s1"], c["s2"]) for f in feats]

            for co in range(c["cout"]):
                # --- dilated conv as shift-MAC over static window slices ---
                acc = None
                for ci in range(c["cin"]):
                    fp = padded[ci]
                    for kh in range(KH):
                        for kw in range(KW):
                            widx = w_off[bi] + ((co * c["cin"] + ci) * KH + kh) * KW + kw
                            patch = fp[:, kh * d1:kh * d1 + H, kw * d2:kw * d2 + W]
                            term = w_ref[widx] * patch
                            acc = term if acc is None else acc + term
                # Conv bias is omitted: a per-channel constant cancels exactly
                # under training-mode BatchNorm (it only shifts the mean).

                # --- single-pass BatchNorm stats over (N, H, W) ---
                ssum = jnp.sum(acc)
                ssq = jnp.sum(acc * acc)
                mean = ssum * inv_nhw
                var = jnp.maximum(ssq * inv_nhw - mean * mean, 0.0)
                scale = g_ref[bn_off[bi] + co] * jax.lax.rsqrt(var + BN_EPS)
                shift = be_ref[bn_off[bi] + co] - mean * scale
                y = acc * scale + shift
                if c["relu"]:
                    y = jnp.maximum(y, 0.0)

                if is_final:
                    o_ref[:, co, :, :] = y          # direct per-channel store
                else:
                    dense.append(y)

    return kernel


def pack_params(params):
    """Flatten per-block (w, b, gamma, beta) into SMEM-friendly 1-D arrays."""
    w_all = jnp.concatenate([p[0].reshape(-1) for p in params]).astype(jnp.float32)
    g_all = jnp.concatenate([p[2] for p in params]).astype(jnp.float32)
    be_all = jnp.concatenate([p[3] for p in params]).astype(jnp.float32)
    return w_all, g_all, be_all


def msdnet_forward_fused(x, w_all, g_all, be_all):
    """Whole MSDNet forward as a single pallas_call.  x: (N, IN_CHANNELS, H, W)."""
    N, cin, H, W = x.shape
    assert cin == IN_CHANNELS
    cfgs = _block_configs()
    w_off, bn_off = _param_offsets(cfgs)
    kernel = _make_msdnet_kernel(N, H, W, cfgs, w_off, bn_off)
    return pl.pallas_call(
        kernel,
        out_shape=jax.ShapeDtypeStruct((N, N_CLASSES, H, W), jnp.float32),
        in_specs=[
            pl.BlockSpec(memory_space=pltpu.MemorySpace.VMEM),   # input image
            pl.BlockSpec(memory_space=pltpu.MemorySpace.SMEM),   # conv weights (flat)
            pl.BlockSpec(memory_space=pltpu.MemorySpace.SMEM),   # BN gamma (flat)
            pl.BlockSpec(memory_space=pltpu.MemorySpace.SMEM),   # BN beta (flat)
        ],
        out_specs=pl.BlockSpec(memory_space=pltpu.MemorySpace.VMEM),
    )(x, w_all, g_all, be_all)


# --------------------------- pure-JAX reference ------------------------------
def msdnet_forward_ref(x, params):
    """Unfused reference: explicit pad + conv(with bias) + two-pass BN (+ReLU)."""
    N, _, H, W = x.shape
    cfgs = _block_configs()
    feats = []
    for bi, c in enumerate(cfgs):
        if bi == 0:
            cur = x
        elif bi == len(cfgs) - 1:
            cur = jnp.concatenate(feats + [x], axis=1)
        else:
            cur = jnp.concatenate(feats, axis=1)
        xp = jnp.pad(cur, ((0, 0), (0, 0), (c["s1"], c["s1"]), (0, 0)), mode="wrap")
        xp = jnp.pad(xp, ((0, 0), (0, 0), (0, 0), (c["s2"], c["s2"])), mode="edge")
        w, b, g, be = params[bi]
        Cout, Cin, KH, KW = w.shape
        outs = []
        for co in range(Cout):
            acc = jnp.zeros((N, H, W), jnp.float32) + b[co]
            for ci in range(Cin):
                for kh in range(KH):
                    for kw in range(KW):
                        acc = acc + w[co, ci, kh, kw] * xp[
                            :, ci,
                            kh * c["d1"]:kh * c["d1"] + H,
                            kw * c["d2"]:kw * c["d2"] + W]
            mean = jnp.mean(acc)
            var = jnp.mean((acc - mean) ** 2)
            y = g[co] * (acc - mean) * jax.lax.rsqrt(var + BN_EPS) + be[co]
            if c["relu"]:
                y = jnp.maximum(y, 0.0)
            outs.append(y[:, None])
        y_blk = jnp.concatenate(outs, axis=1)
        if bi == len(cfgs) - 1:
            return y_blk
        feats.append(y_blk)


# ------------------------------- parameters ----------------------------------
def init_params(key):
    def blk(k, cout, cin, kh, kw):
        k1, k2, k3, k4 = jax.random.split(k, 4)
        w = 0.3 * jax.random.normal(k1, (cout, cin, kh, kw), jnp.float32)
        b = 0.1 * jax.random.normal(k2, (cout,), jnp.float32)
        g = 1.0 + 0.1 * jax.random.normal(k3, (cout,), jnp.float32)
        be = 0.1 * jax.random.normal(k4, (cout,), jnp.float32)
        return (w, b, g, be)

    keys = jax.random.split(key, N_LAYERS + 2)
    params = [blk(keys[0], 1, IN_CHANNELS, *FIL_SIZE)]           # first block
    for i in range(N_LAYERS):                                    # dilated blocks
        params.append(blk(keys[i + 1], 1, i + 1, *FIL_SIZE))
    params.append(blk(keys[-1], N_CLASSES,
                      N_LAYERS + 1 + IN_CHANNELS, 1, 1))         # final 1x1
    return params


# ---------------------------------- main --------------------------------------
if __name__ == "__main__":
    key = jax.random.PRNGKey(0)
    kx, kp = jax.random.split(key)

    N, H, W = 2, 16, 16
    x = jax.random.normal(kx, (N, IN_CHANNELS, H, W), jnp.float32)
    params = init_params(kp)

    w_all, g_all, be_all = pack_params(params)      # one-time packing
    fwd = jax.jit(msdnet_forward_fused)             # single fused kernel launch

    out = fwd(x, w_all, g_all, be_all)
    out = jax.block_until_ready(out)
    assert out.shape == (N, N_CLASSES, H, W), out.shape

    ref = msdnet_forward_ref(x, params)
    max_err = float(jnp.max(jnp.abs(out - ref)))
    assert max_err < 1e-3, f"mismatch vs reference: {max_err}"

    print("KERNEL_OK")
</pallas_src>

<mosaic_0001>
module attributes {stable_mosaic.version = 11 : i64} {
  func.func @kernel(%arg0: memref<2x2x16x16xf32, #tpu.memory_space<vmem>>, %arg1: memref<90xf32, #tpu.memory_space<smem>>, %arg2: memref<7xf32, #tpu.memory_space<smem>>, %arg3: memref<7xf32, #tpu.memory_space<smem>>, %arg4: memref<2x3x16x16xf32, #tpu.memory_space<vmem>>) attributes {dimension_semantics = [], scalar_prefetch = 0 : i64, scratch_operands = 0 : i64, tpu.core_type = #tpu.core_type<tc>} {
    %c0 = arith.constant 0 : index
    %c0_0 = arith.constant 0 : index
    %c0_1 = arith.constant 0 : index
    %c0_2 = arith.constant 0 : index
    %0 = vector.load %arg0[%c0, %c0_0, %c0_1, %c0_2] : memref<2x2x16x16xf32, #tpu.memory_space<vmem>>, vector<2x1x16x16xf32>
    %1 = vector.shape_cast %0 : vector<2x1x16x16xf32> to vector<2x16x16xf32>
    %c0_3 = arith.constant 0 : index
    %c1 = arith.constant 1 : index
    %c0_4 = arith.constant 0 : index
    %c0_5 = arith.constant 0 : index
    %2 = vector.load %arg0[%c0_3, %c1, %c0_4, %c0_5] : memref<2x2x16x16xf32, #tpu.memory_space<vmem>>, vector<2x1x16x16xf32>
    %3 = vector.shape_cast %2 : vector<2x1x16x16xf32> to vector<2x16x16xf32>
    %4 = vector.extract_strided_slice %1 {offsets = [0, 15, 0], sizes = [2, 1, 16], strides = [1, 1, 1]} : vector<2x16x16xf32> to vector<2x1x16xf32>
    %5 = vector.extract_strided_slice %1 {offsets = [0, 0, 0], sizes = [2, 1, 16], strides = [1, 1, 1]} : vector<2x16x16xf32> to vector<2x1x16xf32>
    %6 = tpu.concatenate %4, %1, %5 in 1 : vector<2x1x16xf32>, vector<2x16x16xf32>, vector<2x1x16xf32> -> vector<2x18x16xf32>
    %7 = vector.extract_strided_slice %6 {offsets = [0, 0, 0], sizes = [2, 18, 1], strides = [1, 1, 1]} : vector<2x18x16xf32> to vector<2x18x1xf32>
    %8 = vector.extract_strided_slice %6 {offsets = [0, 0, 15], sizes = [2, 18, 1], strides = [1, 1, 1]} : vector<2x18x16xf32> to vector<2x18x1xf32>
    %9 = tpu.concatenate %7, %6, %8 in 2 : vector<2x18x1xf32>, vector<2x18x16xf32>, vector<2x18x1xf32> -> vector<2x18x18xf32>
    %10 = vector.extract_strided_slice %3 {offsets = [0, 15, 0], sizes = [2, 1, 16], strides = [1, 1, 1]} : vector<2x16x16xf32> to vector<2x1x16xf32>
    %11 = vector.extract_strided_slice %3 {offsets = [0, 0, 0], sizes = [2, 1, 16], strides = [1, 1, 1]} : vector<2x16x16xf32> to vector<2x1x16xf32>
    %12 = tpu.concatenate %10, %3, %11 in 1 : vector<2x1x16xf32>, vector<2x16x16xf32>, vector<2x1x16xf32> -> vector<2x18x16xf32>
    %13 = vector.extract_strided_slice %12 {offsets = [0, 0, 0], sizes = [2, 18, 1], strides = [1, 1, 1]} : vector<2x18x16xf32> to vector<2x18x1xf32>
    %14 = vector.extract_strided_slice %12 {offsets = [0, 0, 15], sizes = [2, 18, 1], strides = [1, 1, 1]} : vector<2x18x16xf32> to vector<2x18x1xf32>
    %15 = tpu.concatenate %13, %12, %14 in 2 : vector<2x18x1xf32>, vector<2x18x16xf32>, vector<2x18x1xf32> -> vector<2x18x18xf32>
    %16 = vector.extract_strided_slice %9 {offsets = [0, 0, 0], sizes = [2, 16, 16], strides = [1, 1, 1]} : vector<2x18x18xf32> to vector<2x16x16xf32>
    %c0_6 = arith.constant 0 : index
    %17 = memref.load %arg1[%c0_6] : memref<90xf32, #tpu.memory_space<smem>>
    %18 = vector.broadcast %17 : f32 to vector<2x16x16xf32>
    %19 = arith.mulf %18, %16 : vector<2x16x16xf32>
    %20 = vector.extract_strided_slice %9 {offsets = [0, 0, 1], sizes = [2, 16, 16], strides = [1, 1, 1]} : vector<2x18x18xf32> to vector<2x16x16xf32>
    %c1_7 = arith.constant 1 : index
    %21 = memref.load %arg1[%c1_7] : memref<90xf32, #tpu.memory_space<smem>>
    %22 = vector.broadcast %21 : f32 to vector<2x16x16xf32>
    %23 = arith.mulf %22, %20 : vector<2x16x16xf32>
    %24 = arith.addf %19, %23 : vector<2x16x16xf32>
    %25 = vector.extract_strided_slice %9 {offsets = [0, 0, 2], sizes = [2, 16, 16], strides = [1, 1, 1]} : vector<2x18x18xf32> to vector<2x16x16xf32>
    %c2 = arith.constant 2 : index
    %26 = memref.load %arg1[%c2] : memref<90xf32, #tpu.memory_space<smem>>
    %27 = vector.broadcast %26 : f32 to vector<2x16x16xf32>
    %28 = arith.mulf %27, %25 : vector<2x16x16xf32>
    %29 = arith.addf %24, %28 : vector<2x16x16xf32>
    %30 = vector.extract_strided_slice %9 {offsets = [0, 1, 0], sizes = [2, 16, 16], strides = [1, 1, 1]} : vector<2x18x18xf32> to vector<2x16x16xf32>
    %c3 = arith.constant 3 : index
    %31 = memref.load %arg1[%c3] : memref<90xf32, #tpu.memory_space<smem>>
    %32 = vector.broadcast %31 : f32 to vector<2x16x16xf32>
    %33 = arith.mulf %32, %30 : vector<2x16x16xf32>
    %34 = arith.addf %29, %33 : vector<2x16x16xf32>
    %35 = vector.extract_strided_slice %9 {offsets = [0, 1, 1], sizes = [2, 16, 16], strides = [1, 1, 1]} : vector<2x18x18xf32> to vector<2x16x16xf32>
    %c4 = arith.constant 4 : index
    %36 = memref.load %arg1[%c4] : memref<90xf32, #tpu.memory_space<smem>>
    %37 = vector.broadcast %36 : f32 to vector<2x16x16xf32>
    %38 = arith.mulf %37, %35 : vector<2x16x16xf32>
    %39 = arith.addf %34, %38 : vector<2x16x16xf32>
    %40 = vector.extract_strided_slice %9 {offsets = [0, 1, 2], sizes = [2, 16, 16], strides = [1, 1, 1]} : vector<2x18x18xf32> to vector<2x16x16xf32>
    %c5 = arith.constant 5 : index
    %41 = memref.load %arg1[%c5] : memref<90xf32, #tpu.memory_space<smem>>
    %42 = vector.broadcast %41 : f32 to vector<2x16x16xf32>
    %43 = arith.mulf %42, %40 : vector<2x16x16xf32>
    %44 = arith.addf %39, %43 : vector<2x16x16xf32>
    %45 = vector.extract_strided_slice %9 {offsets = [0, 2, 0], sizes = [2, 16, 16], strides = [1, 1, 1]} : vector<2x18x18xf32> to vector<2x16x16xf32>
    %c6 = arith.constant 6 : index
    %46 = memref.load %arg1[%c6] : memref<90xf32, #tpu.memory_space<smem>>
    %47 = vector.broadcast %46 : f32 to vector<2x16x16xf32>
    %48 = arith.mulf %47, %45 : vector<2x16x16xf32>
    %49 = arith.addf %44, %48 : vector<2x16x16xf32>
    %50 = vector.extract_strided_slice %9 {offsets = [0, 2, 1], sizes = [2, 16, 16], strides = [1, 1, 1]} : vector<2x18x18xf32> to vector<2x16x16xf32>
    %c7 = arith.constant 7 : index
    %51 = memref.load %arg1[%c7] : memref<90xf32, #tpu.memory_space<smem>>
    %52 = vector.broadcast %51 : f32 to vector<2x16x16xf32>
    %53 = arith.mulf %52, %50 : vector<2x16x16xf32>
    %54 = arith.addf %49, %53 : vector<2x16x16xf32>
    %55 = vector.extract_strided_slice %9 {offsets = [0, 2, 2], sizes = [2, 16, 16], strides = [1, 1, 1]} : vector<2x18x18xf32> to vector<2x16x16xf32>
    %c8 = arith.constant 8 : index
    %56 = memref.load %arg1[%c8] : memref<90xf32, #tpu.memory_space<smem>>
    %57 = vector.broadcast %56 : f32 to vector<2x16x16xf32>
    %58 = arith.mulf %57, %55 : vector<2x16x16xf32>
    %59 = arith.addf %54, %58 : vector<2x16x16xf32>
    %60 = vector.extract_strided_slice %15 {offsets = [0, 0, 0], sizes = [2, 16, 16], strides = [1, 1, 1]} : vector<2x18x18xf32> to vector<2x16x16xf32>
    %c9 = arith.constant 9 : index
    %61 = memref.load %arg1[%c9] : memref<90xf32, #tpu.memory_space<smem>>
    %62 = vector.broadcast %61 : f32 to vector<2x16x16xf32>
    %63 = arith.mulf %62, %60 : vector<2x16x16xf32>
    %64 = arith.addf %59, %63 : vector<2x16x16xf32>
    %65 = vector.extract_strided_slice %15 {offsets = [0, 0, 1], sizes = [2, 16, 16], strides = [1, 1, 1]} : vector<2x18x18xf32> to vector<2x16x16xf32>
    %c10 = arith.constant 10 : index
    %66 = memref.load %arg1[%c10] : memref<90xf32, #tpu.memory_space<smem>>
    %67 = vector.broadcast %66 : f32 to vector<2x16x16xf32>
    %68 = arith.mulf %67, %65 : vector<2x16x16xf32>
    %69 = arith.addf %64, %68 : vector<2x16x16xf32>
    %70 = vector.extract_strided_slice %15 {offsets = [0, 0, 2], sizes = [2, 16, 16], strides = [1, 1, 1]} : vector<2x18x18xf32> to vector<2x16x16xf32>
    %c11 = arith.constant 11 : index
    %71 = memref.load %arg1[%c11] : memref<90xf32, #tpu.memory_space<smem>>
    %72 = vector.broadcast %71 : f32 to vector<2x16x16xf32>
    %73 = arith.mulf %72, %70 : vector<2x16x16xf32>
    %74 = arith.addf %69, %73 : vector<2x16x16xf32>
    %75 = vector.extract_strided_slice %15 {offsets = [0, 1, 0], sizes = [2, 16, 16], strides = [1, 1, 1]} : vector<2x18x18xf32> to vector<2x16x16xf32>
    %c12 = arith.constant 12 : index
    %76 = memref.load %arg1[%c12] : memref<90xf32, #tpu.memory_space<smem>>
    %77 = vector.broadcast %76 : f32 to vector<2x16x16xf32>
    %78 = arith.mulf %77, %75 : vector<2x16x16xf32>
    %79 = arith.addf %74, %78 : vector<2x16x16xf32>
    %80 = vector.extract_strided_slice %15 {offsets = [0, 1, 1], sizes = [2, 16, 16], strides = [1, 1, 1]} : vector<2x18x18xf32> to vector<2x16x16xf32>
    %c13 = arith.constant 13 : index
    %81 = memref.load %arg1[%c13] : memref<90xf32, #tpu.memory_space<smem>>
    %82 = vector.broadcast %81 : f32 to vector<2x16x16xf32>
    %83 = arith.mulf %82, %80 : vector<2x16x16xf32>
    %84 = arith.addf %79, %83 : vector<2x16x16xf32>
    %85 = vector.extract_strided_slice %15 {offsets = [0, 1, 2], sizes = [2, 16, 16], strides = [1, 1, 1]} : vector<2x18x18xf32> to vector<2x16x16xf32>
    %c14 = arith.constant 14 : index
    %86 = memref.load %arg1[%c14] : memref<90xf32, #tpu.memory_space<smem>>
    %87 = vector.broadcast %86 : f32 to vector<2x16x16xf32>
    %88 = arith.mulf %87, %85 : vector<2x16x16xf32>
    %89 = arith.addf %84, %88 : vector<2x16x16xf32>
    %90 = vector.extract_strided_slice %15 {offsets = [0, 2, 0], sizes = [2, 16, 16], strides = [1, 1, 1]} : vector<2x18x18xf32> to vector<2x16x16xf32>
    %c15 = arith.constant 15 : index
    %91 = memref.load %arg1[%c15] : memref<90xf32, #tpu.memory_space<smem>>
    %92 = vector.broadcast %91 : f32 to vector<2x16x16xf32>
    %93 = arith.mulf %92, %90 : vector<2x16x16xf32>
    %94 = arith.addf %89, %93 : vector<2x16x16xf32>
    %95 = vector.extract_strided_slice %15 {offsets = [0, 2, 1], sizes = [2, 16, 16], strides = [1, 1, 1]} : vector<2x18x18xf32> to vector<2x16x16xf32>
    %c16 = arith.constant 16 : index
    %96 = memref.load %arg1[%c16] : memref<90xf32, #tpu.memory_space<smem>>
    %97 = vector.broadcast %96 : f32 to vector<2x16x16xf32>
    %98 = arith.mulf %97, %95 : vector<2x16x16xf32>
    %99 = arith.addf %94, %98 : vector<2x16x16xf32>
    %100 = vector.extract_strided_slice %15 {offsets = [0, 2, 2], sizes = [2, 16, 16], strides = [1, 1, 1]} : vector<2x18x18xf32> to vector<2x16x16xf32>
    %c17 = arith.constant 17 : index
    %101 = memref.load %arg1[%c17] : memref<90xf32, #tpu.memory_space<smem>>
    %102 = vector.broadcast %101 : f32 to vector<2x16x16xf32>
    %103 = arith.mulf %102, %100 : vector<2x16x16xf32>
    %104 = arith.addf %99, %103 : vector<2x16x16xf32>
    %105 = vector.shape_cast %104 : vector<2x16x16xf32> to vector<1x2x16x16xf32>
    %cst = arith.constant dense<0.000000e+00> : vector<1xf32>
    %106 = vector.multi_reduction <add>, %105, %cst [1, 2, 3] : vector<1x2x16x16xf32> to vector<1xf32>
    %107 = vector.shape_cast %106 : vector<1xf32> to vector<1x1x1x1xf32>
    %108 = vector.extract %107[0, 0, 0, 0] : f32 from vector<1x1x1x1xf32>
    %109 = arith.mulf %104, %104 : vector<2x16x16xf32>
    %110 = vector.shape_cast %109 : vector<2x16x16xf32> to vector<1x2x16x16xf32>
    %cst_8 = arith.constant dense<0.000000e+00> : vector<1xf32>
    %111 = vector.multi_reduction <add>, %110, %cst_8 [1, 2, 3] : vector<1x2x16x16xf32> to vector<1xf32>
    %112 = vector.shape_cast %111 : vector<1xf32> to vector<1x1x1x1xf32>
    %113 = vector.extract %112[0, 0, 0, 0] : f32 from vector<1x1x1x1xf32>
    %cst_9 = arith.constant 0.001953125 : f32
    %114 = arith.mulf %108, %cst_9 : f32
    %cst_10 = arith.constant 0.001953125 : f32
    %115 = arith.mulf %113, %cst_10 : f32
    %116 = arith.mulf %114, %114 : f32
    %117 = arith.subf %115, %116 : f32
    %cst_11 = arith.constant 0.000000e+00 : f32
    %118 = arith.maximumf %117, %cst_11 : f32
    %c0_12 = arith.constant 0 : index
    %119 = memref.load %arg2[%c0_12] : memref<7xf32, #tpu.memory_space<smem>>
    %cst_13 = arith.constant 9.99999974E-6 : f32
    %120 = arith.addf %118, %cst_13 : f32
    %121 = math.rsqrt %120 : f32
    %122 = arith.mulf %119, %121 : f32
    %c0_14 = arith.constant 0 : index
    %123 = memref.load %arg3[%c0_14] : memref<7xf32, #tpu.memory_space<smem>>
    %124 = arith.mulf %114, %122 : f32
    %125 = arith.subf %123, %124 : f32
    %126 = vector.broadcast %122 : f32 to vector<2x16x16xf32>
    %127 = arith.mulf %104, %126 : vector<2x16x16xf32>
    %128 = vector.broadcast %125 : f32 to vector<2x16x16xf32>
    %129 = arith.addf %127, %128 : vector<2x16x16xf32>
    %cst_15 = arith.constant 0.000000e+00 : f32
    %130 = vector.broadcast %cst_15 : f32 to vector<2x16x16xf32>
    %131 = arith.maximumf %129, %130 : vector<2x16x16xf32>
    %132 = vector.extract_strided_slice %131 {offsets = [0, 15, 0], sizes = [2, 1, 16], strides = [1, 1, 1]} : vector<2x16x16xf32> to vector<2x1x16xf32>
    %133 = vector.extract_strided_slice %131 {offsets = [0, 0, 0], sizes = [2, 1, 16], strides = [1, 1, 1]} : vector<2x16x16xf32> to vector<2x1x16xf32>
    %134 = tpu.concatenate %132, %131, %133 in 1 : vector<2x1x16xf32>, vector<2x16x16xf32>, vector<2x1x16xf32> -> vector<2x18x16xf32>
    %135 = vector.extract_strided_slice %134 {offsets = [0, 0, 0], sizes = [2, 18, 1], strides = [1, 1, 1]} : vector<2x18x16xf32> to vector<2x18x1xf32>
    %136 = vector.extract_strided_slice %134 {offsets = [0, 0, 15], sizes = [2, 18, 1], strides = [1, 1, 1]} : vector<2x18x16xf32> to vector<2x18x1xf32>
    %137 = tpu.concatenate %135, %134, %136 in 2 : vector<2x18x1xf32>, vector<2x18x16xf32>, vector<2x18x1xf32> -> vector<2x18x18xf32>
    %138 = vector.extract_strided_slice %137 {offsets = [0, 0, 0], sizes = [2, 16, 16], strides = [1, 1, 1]} : vector<2x18x18xf32> to vector<2x16x16xf32>
    %c18 = arith.constant 18 : index
    %139 = memref.load %arg1[%c18] : memref<90xf32, #tpu.memory_space<smem>>
    %140 = vector.broadcast %139 : f32 to vector<2x16x16xf32>
    %141 = arith.mulf %140, %138 : vector<2x16x16xf32>
    %142 = vector.extract_strided_slice %137 {offsets = [0, 0, 1], sizes = [2, 16, 16], strides = [1, 1, 1]} : vector<2x18x18xf32> to vector<2x16x16xf32>
    %c19 = arith.constant 19 : index
    %143 = memref.load %arg1[%c19] : memref<90xf32, #tpu.memory_space<smem>>
    %144 = vector.broadcast %143 : f32 to vector<2x16x16xf32>
    %145 = arith.mulf %144, %142 : vector<2x16x16xf32>
    %146 = arith.addf %141, %145 : vector<2x16x16xf32>
    %147 = vector.extract_strided_slice %137 {offsets = [0, 0, 2], sizes = [2, 16, 16], strides = [1, 1, 1]} : vector<2x18x18xf32> to vector<2x16x16xf32>
    %c20 = arith.constant 20 : index
    %148 = memref.load %arg1[%c20] : memref<90xf32, #tpu.memory_space<smem>>
    %149 = vector.broadcast %148 : f32 to vector<2x16x16xf32>
    %150 = arith.mulf %149, %147 : vector<2x16x16xf32>
    %151 = arith.addf %146, %150 : vector<2x16x16xf32>
    %152 = vector.extract_strided_slice %137 {offsets = [0, 1, 0], sizes = [2, 16, 16], strides = [1, 1, 1]} : vector<2x18x18xf32> to vector<2x16x16xf32>
    %c21 = arith.constant 21 : index
    %153 = memref.load %arg1[%c21] : memref<90xf32, #tpu.memory_space<smem>>
    %154 = vector.broadcast %153 : f32 to vector<2x16x16xf32>
    %155 = arith.mulf %154, %152 : vector<2x16x16xf32>
    %156 = arith.addf %151, %155 : vector<2x16x16xf32>
    %157 = vector.extract_strided_slice %137 {offsets = [0, 1, 1], sizes = [2, 16, 16], strides = [1, 1, 1]} : vector<2x18x18xf32> to vector<2x16x16xf32>
    %c22 = arith.constant 22 : index
    %158 = memref.load %arg1[%c22] : memref<90xf32, #tpu.memory_space<smem>>
    %159 = vector.broadcast %158 : f32 to vector<2x16x16xf32>
    %160 = arith.mulf %159, %157 : vector<2x16x16xf32>
    %161 = arith.addf %156, %160 : vector<2x16x16xf32>
    %162 = vector.extract_strided_slice %137 {offsets = [0, 1, 2], sizes = [2, 16, 16], strides = [1, 1, 1]} : vector<2x18x18xf32> to vector<2x16x16xf32>
    %c23 = arith.constant 23 : index
    %163 = memref.load %arg1[%c23] : memref<90xf32, #tpu.memory_space<smem>>
    %164 = vector.broadcast %163 : f32 to vector<2x16x16xf32>
    %165 = arith.mulf %164, %162 : vector<2x16x16xf32>
    %166 = arith.addf %161, %165 : vector<2x16x16xf32>
    %167 = vector.extract_strided_slice %137 {offsets = [0, 2, 0], sizes = [2, 16, 16], strides = [1, 1, 1]} : vector<2x18x18xf32> to vector<2x16x16xf32>
    %c24 = arith.constant 24 : index
    %168 = memref.load %arg1[%c24] : memref<90xf32, #tpu.memory_space<smem>>
    %169 = vector.broadcast %168 : f32 to vector<2x16x16xf32>
    %170 = arith.mulf %169, %167 : vector<2x16x16xf32>
    %171 = arith.addf %166, %170 : vector<2x16x16xf32>
    %172 = vector.extract_strided_slice %137 {offsets = [0, 2, 1], sizes = [2, 16, 16], strides = [1, 1, 1]} : vector<2x18x18xf32> to vector<2x16x16xf32>
    %c25 = arith.constant 25 : index
    %173 = memref.load %arg1[%c25] : memref<90xf32, #tpu.memory_space<smem>>
    %174 = vector.broadcast %173 : f32 to vector<2x16x16xf32>
    %175 = arith.mulf %174, %172 : vector<2x16x16xf32>
    %176 = arith.addf %171, %175 : vector<2x16x16xf32>
    %177 = vector.extract_strided_slice %137 {offsets = [0, 2, 2], sizes = [2, 16, 16], strides = [1, 1, 1]} : vector<2x18x18xf32> to vector<2x16x16xf32>
    %c26 = arith.constant 26 : index
    %178 = memref.load %arg1[%c26] : memref<90xf32, #tpu.memory_space<smem>>
    %179 = vector.broadcast %178 : f32 to vector<2x16x16xf32>
    %180 = arith.mulf %179, %177 : vector<2x16x16xf32>
    %181 = arith.addf %176, %180 : vector<2x16x16xf32>
    %182 = vector.shape_cast %181 : vector<2x16x16xf32> to vector<1x2x16x16xf32>
    %cst_16 = arith.constant dense<0.000000e+00> : vector<1xf32>
    %183 = vector.multi_reduction <add>, %182, %cst_16 [1, 2, 3] : vector<1x2x16x16xf32> to vector<1xf32>
    %184 = vector.shape_cast %183 : vector<1xf32> to vector<1x1x1x1xf32>
    %185 = vector.extract %184[0, 0, 0, 0] : f32 from vector<1x1x1x1xf32>
    %186 = arith.mulf %181, %181 : vector<2x16x16xf32>
    %187 = vector.shape_cast %186 : vector<2x16x16xf32> to vector<1x2x16x16xf32>
    %cst_17 = arith.constant dense<0.000000e+00> : vector<1xf32>
    %188 = vector.multi_reduction <add>, %187, %cst_17 [1, 2, 3] : vector<1x2x16x16xf32> to vector<1xf32>
    %189 = vector.shape_cast %188 : vector<1xf32> to vector<1x1x1x1xf32>
    %190 = vector.extract %189[0, 0, 0, 0] : f32 from vector<1x1x1x1xf32>
    %cst_18 = arith.constant 0.001953125 : f32
    %191 = arith.mulf %185, %cst_18 : f32
    %cst_19 = arith.constant 0.001953125 : f32
    %192 = arith.mulf %190, %cst_19 : f32
    %193 = arith.mulf %191, %191 : f32
    %194 = arith.subf %192, %193 : f32
    %cst_20 = arith.constant 0.000000e+00 : f32
    %195 = arith.maximumf %194, %cst_20 : f32
    %c1_21 = arith.constant 1 : index
    %196 = memref.load %arg2[%c1_21] : memref<7xf32, #tpu.memory_space<smem>>
    %cst_22 = arith.constant 9.99999974E-6 : f32
    %197 = arith.addf %195, %cst_22 : f32
    %198 = math.rsqrt %197 : f32
    %199 = arith.mulf %196, %198 : f32
    %c1_23 = arith.constant 1 : index
    %200 = memref.load %arg3[%c1_23] : memref<7xf32, #tpu.memory_space<smem>>
    %201 = arith.mulf %191, %199 : f32
    %202 = arith.subf %200, %201 : f32
    %203 = vector.broadcast %199 : f32 to vector<2x16x16xf32>
    %204 = arith.mulf %181, %203 : vector<2x16x16xf32>
    %205 = vector.broadcast %202 : f32 to vector<2x16x16xf32>
    %206 = arith.addf %204, %205 : vector<2x16x16xf32>
    %cst_24 = arith.constant 0.000000e+00 : f32
    %207 = vector.broadcast %cst_24 : f32 to vector<2x16x16xf32>
    %208 = arith.maximumf %206, %207 : vector<2x16x16xf32>
    %209 = vector.extract_strided_slice %131 {offsets = [0, 14, 0], sizes = [2, 2, 16], strides = [1, 1, 1]} : vector<2x16x16xf32> to vector<2x2x16xf32>
    %210 = vector.extract_strided_slice %131 {offsets = [0, 0, 0], sizes = [2, 2, 16], strides = [1, 1, 1]} : vector<2x16x16xf32> to vector<2x2x16xf32>
    %211 = tpu.concatenate %209, %131, %210 in 1 : vector<2x2x16xf32>, vector<2x16x16xf32>, vector<2x2x16xf32> -> vector<2x20x16xf32>
    %212 = vector.extract_strided_slice %211 {offsets = [0, 0, 0], sizes = [2, 20, 1], strides = [1, 1, 1]} : vector<2x20x16xf32> to vector<2x20x1xf32>
    %213 = vector.shape_cast %212 : vector<2x20x1xf32> to vector<2x20x1xf32>
    %214 = vector.broadcast %213 : vector<2x20x1xf32> to vector<2x20x2xf32>
    %215 = vector.extract_strided_slice %211 {offsets = [0, 0, 15], sizes = [2, 20, 1], strides = [1, 1, 1]} : vector<2x20x16xf32> to vector<2x20x1xf32>
    %216 = vector.shape_cast %215 : vector<2x20x1xf32> to vector<2x20x1xf32>
    %217 = vector.broadcast %216 : vector<2x20x1xf32> to vector<2x20x2xf32>
    %218 = tpu.concatenate %214, %211, %217 in 2 : vector<2x20x2xf32>, vector<2x20x16xf32>, vector<2x20x2xf32> -> vector<2x20x20xf32>
    %219 = vector.extract_strided_slice %208 {offsets = [0, 14, 0], sizes = [2, 2, 16], strides = [1, 1, 1]} : vector<2x16x16xf32> to vector<2x2x16xf32>
    %220 = vector.extract_strided_slice %208 {offsets = [0, 0, 0], sizes = [2, 2, 16], strides = [1, 1, 1]} : vector<2x16x16xf32> to vector<2x2x16xf32>
    %221 = tpu.concatenate %219, %208, %220 in 1 : vector<2x2x16xf32>, vector<2x16x16xf32>, vector<2x2x16xf32> -> vector<2x20x16xf32>
    %222 = vector.extract_strided_slice %221 {offsets = [0, 0, 0], sizes = [2, 20, 1], strides = [1, 1, 1]} : vector<2x20x16xf32> to vector<2x20x1xf32>
    %223 = vector.shape_cast %222 : vector<2x20x1xf32> to vector<2x20x1xf32>
    %224 = vector.broadcast %223 : vector<2x20x1xf32> to vector<2x20x2xf32>
    %225 = vector.extract_strided_slice %221 {offsets = [0, 0, 15], sizes = [2, 20, 1], strides = [1, 1, 1]} : vector<2x20x16xf32> to vector<2x20x1xf32>
    %226 = vector.shape_cast %225 : vector<2x20x1xf32> to vector<2x20x1xf32>
    %227 = vector.broadcast %226 : vector<2x20x1xf32> to vector<2x20x2xf32>
    %228 = tpu.concatenate %224, %221, %227 in 2 : vector<2x20x2xf32>, vector<2x20x16xf32>, vector<2x20x2xf32> -> vector<2x20x20xf32>
    %229 = vector.extract_strided_slice %218 {offsets = [0, 0, 0], sizes = [2, 16, 16], strides = [1, 1, 1]} : vector<2x20x20xf32> to vector<2x16x16xf32>
    %c27 = arith.constant 27 : index
    %230 = memref.load %arg1[%c27] : memref<90xf32, #tpu.memory_space<smem>>
    %231 = vector.broadcast %230 : f32 to vector<2x16x16xf32>
    %232 = arith.mulf %231, %229 : vector<2x16x16xf32>
    %233 = vector.extract_strided_slice %218 {offsets = [0, 0, 2], sizes = [2, 16, 16], strides = [1, 1, 1]} : vector<2x20x20xf32> to vector<2x16x16xf32>
    %c28 = arith.constant 28 : index
    %234 = memref.load %arg1[%c28] : memref<90xf32, #tpu.memory_space<smem>>
    %235 = vector.broadcast %234 : f32 to vector<2x16x16xf32>
    %236 = arith.mulf %235, %233 : vector<2x16x16xf32>
    %237 = arith.addf %232, %236 : vector<2x16x16xf32>
    %238 = vector.extract_strided_slice %218 {offsets = [0, 0, 4], sizes = [2, 16, 16], strides = [1, 1, 1]} : vector<2x20x20xf32> to vector<2x16x16xf32>
    %c29 = arith.constant 29 : index
    %239 = memref.load %arg1[%c29] : memref<90xf32, #tpu.memory_space<smem>>
    %240 = vector.broadcast %239 : f32 to vector<2x16x16xf32>
    %241 = arith.mulf %240, %238 : vector<2x16x16xf32>
    %242 = arith.addf %237, %241 : vector<2x16x16xf32>
    %243 = vector.extract_strided_slice %218 {offsets = [0, 2, 0], sizes = [2, 16, 16], strides = [1, 1, 1]} : vector<2x20x20xf32> to vector<2x16x16xf32>
    %c30 = arith.constant 30 : index
    %244 = memref.load %arg1[%c30] : memref<90xf32, #tpu.memory_space<smem>>
    %245 = vector.broadcast %244 : f32 to vector<2x16x16xf32>
    %246 = arith.mulf %245, %243 : vector<2x16x16xf32>
    %247 = arith.addf %242, %246 : vector<2x16x16xf32>
    %248 = vector.extract_strided_slice %218 {offsets = [0, 2, 2], sizes = [2, 16, 16], strides = [1, 1, 1]} : vector<2x20x20xf32> to vector<2x16x16xf32>
    %c31 = arith.constant 31 : index
    %249 = memref.load %arg1[%c31] : memref<90xf32, #tpu.memory_space<smem>>
    %250 = vector.broadcast %249 : f32 to vector<2x16x16xf32>
    %251 = arith.mulf %250, %248 : vector<2x16x16xf32>
    %252 = arith.addf %247, %251 : vector<2x16x16xf32>
    %253 = vector.extract_strided_slice %218 {offsets = [0, 2, 4], sizes = [2, 16, 16], strides = [1, 1, 1]} : vector<2x20x20xf32> to vector<2x16x16xf32>
    %c32 = arith.constant 32 : index
    %254 = memref.load %arg1[%c32] : memref<90xf32, #tpu.memory_space<smem>>
    %255 = vector.broadcast %254 : f32 to vector<2x16x16xf32>
    %256 = arith.mulf %255, %253 : vector<2x16x16xf32>
    %257 = arith.addf %252, %256 : vector<2x16x16xf32>
    %258 = vector.extract_strided_slice %218 {offsets = [0, 4, 0], sizes = [2, 16, 16], strides = [1, 1, 1]} : vector<2x20x20xf32> to vector<2x16x16xf32>
    %c33 = arith.constant 33 : index
    %259 = memref.load %arg1[%c33] : memref<90xf32, #tpu.memory_space<smem>>
    %260 = vector.broadcast %259 : f32 to vector<2x16x16xf32>
    %261 = arith.mulf %260, %258 : vector<2x16x16xf32>
    %262 = arith.addf %257, %261 : vector<2x16x16xf32>
    %263 = vector.extract_strided_slice %218 {offsets = [0, 4, 2], sizes = [2, 16, 16], strides = [1, 1, 1]} : vector<2x20x20xf32> to vector<2x16x16xf32>
    %c34 = arith.constant 34 : index
    %264 = memref.load %arg1[%c34] : memref<90xf32, #tpu.memory_space<smem>>
    %265 = vector.broadcast %264 : f32 to vector<2x16x16xf32>
    %266 = arith.mulf %265, %263 : vector<2x16x16xf32>
    %267 = arith.addf %262, %266 : vector<2x16x16xf32>
    %268 = vector.extract_strided_slice %218 {offsets = [0, 4, 4], sizes = [2, 16, 16], strides = [1, 1, 1]} : vector<2x20x20xf32> to vector<2x16x16xf32>
    %c35 = arith.constant 35 : index
    %269 = memref.load %arg1[%c35] : memref<90xf32, #tpu.memory_space<smem>>
    %270 = vector.broadcast %269 : f32 to vector<2x16x16xf32>
    %271 = arith.mulf %270, %268 : vector<2x16x16xf32>
    %272 = arith.addf %267, %271 : vector<2x16x16xf32>
    %273 = vector.extract_strided_slice %228 {offsets = [0, 0, 0], sizes = [2, 16, 16], strides = [1, 1, 1]} : vector<2x20x20xf32> to vector<2x16x16xf32>
    %c36 = arith.constant 36 : index
    %274 = memref.load %arg1[%c36] : memref<90xf32, #tpu.memory_space<smem>>
    %275 = vector.broadcast %274 : f32 to vector<2x16x16xf32>
    %276 = arith.mulf %275, %273 : vector<2x16x16xf32>
    %277 = arith.addf %272, %276 : vector<2x16x16xf32>
    %278 = vector.extract_strided_slice %228 {offsets = [0, 0, 2], sizes = [2, 16, 16], strides = [1, 1, 1]} : vector<2x20x20xf32> to vector<2x16x16xf32>
    %c37 = arith.constant 37 : index
    %279 = memref.load %arg1[%c37] : memref<90xf32, #tpu.memory_space<smem>>
    %280 = vector.broadcast %279 : f32 to vector<2x16x16xf32>
    %281 = arith.mulf %280, %278 : vector<2x16x16xf32>
    %282 = arith.addf %277, %281 : vector<2x16x16xf32>
    %283 = vector.extract_strided_slice %228 {offsets = [0, 0, 4], sizes = [2, 16, 16], strides = [1, 1, 1]} : vector<2x20x20xf32> to vector<2x16x16xf32>
    %c38 = arith.constant 38 : index
    %284 = memref.load %arg1[%c38] : memref<90xf32, #tpu.memory_space<smem>>
    %285 = vector.broadcast %284 : f32 to vector<2x16x16xf32>
    %286 = arith.mulf %285, %283 : vector<2x16x16xf32>
    %287 = arith.addf %282, %286 : vector<2x16x16xf32>
    %288 = vector.extract_strided_slice %228 {offsets = [0, 2, 0], sizes = [2, 16, 16], strides = [1, 1, 1]} : vector<2x20x20xf32> to vector<2x16x16xf32>
    %c39 = arith.constant 39 : index
    %289 = memref.load %arg1[%c39] : memref<90xf32, #tpu.memory_space<smem>>
    %290 = vector.broadcast %289 : f32 to vector<2x16x16xf32>
    %291 = arith.mulf %290, %288 : vector<2x16x16xf32>
    %292 = arith.addf %287, %291 : vector<2x16x16xf32>
    %293 = vector.extract_strided_slice %228 {offsets = [0, 2, 2], sizes = [2, 16, 16], strides = [1, 1, 1]} : vector<2x20x20xf32> to vector<2x16x16xf32>
    %c40 = arith.constant 40 : index
    %294 = memref.load %arg1[%c40] : memref<90xf32, #tpu.memory_space<smem>>
    %295 = vector.broadcast %294 : f32 to vector<2x16x16xf32>
    %296 = arith.mulf %295, %293 : vector<2x16x16xf32>
    %297 = arith.addf %292, %296 : vector<2x16x16xf32>
    %298 = vector.extract_strided_slice %228 {offsets = [0, 2, 4], sizes = [2, 16, 16], strides = [1, 1, 1]} : vector<2x20x20xf32> to vector<2x16x16xf32>
    %c41 = arith.constant 41 : index
    %299 = memref.load %arg1[%c41] : memref<90xf32, #tpu.memory_space<smem>>
    %300 = vector.broadcast %299 : f32 to vector<2x16x16xf32>
    %301 = arith.mulf %300, %298 : vector<2x16x16xf32>
    %302 = arith.addf %297, %301 : vector<2x16x16xf32>
    %303 = vector.extract_strided_slice %228 {offsets = [0, 4, 0], sizes = [2, 16, 16], strides = [1, 1, 1]} : vector<2x20x20xf32> to vector<2x16x16xf32>
    %c42 = arith.constant 42 : index
    %304 = memref.load %arg1[%c42] : memref<90xf32, #tpu.memory_space<smem>>
    %305 = vector.broadcast %304 : f32 to vector<2x16x16xf32>
    %306 = arith.mulf %305, %303 : vector<2x16x16xf32>
    %307 = arith.addf %302, %306 : vector<2x16x16xf32>
    %308 = vector.extract_strided_slice %228 {offsets = [0, 4, 2], sizes = [2, 16, 16], strides = [1, 1, 1]} : vector<2x20x20xf32> to vector<2x16x16xf32>
    %c43 = arith.constant 43 : index
    %309 = memref.load %arg1[%c43] : memref<90xf32, #tpu.memory_space<smem>>
    %310 = vector.broadcast %309 : f32 to vector<2x16x16xf32>
    %311 = arith.mulf %310, %308 : vector<2x16x16xf32>
    %312 = arith.addf %307, %311 : vector<2x16x16xf32>
    %313 = vector.extract_strided_slice %228 {offsets = [0, 4, 4], sizes = [2, 16, 16], strides = [1, 1, 1]} : vector<2x20x20xf32> to vector<2x16x16xf32>
    %c44 = arith.constant 44 : index
    %314 = memref.load %arg1[%c44] : memref<90xf32, #tpu.memory_space<smem>>
    %315 = vector.broadcast %314 : f32 to vector<2x16x16xf32>
    %316 = arith.mulf %315, %313 : vector<2x16x16xf32>
    %317 = arith.addf %312, %316 : vector<2x16x16xf32>
    %318 = vector.shape_cast %317 : vector<2x16x16xf32> to vector<1x2x16x16xf32>
    %cst_25 = arith.constant dense<0.000000e+00> : vector<1xf32>
    %319 = vector.multi_reduction <add>, %318, %cst_25 [1, 2, 3] : vector<1x2x16x16xf32> to vector<1xf32>
    %320 = vector.shape_cast %319 : vector<1xf32> to vector<1x1x1x1xf32>
    %321 = vector.extract %320[0, 0, 0, 0] : f32 from vector<1x1x1x1xf32>
    %322 = arith.mulf %317, %317 : vector<2x16x16xf32>
    %323 = vector.shape_cast %322 : vector<2x16x16xf32> to vector<1x2x16x16xf32>
    %cst_26 = arith.constant dense<0.000000e+00> : vector<1xf32>
    %324 = vector.multi_reduction <add>, %323, %cst_26 [1, 2, 3] : vector<1x2x16x16xf32> to vector<1xf32>
    %325 = vector.shape_cast %324 : vector<1xf32> to vector<1x1x1x1xf32>
    %326 = vector.extract %325[0, 0, 0, 0] : f32 from vector<1x1x1x1xf32>
    %cst_27 = arith.constant 0.001953125 : f32
    %327 = arith.mulf %321, %cst_27 : f32
    %cst_28 = arith.constant 0.001953125 : f32
    %328 = arith.mulf %326, %cst_28 : f32
    %329 = arith.mulf %327, %327 : f32
    %330 = arith.subf %328, %329 : f32
    %cst_29 = arith.constant 0.000000e+00 : f32
    %331 = arith.maximumf %330, %cst_29 : f32
    %c2_30 = arith.constant 2 : index
    %332 = memref.load %arg2[%c2_30] : memref<7xf32, #tpu.memory_space<smem>>
    %cst_31 = arith.constant 9.99999974E-6 : f32
    %333 = arith.addf %331, %cst_31 : f32
    %334 = math.rsqrt %333 : f32
    %335 = arith.mulf %332, %334 : f32
    %c2_32 = arith.constant 2 : index
    %336 = memref.load %arg3[%c2_32] : memref<7xf32, #tpu.memory_space<smem>>
    %337 = arith.mulf %327, %335 : f32
    %338 = arith.subf %336, %337 : f32
    %339 = vector.broadcast %335 : f32 to vector<2x16x16xf32>
    %340 = arith.mulf %317, %339 : vector<2x16x16xf32>
    %341 = vector.broadcast %338 : f32 to vector<2x16x16xf32>
    %342 = arith.addf %340, %341 : vector<2x16x16xf32>
    %cst_33 = arith.constant 0.000000e+00 : f32
    %343 = vector.broadcast %cst_33 : f32 to vector<2x16x16xf32>
    %344 = arith.maximumf %342, %343 : vector<2x16x16xf32>
    %345 = vector.extract_strided_slice %131 {offsets = [0, 15, 0], sizes = [2, 1, 16], strides = [1, 1, 1]} : vector<2x16x16xf32> to vector<2x1x16xf32>
    %346 = vector.extract_strided_slice %131 {offsets = [0, 0, 0], sizes = [2, 1, 16], strides = [1, 1, 1]} : vector<2x16x16xf32> to vector<2x1x16xf32>
    %347 = tpu.concatenate %345, %131, %346 in 1 : vector<2x1x16xf32>, vector<2x16x16xf32>, vector<2x1x16xf32> -> vector<2x18x16xf32>
    %348 = vector.extract_strided_slice %347 {offsets = [0, 0, 0], sizes = [2, 18, 1], strides = [1, 1, 1]} : vector<2x18x16xf32> to vector<2x18x1xf32>
    %349 = vector.shape_cast %348 : vector<2x18x1xf32> to vector<2x18x1xf32>
    %350 = vector.broadcast %349 : vector<2x18x1xf32> to vector<2x18x3xf32>
    %351 = vector.extract_strided_slice %347 {offsets = [0, 0, 15], sizes = [2, 18, 1], strides = [1, 1, 1]} : vector<2x18x16xf32> to vector<2x18x1xf32>
    %352 = vector.shape_cast %351 : vector<2x18x1xf32> to vector<2x18x1xf32>
    %353 = vector.broadcast %352 : vector<2x18x1xf32> to vector<2x18x3xf32>
    %354 = tpu.concatenate %350, %347, %353 in 2 : vector<2x18x3xf32>, vector<2x18x16xf32>, vector<2x18x3xf32> -> vector<2x18x22xf32>
    %355 = vector.extract_strided_slice %208 {offsets = [0, 15, 0], sizes = [2, 1, 16], strides = [1, 1, 1]} : vector<2x16x16xf32> to vector<2x1x16xf32>
    %356 = vector.extract_strided_slice %208 {offsets = [0, 0, 0], sizes = [2, 1, 16], strides = [1, 1, 1]} : vector<2x16x16xf32> to vector<2x1x16xf32>
    %357 = tpu.concatenate %355, %208, %356 in 1 : vector<2x1x16xf32>, vector<2x16x16xf32>, vector<2x1x16xf32> -> vector<2x18x16xf32>
    %358 = vector.extract_strided_slice %357 {offsets = [0, 0, 0], sizes = [2, 18, 1], strides = [1, 1, 1]} : vector<2x18x16xf32> to vector<2x18x1xf32>
    %359 = vector.shape_cast %358 : vector<2x18x1xf32> to vector<2x18x1xf32>
    %360 = vector.broadcast %359 : vector<2x18x1xf32> to vector<2x18x3xf32>
    %361 = vector.extract_strided_slice %357 {offsets = [0, 0, 15], sizes = [2, 18, 1], strides = [1, 1, 1]} : vector<2x18x16xf32> to vector<2x18x1xf32>
    %362 = vector.shape_cast %361 : vector<2x18x1xf32> to vector<2x18x1xf32>
    %363 = vector.broadcast %362 : vector<2x18x1xf32> to vector<2x18x3xf32>
    %364 = tpu.concatenate %360, %357, %363 in 2 : vector<2x18x3xf32>, vector<2x18x16xf32>, vector<2x18x3xf32> -> vector<2x18x22xf32>
    %365 = vector.extract_strided_slice %344 {offsets = [0, 15, 0], sizes = [2, 1, 16], strides = [1, 1, 1]} : vector<2x16x16xf32> to vector<2x1x16xf32>
    %366 = vector.extract_strided_slice %344 {offsets = [0, 0, 0], sizes = [2, 1, 16], strides = [1, 1, 1]} : vector<2x16x16xf32> to vector<2x1x16xf32>
    %367 = tpu.concatenate %365, %344, %366 in 1 : vector<2x1x16xf32>, vector<2x16x16xf32>, vector<2x1x16xf32> -> vector<2x18x16xf32>
    %368 = vector.extract_strided_slice %367 {offsets = [0, 0, 0], sizes = [2, 18, 1], strides = [1, 1, 1]} : vector<2x18x16xf32> to vector<2x18x1xf32>
    %369 = vector.shape_cast %368 : vector<2x18x1xf32> to vector<2x18x1xf32>
    %370 = vector.broadcast %369 : vector<2x18x1xf32> to vector<2x18x3xf32>
    %371 = vector.extract_strided_slice %367 {offsets = [0, 0, 15], sizes = [2, 18, 1], strides = [1, 1, 1]} : vector<2x18x16xf32> to vector<2x18x1xf32>
    %372 = vector.shape_cast %371 : vector<2x18x1xf32> to vector<2x18x1xf32>
    %373 = vector.broadcast %372 : vector<2x18x1xf32> to vector<2x18x3xf32>
    %374 = tpu.concatenate %370, %367, %373 in 2 : vector<2x18x3xf32>, vector<2x18x16xf32>, vector<2x18x3xf32> -> vector<2x18x22xf32>
    %375 = vector.extract_strided_slice %354 {offsets = [0, 0, 0], sizes = [2, 16, 16], strides = [1, 1, 1]} : vector<2x18x22xf32> to vector<2x16x16xf32>
    %c45 = arith.constant 45 : index
    %376 = memref.load %arg1[%c45] : memref<90xf32, #tpu.memory_space<smem>>
    %377 = vector.broadcast %376 : f32 to vector<2x16x16xf32>
    %378 = arith.mulf %377, %375 : vector<2x16x16xf32>
    %379 = vector.extract_strided_slice %354 {offsets = [0, 0, 3], sizes = [2, 16, 16], strides = [1, 1, 1]} : vector<2x18x22xf32> to vector<2x16x16xf32>
    %c46 = arith.constant 46 : index
    %380 = memref.load %arg1[%c46] : memref<90xf32, #tpu.memory_space<smem>>
    %381 = vector.broadcast %380 : f32 to vector<2x16x16xf32>
    %382 = arith.mulf %381, %379 : vector<2x16x16xf32>
    %383 = arith.addf %378, %382 : vector<2x16x16xf32>
    %384 = vector.extract_strided_slice %354 {offsets = [0, 0, 6], sizes = [2, 16, 16], strides = [1, 1, 1]} : vector<2x18x22xf32> to vector<2x16x16xf32>
    %c47 = arith.constant 47 : index
    %385 = memref.load %arg1[%c47] : memref<90xf32, #tpu.memory_space<smem>>
    %386 = vector.broadcast %385 : f32 to vector<2x16x16xf32>
    %387 = arith.mulf %386, %384 : vector<2x16x16xf32>
    %388 = arith.addf %383, %387 : vector<2x16x16xf32>
    %389 = vector.extract_strided_slice %354 {offsets = [0, 1, 0], sizes = [2, 16, 16], strides = [1, 1, 1]} : vector<2x18x22xf32> to vector<2x16x16xf32>
    %c48 = arith.constant 48 : index
    %390 = memref.load %arg1[%c48] : memref<90xf32, #tpu.memory_space<smem>>
    %391 = vector.broadcast %390 : f32 to vector<2x16x16xf32>
    %392 = arith.mulf %391, %389 : vector<2x16x16xf32>
    %393 = arith.addf %388, %392 : vector<2x16x16xf32>
    %394 = vector.extract_strided_slice %354 {offsets = [0, 1, 3], sizes = [2, 16, 16], strides = [1, 1, 1]} : vector<2x18x22xf32> to vector<2x16x16xf32>
    %c49 = arith.constant 49 : index
    %395 = memref.load %arg1[%c49] : memref<90xf32, #tpu.memory_space<smem>>
    %396 = vector.broadcast %395 : f32 to vector<2x16x16xf32>
    %397 = arith.mulf %396, %394 : vector<2x16x16xf32>
    %398 = arith.addf %393, %397 : vector<2x16x16xf32>
    %399 = vector.extract_strided_slice %354 {offsets = [0, 1, 6], sizes = [2, 16, 16], strides = [1, 1, 1]} : vector<2x18x22xf32> to vector<2x16x16xf32>
    %c50 = arith.constant 50 : index
    %400 = memref.load %arg1[%c50] : memref<90xf32, #tpu.memory_space<smem>>
    %401 = vector.broadcast %400 : f32 to vector<2x16x16xf32>
    %402 = arith.mulf %401, %399 : vector<2x16x16xf32>
    %403 = arith.addf %398, %402 : vector<2x16x16xf32>
    %404 = vector.extract_strided_slice %354 {offsets = [0, 2, 0], sizes = [2, 16, 16], strides = [1, 1, 1]} : vector<2x18x22xf32> to vector<2x16x16xf32>
    %c51 = arith.constant 51 : index
    %405 = memref.load %arg1[%c51] : memref<90xf32, #tpu.memory_space<smem>>
    %406 = vector.broadcast %405 : f32 to vector<2x16x16xf32>
    %407 = arith.mulf %406, %404 : vector<2x16x16xf32>
    %408 = arith.addf %403, %407 : vector<2x16x16xf32>
    %409 = vector.extract_strided_slice %354 {offsets = [0, 2, 3], sizes = [2, 16, 16], strides = [1, 1, 1]} : vector<2x18x22xf32> to vector<2x16x16xf32>
    %c52 = arith.constant 52 : index
    %410 = memref.load %arg1[%c52] : memref<90xf32, #tpu.memory_space<smem>>
    %411 = vector.broadcast %410 : f32 to vector<2x16x16xf32>
    %412 = arith.mulf %411, %409 : vector<2x16x16xf32>
    %413 = arith.addf %408, %412 : vector<2x16x16xf32>
    %414 = vector.extract_strided_slice %354 {offsets = [0, 2, 6], sizes = [2, 16, 16], strides = [1, 1, 1]} : vector<2x18x22xf32> to vector<2x16x16xf32>
    %c53 = arith.constant 53 : index
    %415 = memref.load %arg1[%c53] : memref<90xf32, #tpu.memory_space<smem>>
    %416 = vector.broadcast %415 : f32 to vector<2x16x16xf32>
    %417 = arith.mulf %416, %414 : vector<2x16x16xf32>
    %418 = arith.addf %413, %417 : vector<2x16x16xf32>
    %419 = vector.extract_strided_slice %364 {offsets = [0, 0, 0], sizes = [2, 16, 16], strides = [1, 1, 1]} : vector<2x18x22xf32> to vector<2x16x16xf32>
    %c54 = arith.constant 54 : index
    %420 = memref.load %arg1[%c54] : memref<90xf32, #tpu.memory_space<smem>>
    %421 = vector.broadcast %420 : f32 to vector<2x16x16xf32>
    %422 = arith.mulf %421, %419 : vector<2x16x16xf32>
    %423 = arith.addf %418, %422 : vector<2x16x16xf32>
    %424 = vector.extract_strided_slice %364 {offsets = [0, 0, 3], sizes = [2, 16, 16], strides = [1, 1, 1]} : vector<2x18x22xf32> to vector<2x16x16xf32>
    %c55 = arith.constant 55 : index
    %425 = memref.load %arg1[%c55] : memref<90xf32, #tpu.memory_space<smem>>
    %426 = vector.broadcast %425 : f32 to vector<2x16x16xf32>
    %427 = arith.mulf %426, %424 : vector<2x16x16xf32>
    %428 = arith.addf %423, %427 : vector<2x16x16xf32>
    %429 = vector.extract_strided_slice %364 {offsets = [0, 0, 6], sizes = [2, 16, 16], strides = [1, 1, 1]} : vector<2x18x22xf32> to vector<2x16x16xf32>
    %c56 = arith.constant 56 : index
    %430 = memref.load %arg1[%c56] : memref<90xf32, #tpu.memory_space<smem>>
    %431 = vector.broadcast %430 : f32 to vector<2x16x16xf32>
    %432 = arith.mulf %431, %429 : vector<2x16x16xf32>
    %433 = arith.addf %428, %432 : vector<2x16x16xf32>
    %434 = vector.extract_strided_slice %364 {offsets = [0, 1, 0], sizes = [2, 16, 16], strides = [1, 1, 1]} : vector<2x18x22xf32> to vector<2x16x16xf32>
    %c57 = arith.constant 57 : index
    %435 = memref.load %arg1[%c57] : memref<90xf32, #tpu.memory_space<smem>>
    %436 = vector.broadcast %435 : f32 to vector<2x16x16xf32>
    %437 = arith.mulf %436, %434 : vector<2x16x16xf32>
    %438 = arith.addf %433, %437 : vector<2x16x16xf32>
    %439 = vector.extract_strided_slice %364 {offsets = [0, 1, 3], sizes = [2, 16, 16], strides = [1, 1, 1]} : vector<2x18x22xf32> to vector<2x16x16xf32>
    %c58 = arith.constant 58 : index
    %440 = memref.load %arg1[%c58] : memref<90xf32, #tpu.memory_space<smem>>
    %441 = vector.broadcast %440 : f32 to vector<2x16x16xf32>
    %442 = arith.mulf %441, %439 : vector<2x16x16xf32>
    %443 = arith.addf %438, %442 : vector<2x16x16xf32>
    %444 = vector.extract_strided_slice %364 {offsets = [0, 1, 6], sizes = [2, 16, 16], strides = [1, 1, 1]} : vector<2x18x22xf32> to vector<2x16x16xf32>
    %c59 = arith.constant 59 : index
    %445 = memref.load %arg1[%c59] : memref<90xf32, #tpu.memory_space<smem>>
    %446 = vector.broadcast %445 : f32 to vector<2x16x16xf32>
    %447 = arith.mulf %446, %444 : vector<2x16x16xf32>
    %448 = arith.addf %443, %447 : vector<2x16x16xf32>
    %449 = vector.extract_strided_slice %364 {offsets = [0, 2, 0], sizes = [2, 16, 16], strides = [1, 1, 1]} : vector<2x18x22xf32> to vector<2x16x16xf32>
    %c60 = arith.constant 60 : index
    %450 = memref.load %arg1[%c60] : memref<90xf32, #tpu.memory_space<smem>>
    %451 = vector.broadcast %450 : f32 to vector<2x16x16xf32>
    %452 = arith.mulf %451, %449 : vector<2x16x16xf32>
    %453 = arith.addf %448, %452 : vector<2x16x16xf32>
    %454 = vector.extract_strided_slice %364 {offsets = [0, 2, 3], sizes = [2, 16, 16], strides = [1, 1, 1]} : vector<2x18x22xf32> to vector<2x16x16xf32>
    %c61 = arith.constant 61 : index
    %455 = memref.load %arg1[%c61] : memref<90xf32, #tpu.memory_space<smem>>
    %456 = vector.broadcast %455 : f32 to vector<2x16x16xf32>
    %457 = arith.mulf %456, %454 : vector<2x16x16xf32>
    %458 = arith.addf %453, %457 : vector<2x16x16xf32>
    %459 = vector.extract_strided_slice %364 {offsets = [0, 2, 6], sizes = [2, 16, 16], strides = [1, 1, 1]} : vector<2x18x22xf32> to vector<2x16x16xf32>
    %c62 = arith.constant 62 : index
    %460 = memref.load %arg1[%c62] : memref<90xf32, #tpu.memory_space<smem>>
    %461 = vector.broadcast %460 : f32 to vector<2x16x16xf32>
    %462 = arith.mulf %461, %459 : vector<2x16x16xf32>
    %463 = arith.addf %458, %462 : vector<2x16x16xf32>
    %464 = vector.extract_strided_slice %374 {offsets = [0, 0, 0], sizes = [2, 16, 16], strides = [1, 1, 1]} : vector<2x18x22xf32> to vector<2x16x16xf32>
    %c63 = arith.constant 63 : index
    %465 = memref.load %arg1[%c63] : memref<90xf32, #tpu.memory_space<smem>>
    %466 = vector.broadcast %465 : f32 to vector<2x16x16xf32>
    %467 = arith.mulf %466, %464 : vector<2x16x16xf32>
    %468 = arith.addf %463, %467 : vector<2x16x16xf32>
    %469 = vector.extract_strided_slice %374 {offsets = [0, 0, 3], sizes = [2, 16, 16], strides = [1, 1, 1]} : vector<2x18x22xf32> to vector<2x16x16xf32>
    %c64 = arith.constant 64 : index
    %470 = memref.load %arg1[%c64] : memref<90xf32, #tpu.memory_space<smem>>
    %471 = vector.broadcast %470 : f32 to vector<2x16x16xf32>
    %472 = arith.mulf %471, %469 : vector<2x16x16xf32>
    %473 = arith.addf %468, %472 : vector<2x16x16xf32>
    %474 = vector.extract_strided_slice %374 {offsets = [0, 0, 6], sizes = [2, 16, 16], strides = [1, 1, 1]} : vector<2x18x22xf32> to vector<2x16x16xf32>
    %c65 = arith.constant 65 : index
    %475 = memref.load %arg1[%c65] : memref<90xf32, #tpu.memory_space<smem>>
    %476 = vector.broadcast %475 : f32 to vector<2x16x16xf32>
    %477 = arith.mulf %476, %474 : vector<2x16x16xf32>
    %478 = arith.addf %473, %477 : vector<2x16x16xf32>
    %479 = vector.extract_strided_slice %374 {offsets = [0, 1, 0], sizes = [2, 16, 16], strides = [1, 1, 1]} : vector<2x18x22xf32> to vector<2x16x16xf32>
    %c66 = arith.constant 66 : index
    %480 = memref.load %arg1[%c66] : memref<90xf32, #tpu.memory_space<smem>>
    %481 = vector.broadcast %480 : f32 to vector<2x16x16xf32>
    %482 = arith.mulf %481, %479 : vector<2x16x16xf32>
    %483 = arith.addf %478, %482 : vector<2x16x16xf32>
    %484 = vector.extract_strided_slice %374 {offsets = [0, 1, 3], sizes = [2, 16, 16], strides = [1, 1, 1]} : vector<2x18x22xf32> to vector<2x16x16xf32>
    %c67 = arith.constant 67 : index
    %485 = memref.load %arg1[%c67] : memref<90xf32, #tpu.memory_space<smem>>
    %486 = vector.broadcast %485 : f32 to vector<2x16x16xf32>
    %487 = arith.mulf %486, %484 : vector<2x16x16xf32>
    %488 = arith.addf %483, %487 : vector<2x16x16xf32>
    %489 = vector.extract_strided_slice %374 {offsets = [0, 1, 6], sizes = [2, 16, 16], strides = [1, 1, 1]} : vector<2x18x22xf32> to vector<2x16x16xf32>
    %c68 = arith.constant 68 : index
    %490 = memref.load %arg1[%c68] : memref<90xf32, #tpu.memory_space<smem>>
    %491 = vector.broadcast %490 : f32 to vector<2x16x16xf32>
    %492 = arith.mulf %491, %489 : vector<2x16x16xf32>
    %493 = arith.addf %488, %492 : vector<2x16x16xf32>
    %494 = vector.extract_strided_slice %374 {offsets = [0, 2, 0], sizes = [2, 16, 16], strides = [1, 1, 1]} : vector<2x18x22xf32> to vector<2x16x16xf32>
    %c69 = arith.constant 69 : index
    %495 = memref.load %arg1[%c69] : memref<90xf32, #tpu.memory_space<smem>>
    %496 = vector.broadcast %495 : f32 to vector<2x16x16xf32>
    %497 = arith.mulf %496, %494 : vector<2x16x16xf32>
    %498 = arith.addf %493, %497 : vector<2x16x16xf32>
    %499 = vector.extract_strided_slice %374 {offsets = [0, 2, 3], sizes = [2, 16, 16], strides = [1, 1, 1]} : vector<2x18x22xf32> to vector<2x16x16xf32>
    %c70 = arith.constant 70 : index
    %500 = memref.load %arg1[%c70] : memref<90xf32, #tpu.memory_space<smem>>
    %501 = vector.broadcast %500 : f32 to vector<2x16x16xf32>
    %502 = arith.mulf %501, %499 : vector<2x16x16xf32>
    %503 = arith.addf %498, %502 : vector<2x16x16xf32>
    %504 = vector.extract_strided_slice %374 {offsets = [0, 2, 6], sizes = [2, 16, 16], strides = [1, 1, 1]} : vector<2x18x22xf32> to vector<2x16x16xf32>
    %c71 = arith.constant 71 : index
    %505 = memref.load %arg1[%c71] : memref<90xf32, #tpu.memory_space<smem>>
    %506 = vector.broadcast %505 : f32 to vector<2x16x16xf32>
    %507 = arith.mulf %506, %504 : vector<2x16x16xf32>
    %508 = arith.addf %503, %507 : vector<2x16x16xf32>
    %509 = vector.shape_cast %508 : vector<2x16x16xf32> to vector<1x2x16x16xf32>
    %cst_34 = arith.constant dense<0.000000e+00> : vector<1xf32>
    %510 = vector.multi_reduction <add>, %509, %cst_34 [1, 2, 3] : vector<1x2x16x16xf32> to vector<1xf32>
    %511 = vector.shape_cast %510 : vector<1xf32> to vector<1x1x1x1xf32>
    %512 = vector.extract %511[0, 0, 0, 0] : f32 from vector<1x1x1x1xf32>
    %513 = arith.mulf %508, %508 : vector<2x16x16xf32>
    %514 = vector.shape_cast %513 : vector<2x16x16xf32> to vector<1x2x16x16xf32>
    %cst_35 = arith.constant dense<0.000000e+00> : vector<1xf32>
    %515 = vector.multi_reduction <add>, %514, %cst_35 [1, 2, 3] : vector<1x2x16x16xf32> to vector<1xf32>
    %516 = vector.shape_cast %515 : vector<1xf32> to vector<1x1x1x1xf32>
    %517 = vector.extract %516[0, 0, 0, 0] : f32 from vector<1x1x1x1xf32>
    %cst_36 = arith.constant 0.001953125 : f32
    %518 = arith.mulf %512, %cst_36 : f32
    %cst_37 = arith.constant 0.001953125 : f32
    %519 = arith.mulf %517, %cst_37 : f32
    %520 = arith.mulf %518, %518 : f32
    %521 = arith.subf %519, %520 : f32
    %cst_38 = arith.constant 0.000000e+00 : f32
    %522 = arith.maximumf %521, %cst_38 : f32
    %c3_39 = arith.constant 3 : index
    %523 = memref.load %arg2[%c3_39] : memref<7xf32, #tpu.memory_space<smem>>
    %cst_40 = arith.constant 9.99999974E-6 : f32
    %524 = arith.addf %522, %cst_40 : f32
    %525 = math.rsqrt %524 : f32
    %526 = arith.mulf %523, %525 : f32
    %c3_41 = arith.constant 3 : index
    %527 = memref.load %arg3[%c3_41] : memref<7xf32, #tpu.memory_space<smem>>
    %528 = arith.mulf %518, %526 : f32
    %529 = arith.subf %527, %528 : f32
    %530 = vector.broadcast %526 : f32 to vector<2x16x16xf32>
    %531 = arith.mulf %508, %530 : vector<2x16x16xf32>
    %532 = vector.broadcast %529 : f32 to vector<2x16x16xf32>
    %533 = arith.addf %531, %532 : vector<2x16x16xf32>
    %cst_42 = arith.constant 0.000000e+00 : f32
    %534 = vector.broadcast %cst_42 : f32 to vector<2x16x16xf32>
    %535 = arith.maximumf %533, %534 : vector<2x16x16xf32>
    %c72 = arith.constant 72 : index
    %536 = memref.load %arg1[%c72] : memref<90xf32, #tpu.memory_space<smem>>
    %537 = vector.broadcast %536 : f32 to vector<2x16x16xf32>
    %538 = arith.mulf %537, %131 : vector<2x16x16xf32>
    %c73 = arith.constant 73 : index
    %539 = memref.load %arg1[%c73] : memref<90xf32, #tpu.memory_space<smem>>
    %540 = vector.broadcast %539 : f32 to vector<2x16x16xf32>
    %541 = arith.mulf %540, %208 : vector<2x16x16xf32>
    %542 = arith.addf %538, %541 : vector<2x16x16xf32>
    %c74 = arith.constant 74 : index
    %543 = memref.load %arg1[%c74] : memref<90xf32, #tpu.memory_space<smem>>
    %544 = vector.broadcast %543 : f32 to vector<2x16x16xf32>
    %545 = arith.mulf %544, %344 : vector<2x16x16xf32>
    %546 = arith.addf %542, %545 : vector<2x16x16xf32>
    %c75 = arith.constant 75 : index
    %547 = memref.load %arg1[%c75] : memref<90xf32, #tpu.memory_space<smem>>
    %548 = vector.broadcast %547 : f32 to vector<2x16x16xf32>
    %549 = arith.mulf %548, %535 : vector<2x16x16xf32>
    %550 = arith.addf %546, %549 : vector<2x16x16xf32>
    %c76 = arith.constant 76 : index
    %551 = memref.load %arg1[%c76] : memref<90xf32, #tpu.memory_space<smem>>
    %552 = vector.broadcast %551 : f32 to vector<2x16x16xf32>
    %553 = arith.mulf %552, %1 : vector<2x16x16xf32>
    %554 = arith.addf %550, %553 : vector<2x16x16xf32>
    %c77 = arith.constant 77 : index
    %555 = memref.load %arg1[%c77] : memref<90xf32, #tpu.memory_space<smem>>
    %556 = vector.broadcast %555 : f32 to vector<2x16x16xf32>
    %557 = arith.mulf %556, %3 : vector<2x16x16xf32>
    %558 = arith.addf %554, %557 : vector<2x16x16xf32>
    %559 = vector.shape_cast %558 : vector<2x16x16xf32> to vector<1x2x16x16xf32>
    %cst_43 = arith.constant dense<0.000000e+00> : vector<1xf32>
    %560 = vector.multi_reduction <add>, %559, %cst_43 [1, 2, 3] : vector<1x2x16x16xf32> to vector<1xf32>
    %561 = vector.shape_cast %560 : vector<1xf32> to vector<1x1x1x1xf32>
    %562 = vector.extract %561[0, 0, 0, 0] : f32 from vector<1x1x1x1xf32>
    %563 = arith.mulf %558, %558 : vector<2x16x16xf32>
    %564 = vector.shape_cast %563 : vector<2x16x16xf32> to vector<1x2x16x16xf32>
    %cst_44 = arith.constant dense<0.000000e+00> : vector<1xf32>
    %565 = vector.multi_reduction <add>, %564, %cst_44 [1, 2, 3] : vector<1x2x16x16xf32> to vector<1xf32>
    %566 = vector.shape_cast %565 : vector<1xf32> to vector<1x1x1x1xf32>
    %567 = vector.extract %566[0, 0, 0, 0] : f32 from vector<1x1x1x1xf32>
    %cst_45 = arith.constant 0.001953125 : f32
    %568 = arith.mulf %562, %cst_45 : f32
    %cst_46 = arith.constant 0.001953125 : f32
    %569 = arith.mulf %567, %cst_46 : f32
    %570 = arith.mulf %568, %568 : f32
    %571 = arith.subf %569, %570 : f32
    %cst_47 = arith.constant 0.000000e+00 : f32
    %572 = arith.maximumf %571, %cst_47 : f32
    %c4_48 = arith.constant 4 : index
    %573 = memref.load %arg2[%c4_48] : memref<7xf32, #tpu.memory_space<smem>>
    %cst_49 = arith.constant 9.99999974E-6 : f32
    %574 = arith.addf %572, %cst_49 : f32
    %575 = math.rsqrt %574 : f32
    %576 = arith.mulf %573, %575 : f32
    %c4_50 = arith.constant 4 : index
    %577 = memref.load %arg3[%c4_50] : memref<7xf32, #tpu.memory_space<smem>>
    %578 = arith.mulf %568, %576 : f32
    %579 = arith.subf %577, %578 : f32
    %580 = vector.broadcast %576 : f32 to vector<2x16x16xf32>
    %581 = arith.mulf %558, %580 : vector<2x16x16xf32>
    %582 = vector.broadcast %579 : f32 to vector<2x16x16xf32>
    %583 = arith.addf %581, %582 : vector<2x16x16xf32>
    %c0_51 = arith.constant 0 : index
    %c0_52 = arith.constant 0 : index
    %c0_53 = arith.constant 0 : index
    %c0_54 = arith.constant 0 : index
    %584 = vector.load %arg4[%c0_51, %c0_52, %c0_53, %c0_54] : memref<2x3x16x16xf32, #tpu.memory_space<vmem>>, vector<2x1x16x16xf32>
    %585 = vector.shape_cast %584 : vector<2x1x16x16xf32> to vector<2x16x16xf32>
    %586 = vector.shape_cast %583 : vector<2x16x16xf32> to vector<2x1x16x16xf32>
    tpu.vector_store %arg4[%c0_51, %c0_52, %c0_53, %c0_54], %586 {strides = array<i32>} : memref<2x3x16x16xf32, #tpu.memory_space<vmem>>, vector<2x1x16x16xf32>,
    %c78 = arith.constant 78 : index
    %587 = memref.load %arg1[%c78] : memref<90xf32, #tpu.memory_space<smem>>
    %588 = vector.broadcast %587 : f32 to vector<2x16x16xf32>
    %589 = arith.mulf %588, %131 : vector<2x16x16xf32>
    %c79 = arith.constant 79 : index
    %590 = memref.load %arg1[%c79] : memref<90xf32, #tpu.memory_space<smem>>
    %591 = vector.broadcast %590 : f32 to vector<2x16x16xf32>
    %592 = arith.mulf %591, %208 : vector<2x16x16xf32>
    %593 = arith.addf %589, %592 : vector<2x16x16xf32>
    %c80 = arith.constant 80 : index
    %594 = memref.load %arg1[%c80] : memref<90xf32, #tpu.memory_space<smem>>
    %595 = vector.broadcast %594 : f32 to vector<2x16x16xf32>
    %596 = arith.mulf %595, %344 : vector<2x16x16xf32>
    %597 = arith.addf %593, %596 : vector<2x16x16xf32>
    %c81 = arith.constant 81 : index
    %598 = memref.load %arg1[%c81] : memref<90xf32, #tpu.memory_space<smem>>
    %599 = vector.broadcast %598 : f32 to vector<2x16x16xf32>
    %600 = arith.mulf %599, %535 : vector<2x16x16xf32>
    %601 = arith.addf %597, %600 : vector<2x16x16xf32>
    %c82 = arith.constant 82 : index
    %602 = memref.load %arg1[%c82] : memref<90xf32, #tpu.memory_space<smem>>
    %603 = vector.broadcast %602 : f32 to vector<2x16x16xf32>
    %604 = arith.mulf %603, %1 : vector<2x16x16xf32>
    %605 = arith.addf %601, %604 : vector<2x16x16xf32>
    %c83 = arith.constant 83 : index
    %606 = memref.load %arg1[%c83] : memref<90xf32, #tpu.memory_space<smem>>
    %607 = vector.broadcast %606 : f32 to vector<2x16x16xf32>
    %608 = arith.mulf %607, %3 : vector<2x16x16xf32>
    %609 = arith.addf %605, %608 : vector<2x16x16xf32>
    %610 = vector.shape_cast %609 : vector<2x16x16xf32> to vector<1x2x16x16xf32>
    %cst_55 = arith.constant dense<0.000000e+00> : vector<1xf32>
    %611 = vector.multi_reduction <add>, %610, %cst_55 [1, 2, 3] : vector<1x2x16x16xf32> to vector<1xf32>
    %612 = vector.shape_cast %611 : vector<1xf32> to vector<1x1x1x1xf32>
    %613 = vector.extract %612[0, 0, 0, 0] : f32 from vector<1x1x1x1xf32>
    %614 = arith.mulf %609, %609 : vector<2x16x16xf32>
    %615 = vector.shape_cast %614 : vector<2x16x16xf32> to vector<1x2x16x16xf32>
    %cst_56 = arith.constant dense<0.000000e+00> : vector<1xf32>
    %616 = vector.multi_reduction <add>, %615, %cst_56 [1, 2, 3] : vector<1x2x16x16xf32> to vector<1xf32>
    %617 = vector.shape_cast %616 : vector<1xf32> to vector<1x1x1x1xf32>
    %618 = vector.extract %617[0, 0, 0, 0] : f32 from vector<1x1x1x1xf32>
    %cst_57 = arith.constant 0.001953125 : f32
    %619 = arith.mulf %613, %cst_57 : f32
    %cst_58 = arith.constant 0.001953125 : f32
    %620 = arith.mulf %618, %cst_58 : f32
    %621 = arith.mulf %619, %619 : f32
    %622 = arith.subf %620, %621 : f32
    %cst_59 = arith.constant 0.000000e+00 : f32
    %623 = arith.maximumf %622, %cst_59 : f32
    %c5_60 = arith.constant 5 : index
    %624 = memref.load %arg2[%c5_60] : memref<7xf32, #tpu.memory_space<smem>>
    %cst_61 = arith.constant 9.99999974E-6 : f32
    %625 = arith.addf %623, %cst_61 : f32
    %626 = math.rsqrt %625 : f32
    %627 = arith.mulf %624, %626 : f32
    %c5_62 = arith.constant 5 : index
    %628 = memref.load %arg3[%c5_62] : memref<7xf32, #tpu.memory_space<smem>>
    %629 = arith.mulf %619, %627 : f32
    %630 = arith.subf %628, %629 : f32
    %631 = vector.broadcast %627 : f32 to vector<2x16x16xf32>
    %632 = arith.mulf %609, %631 : vector<2x16x16xf32>
    %633 = vector.broadcast %630 : f32 to vector<2x16x16xf32>
    %634 = arith.addf %632, %633 : vector<2x16x16xf32>
    %c0_63 = arith.constant 0 : index
    %c1_64 = arith.constant 1 : index
    %c0_65 = arith.constant 0 : index
    %c0_66 = arith.constant 0 : index
    %635 = vector.load %arg4[%c0_63, %c1_64, %c0_65, %c0_66] : memref<2x3x16x16xf32, #tpu.memory_space<vmem>>, vector<2x1x16x16xf32>
    %636 = vector.shape_cast %635 : vector<2x1x16x16xf32> to vector<2x16x16xf32>
    %637 = vector.shape_cast %634 : vector<2x16x16xf32> to vector<2x1x16x16xf32>
    tpu.vector_store %arg4[%c0_63, %c1_64, %c0_65, %c0_66], %637 {strides = array<i32>} : memref<2x3x16x16xf32, #tpu.memory_space<vmem>>, vector<2x1x16x16xf32>,
    %c84 = arith.constant 84 : index
    %638 = memref.load %arg1[%c84] : memref<90xf32, #tpu.memory_space<smem>>
    %639 = vector.broadcast %638 : f32 to vector<2x16x16xf32>
    %640 = arith.mulf %639, %131 : vector<2x16x16xf32>
    %c85 = arith.constant 85 : index
    %641 = memref.load %arg1[%c85] : memref<90xf32, #tpu.memory_space<smem>>
    %642 = vector.broadcast %641 : f32 to vector<2x16x16xf32>
    %643 = arith.mulf %642, %208 : vector<2x16x16xf32>
    %644 = arith.addf %640, %643 : vector<2x16x16xf32>
    %c86 = arith.constant 86 : index
    %645 = memref.load %arg1[%c86] : memref<90xf32, #tpu.memory_space<smem>>
    %646 = vector.broadcast %645 : f32 to vector<2x16x16xf32>
    %647 = arith.mulf %646, %344 : vector<2x16x16xf32>
    %648 = arith.addf %644, %647 : vector<2x16x16xf32>
    %c87 = arith.constant 87 : index
    %649 = memref.load %arg1[%c87] : memref<90xf32, #tpu.memory_space<smem>>
    %650 = vector.broadcast %649 : f32 to vector<2x16x16xf32>
    %651 = arith.mulf %650, %535 : vector<2x16x16xf32>
    %652 = arith.addf %648, %651 : vector<2x16x16xf32>
    %c88 = arith.constant 88 : index
    %653 = memref.load %arg1[%c88] : memref<90xf32, #tpu.memory_space<smem>>
    %654 = vector.broadcast %653 : f32 to vector<2x16x16xf32>
    %655 = arith.mulf %654, %1 : vector<2x16x16xf32>
    %656 = arith.addf %652, %655 : vector<2x16x16xf32>
    %c89 = arith.constant 89 : index
    %657 = memref.load %arg1[%c89] : memref<90xf32, #tpu.memory_space<smem>>
    %658 = vector.broadcast %657 : f32 to vector<2x16x16xf32>
    %659 = arith.mulf %658, %3 : vector<2x16x16xf32>
    %660 = arith.addf %656, %659 : vector<2x16x16xf32>
    %661 = vector.shape_cast %660 : vector<2x16x16xf32> to vector<1x2x16x16xf32>
    %cst_67 = arith.constant dense<0.000000e+00> : vector<1xf32>
    %662 = vector.multi_reduction <add>, %661, %cst_67 [1, 2, 3] : vector<1x2x16x16xf32> to vector<1xf32>
    %663 = vector.shape_cast %662 : vector<1xf32> to vector<1x1x1x1xf32>
    %664 = vector.extract %663[0, 0, 0, 0] : f32 from vector<1x1x1x1xf32>
    %665 = arith.mulf %660, %660 : vector<2x16x16xf32>
    %666 = vector.shape_cast %665 : vector<2x16x16xf32> to vector<1x2x16x16xf32>
    %cst_68 = arith.constant dense<0.000000e+00> : vector<1xf32>
    %667 = vector.multi_reduction <add>, %666, %cst_68 [1, 2, 3] : vector<1x2x16x16xf32> to vector<1xf32>
    %668 = vector.shape_cast %667 : vector<1xf32> to vector<1x1x1x1xf32>
    %669 = vector.extract %668[0, 0, 0, 0] : f32 from vector<1x1x1x1xf32>
    %cst_69 = arith.constant 0.001953125 : f32
    %670 = arith.mulf %664, %cst_69 : f32
    %cst_70 = arith.constant 0.001953125 : f32
    %671 = arith.mulf %669, %cst_70 : f32
    %672 = arith.mulf %670, %670 : f32
    %673 = arith.subf %671, %672 : f32
    %cst_71 = arith.constant 0.000000e+00 : f32
    %674 = arith.maximumf %673, %cst_71 : f32
    %c6_72 = arith.constant 6 : index
    %675 = memref.load %arg2[%c6_72] : memref<7xf32, #tpu.memory_space<smem>>
    %cst_73 = arith.constant 9.99999974E-6 : f32
    %676 = arith.addf %674, %cst_73 : f32
    %677 = math.rsqrt %676 : f32
    %678 = arith.mulf %675, %677 : f32
    %c6_74 = arith.constant 6 : index
    %679 = memref.load %arg3[%c6_74] : memref<7xf32, #tpu.memory_space<smem>>
    %680 = arith.mulf %670, %678 : f32
    %681 = arith.subf %679, %680 : f32
    %682 = vector.broadcast %678 : f32 to vector<2x16x16xf32>
    %683 = arith.mulf %660, %682 : vector<2x16x16xf32>
    %684 = vector.broadcast %681 : f32 to vector<2x16x16xf32>
    %685 = arith.addf %683, %684 : vector<2x16x16xf32>
    %c0_75 = arith.constant 0 : index
    %c2_76 = arith.constant 2 : index
    %c0_77 = arith.constant 0 : index
    %c0_78 = arith.constant 0 : index
    %686 = vector.load %arg4[%c0_75, %c2_76, %c0_77, %c0_78] : memref<2x3x16x16xf32, #tpu.memory_space<vmem>>, vector<2x1x16x16xf32>
    %687 = vector.shape_cast %686 : vector<2x1x16x16xf32> to vector<2x16x16xf32>
    %688 = vector.shape_cast %685 : vector<2x16x16xf32> to vector<2x1x16x16xf32>
    tpu.vector_store %arg4[%c0_75, %c2_76, %c0_77, %c0_78], %688 {strides = array<i32>} : memref<2x3x16x16xf32, #tpu.memory_space<vmem>>, vector<2x1x16x16xf32>,
    return
  }
}

</mosaic_0001>

<llo_original>
// kernel: msdnet_forward_fused.1
$region0: #{msdnet_forward_fused.1}
  #allocation0 [shape = 'u32[]', space=smem, size = 0x4, offset = 0x4, fixed_abs, tag = 'smem constant byte address 0x4 - core index']
  #allocation1 [shape = 'u32[144,128]{1,0:T(1,128)}', space=vmem, size = 0x12000, scoped, tag = 'internal scratch']
  %s0 = inlined_call_operand.hbm [shape: f32[2,2,16,16], index: 0, kind: input, shape index: {}]
  %s1 = inlined_call_operand.vmem [shape: f32[90], index: 1, kind: input, shape index: {}]
  %s2 = inlined_call_operand.vmem [shape: f32[7], index: 2, kind: input, shape index: {}]
  %s3 = inlined_call_operand.vmem [shape: f32[7], index: 3, kind: input, shape index: {}]
  %s4 = inlined_call_operand.hbm [shape: f32[2,3,16,16], index: 4, kind: output, shape index: {}]
  %s5 = sld [smem:[#allocation0]]
  $region42: #{msdnet_forward_fused.1} parent=0
    _
  %s7 = ssub.s32 1, %s5
  %s8 = scalar_select 0, %s7, %s5
  $region1: #{msdnet_forward_fused.1} parent=0
    #allocation2 [shape = 'u8[32768]{0}', space=vmem, size = 0x8000, scoped, tag = 'input window, operand 0, single buffered']
    #allocation3 [shape = 's32[1]{0}', space=sflag, size = 0x4, scoped, tag = 'scoped memory for msdnet_forward_fused.1']
    #allocation4 [shape = 's32[1]{0}', space=sflag, size = 0x4, scoped, tag = 'scoped memory for msdnet_forward_fused.1']
    #allocation5 [shape = 's32[1]{0}', space=sflag, size = 0x4, scoped, tag = 'scoped memory for msdnet_forward_fused.1']
    #allocation6 [shape = 'u8[512]{0}', space=smem, size = 0x200, scoped, tag = 'input window, operand 1, single buffered']
    #allocation7 [shape = 'u8[512]{0}', space=smem, size = 0x200, scoped, tag = 'input window, operand 2, single buffered']
    #allocation8 [shape = 's32[1]{0}', space=sflag, size = 0x4, scoped, tag = 'scoped memory for msdnet_forward_fused.1']
    #allocation9 [shape = 'u8[512]{0}', space=smem, size = 0x200, scoped, tag = 'input window, operand 3, single buffered']
    #allocation10 [shape = 'u8[49152]{0}', space=vmem, size = 0xc000, scoped, tag = 'output window, operand 0, single buffered']
    %9 = vsyncpa [#allocation3], 0
    %10 = vsyncpa [#allocation5], 0
    %11 = vsyncpa [#allocation8], 0
    %12 = vsyncpa [#allocation4], 0
    // Predicated region
    $region2: #{msdnet_forward_fused.1} parent=1 // pred_check
      _
    $region3: #{msdnet_forward_fused.1} parent=1 // pred_check_branch
      %14 = sbr.rel (0) target = $region5
    $region4: #{msdnet_forward_fused.1} parent=1 // pred_region
      %s16 = ssub.s32 1024, 1024
      %17 = vsyncadd [#allocation3], %s16
      %s18 = sshll.u32 [#allocation2], 4
      %s19 = int_to_ptr.vmem [resolvable:$true] %s18
      %24 = dma.hbm_to_vmem [thread:$0]  %s0, 1024, %s19, [#allocation3], 128, 128, 8
    $region5: #{msdnet_forward_fused.1} parent=1 // pred_fallthru
      _
    // Predicated region
    $region6: #{msdnet_forward_fused.1} parent=1 // pred_check
      _
    $region7: #{msdnet_forward_fused.1} parent=1 // pred_check_branch
      %26 = sbr.rel (0) target = $region9
    $region8: #{msdnet_forward_fused.1} parent=1 // pred_region
      %s28 = ssub.s32 16, 16
      %29 = vsyncadd [#allocation5], %s28
      %s31 = sshll.u32 %s1, 4
      %s32 = int_to_ptr.vmem [resolvable:$true] %s31
      %34 = dma.vmem_to_smem %s32, 16, [#allocation6], [#allocation5]
    $region9: #{msdnet_forward_fused.1} parent=1 // pred_fallthru
      _
    // Predicated region
    $region10: #{msdnet_forward_fused.1} parent=1 // pred_check
      _
    $region11: #{msdnet_forward_fused.1} parent=1 // pred_check_branch
      %36 = sbr.rel (0) target = $region13
    $region12: #{msdnet_forward_fused.1} parent=1 // pred_region
      %s38 = ssub.s32 16, 16
      %39 = vsyncadd [#allocation8], %s38
      %s41 = sshll.u32 %s2, 4
      %s42 = int_to_ptr.vmem [resolvable:$true] %s41
      %44 = dma.vmem_to_smem %s42, 16, [#allocation7], [#allocation8]
    $region13: #{msdnet_forward_fused.1} parent=1 // pred_fallthru
      _
    // Predicated region
    $region14: #{msdnet_forward_fused.1} parent=1 // pred_check
      _
    $region15: #{msdnet_forward_fused.1} parent=1 // pred_check_branch
      %46 = sbr.rel (0) target = $region17
    $region16: #{msdnet_forward_fused.1} parent=1 // pred_region
      %s48 = ssub.s32 16, 16
      %49 = vsyncadd [#allocation8], %s48
      %s51 = sshll.u32 %s3, 4
      %s52 = int_to_ptr.vmem [resolvable:$true] %s51
      %54 = dma.vmem_to_smem %s52, 16, [#allocation9], [#allocation8]
    $region17: #{msdnet_forward_fused.1} parent=1 // pred_fallthru
      _
    // Predicated region
    $region18: #{msdnet_forward_fused.1} parent=1 // pred_check
      _
    $region19: #{msdnet_forward_fused.1} parent=1 // pred_check_branch
      %56 = sbr.rel (0) target = $region21
    $region20: #{msdnet_forward_fused.1} parent=1 // pred_region
      %57 = dma.done [#allocation3], 1024
    $region21: #{msdnet_forward_fused.1} parent=1 // pred_fallthru
      _
    // Predicated region
    $region22: #{msdnet_forward_fused.1} parent=1 // pred_check
      _
    $region23: #{msdnet_forward_fused.1} parent=1 // pred_check_branch
      %59 = sbr.rel (0) target = $region25
    $region24: #{msdnet_forward_fused.1} parent=1 // pred_region
      %60 = dma.done [#allocation5], 16
    $region25: #{msdnet_forward_fused.1} parent=1 // pred_fallthru
      _
    // Predicated region
    $region26: #{msdnet_forward_fused.1} parent=1 // pred_check
      _
    $region27: #{msdnet_forward_fused.1} parent=1 // pred_check_branch
      %62 = sbr.rel (0) target = $region29
    $region28: #{msdnet_forward_fused.1} parent=1 // pred_region
      %63 = dma.done [#allocation8], 16
    $region29: #{msdnet_forward_fused.1} parent=1 // pred_fallthru
      _
    // Predicated region
    $region30: #{msdnet_forward_fused.1} parent=1 // pred_check
      _
    $region31: #{msdnet_forward_fused.1} parent=1 // pred_check_branch
      %65 = sbr.rel (0) target = $region33
    $region32: #{msdnet_forward_fused.1} parent=1 // pred_region
      %66 = dma.done [#allocation8], 16
    $region33: #{msdnet_forward_fused.1} parent=1 // pred_fallthru
      _
    %67 = sfence
    %v68 = vld [vmem:[#allocation2] sm:$0xff]
    %v69 = vld [vmem:[#allocation2 + $0x8] sm:$0xff]
    %v70 = vld [vmem:[#allocation2 + $0x20] sm:$0xff]
    %v71 = vld [vmem:[#allocation2 + $0x28] sm:$0xff]
    %s72 = scalar_lea.vmem [#allocation2], 16
    %v73 = vld [vmem:[%s72] sm:$0xff]
    %v74 = vld [vmem:[%s72 + $0x8] sm:$0xff]
    %v75 = vld [vmem:[%s72 + $0x20] sm:$0xff]
    %v76 = vld [vmem:[%s72 + $0x28] sm:$0xff]
    %v79 = vrot.slane %v69, 7
    %v80 = vrot.slane %v71, 7
    %vm85 = vcmask 1040384
    %v86 = vrot.slane %v68, 7
    %v87 = vsel %vm85, %v86, %v79
    %v88 = vrot.slane %v70, 7
    %v89 = vsel %vm85, %v88, %v80
    %v94 = vsel %vm85, %v79, %v86
    %v95 = vsel %vm85, %v80, %v88
    %98 = vrot.lane.b32.xlu0 %v94, 1
    %v99 = vpop.permute.xlu0 %98
    %100 = vrot.lane.b32.xlu0 %v87, 1
    %v101 = vpop.permute.xlu0 %100
    %102 = vrot.lane.b32.xlu0 %v95, 1
    %v103 = vpop.permute.xlu0 %102
    %104 = vrot.lane.b32.xlu0 %v89, 1
    %v105 = vpop.permute.xlu0 %104
    %110 = vrot.lane.b32.xlu0 %v94, 2
    %v111 = vpop.permute.xlu0 %110
    %112 = vrot.lane.b32.xlu0 %v87, 2
    %v113 = vpop.permute.xlu0 %112
    %114 = vrot.lane.b32.xlu0 %v95, 2
    %v115 = vpop.permute.xlu0 %114
    %116 = vrot.lane.b32.xlu0 %v89, 2
    %v117 = vpop.permute.xlu0 %116
    %vm122 = vcmask 7168
    %v123 = vsel %vm122, %v94, %v99
    %v124 = vsel %vm122, %v87, %v101
    %v125 = vsel %vm122, %v95, %v103
    %v126 = vsel %vm122, %v89, %v105
    %vm127 = vcmask 138240
    %v128 = vsel %vm127, %v123, %v111
    %v129 = vsel %vm127, %v124, %v113
    %v130 = vsel %vm127, %v125, %v115
    %v131 = vsel %vm127, %v126, %v117
    %v134 = vrot.slane %v74, 7
    %v135 = vrot.slane %v76, 7
    %v140 = vrot.slane %v73, 7
    %v141 = vsel %vm85, %v140, %v134
    %v142 = vrot.slane %v75, 7
    %v143 = vsel %vm85, %v142, %v135
    %v148 = vsel %vm85, %v134, %v140
    %v149 = vsel %vm85, %v135, %v142
    %152 = vrot.lane.b32.xlu0 %v148, 1
    %v153 = vpop.permute.xlu0 %152
    %154 = vrot.lane.b32.xlu0 %v141, 1
    %v155 = vpop.permute.xlu0 %154
    %156 = vrot.lane.b32.xlu0 %v149, 1
    %v157 = vpop.permute.xlu0 %156
    %158 = vrot.lane.b32.xlu0 %v143, 1
    %v159 = vpop.permute.xlu0 %158
    %164 = vrot.lane.b32.xlu0 %v148, 2
    %v165 = vpop.permute.xlu0 %164
    %166 = vrot.lane.b32.xlu0 %v141, 2
    %v167 = vpop.permute.xlu0 %166
    %168 = vrot.lane.b32.xlu0 %v149, 2
    %v169 = vpop.permute.xlu0 %168
    %170 = vrot.lane.b32.xlu0 %v143, 2
    %v171 = vpop.permute.xlu0 %170
    %v176 = vsel %vm122, %v148, %v153
    %v177 = vsel %vm122, %v141, %v155
    %v178 = vsel %vm122, %v149, %v157
    %v179 = vsel %vm122, %v143, %v159
    %v180 = vsel %vm127, %v176, %v165
    %v181 = vsel %vm127, %v177, %v167
    %v182 = vsel %vm127, %v178, %v169
    %v183 = vsel %vm127, %v179, %v171
    %s184 = sld [smem:[#allocation6]]
    %v185 = vstv %s184
    %v186 = vmul.f32 %v185, %v128
    %v187 = vmul.f32 %v185, %v129
    %v188 = vmul.f32 %v185, %v130
    %v189 = vmul.f32 %v185, %v131
    %s190 = sld [smem:[#allocation6 + $0x1]]
    %v191 = vstv %s190
    %v192 = vmul.f32 %v191, %v128
    %v193 = vmul.f32 %v191, %v129
    %v194 = vmul.f32 %v191, %v130
    %v195 = vmul.f32 %v191, %v131
    %200 = vrot.lane.b32.xlu0 %v192, 127
    %v201 = vpop.permute.xlu0 %200
    %202 = vrot.lane.b32.xlu0 %v193, 127
    %v203 = vpop.permute.xlu0 %202
    %204 = vrot.lane.b32.xlu0 %v194, 127
    %v205 = vpop.permute.xlu0 %204
    %206 = vrot.lane.b32.xlu0 %v195, 127
    %v207 = vpop.permute.xlu0 %206
    %v212 = vadd.f32 %v186, %v201
    %v213 = vadd.f32 %v187, %v203
    %v214 = vadd.f32 %v188, %v205
    %v215 = vadd.f32 %v189, %v207
    %s216 = sld [smem:[#allocation6 + $0x2]]
    %v217 = vstv %s216
    %v218 = vmul.f32 %v217, %v128
    %v219 = vmul.f32 %v217, %v129
    %v220 = vmul.f32 %v217, %v130
    %v221 = vmul.f32 %v217, %v131
    %226 = vrot.lane.b32.xlu0 %v218, 126
    %v227 = vpop.permute.xlu0 %226
    %228 = vrot.lane.b32.xlu0 %v219, 126
    %v229 = vpop.permute.xlu0 %228
    %230 = vrot.lane.b32.xlu0 %v220, 126
    %v231 = vpop.permute.xlu0 %230
    %232 = vrot.lane.b32.xlu0 %v221, 126
    %v233 = vpop.permute.xlu0 %232
    %v238 = vadd.f32 %v212, %v227
    %v239 = vadd.f32 %v213, %v229
    %v240 = vadd.f32 %v214, %v231
    %v241 = vadd.f32 %v215, %v233
    %s242 = sld [smem:[#allocation6 + $0x3]]
    %v243 = vstv %s242
    %v244 = vmul.f32 %v243, %v128
    %v245 = vmul.f32 %v243, %v129
    %v246 = vmul.f32 %v243, %v130
    %v247 = vmul.f32 %v243, %v131
    %vm252 = vcmask 1046528
    %v253 = vrot.slane %v244, 1
    %v254 = vrot.slane %v245, 1
    %v255 = vsel %vm252, %v253, %v254
    %v256 = vsel %vm252, %v254, %v253
    %v257 = vrot.slane %v246, 1
    %v258 = vrot.slane %v247, 1
    %v259 = vsel %vm252, %v257, %v258
    %v260 = vsel %vm252, %v258, %v257
    %v265 = vadd.f32 %v238, %v255
    %v266 = vadd.f32 %v239, %v256
    %v267 = vadd.f32 %v240, %v259
    %v268 = vadd.f32 %v241, %v260
    %s269 = sld [smem:[#allocation6 + $0x4]]
    %v270 = vstv %s269
    %v271 = vmul.f32 %v270, %v128
    %v272 = vmul.f32 %v270, %v129
    %v273 = vmul.f32 %v270, %v130
    %v274 = vmul.f32 %v270, %v131
    %v279 = vrot.slane %v271, 1
    %v280 = vrot.slane %v272, 1
    %v281 = vsel %vm252, %v279, %v280
    %v282 = vsel %vm252, %v280, %v279
    %v283 = vrot.slane %v273, 1
    %v284 = vrot.slane %v274, 1
    %v285 = vsel %vm252, %v283, %v284
    %v286 = vsel %vm252, %v284, %v283
    %287 = vrot.lane.b32.xlu0 %v281, 127
    %v288 = vpop.permute.xlu0 %287
    %289 = vrot.lane.b32.xlu0 %v282, 127
    %v290 = vpop.permute.xlu0 %289
    %291 = vrot.lane.b32.xlu0 %v285, 127
    %v292 = vpop.permute.xlu0 %291
    %293 = vrot.lane.b32.xlu0 %v286, 127
    %v294 = vpop.permute.xlu0 %293
    %v299 = vadd.f32 %v265, %v288
    %v300 = vadd.f32 %v266, %v290
    %v301 = vadd.f32 %v267, %v292
    %v302 = vadd.f32 %v268, %v294
    %s303 = sld [smem:[#allocation6 + $0x5]]
    %v304 = vstv %s303
    %v305 = vmul.f32 %v304, %v128
    %v306 = vmul.f32 %v304, %v129
    %v307 = vmul.f32 %v304, %v130
    %v308 = vmul.f32 %v304, %v131
    %v313 = vrot.slane %v305, 1
    %v314 = vrot.slane %v306, 1
    %v315 = vsel %vm252, %v313, %v314
    %v316 = vsel %vm252, %v314, %v313
    %v317 = vrot.slane %v307, 1
    %v318 = vrot.slane %v308, 1
    %v319 = vsel %vm252, %v317, %v318
    %v320 = vsel %vm252, %v318, %v317
    %321 = vrot.lane.b32.xlu0 %v315, 126
    %v322 = vpop.permute.xlu0 %321
    %323 = vrot.lane.b32.xlu0 %v316, 126
    %v324 = vpop.permute.xlu0 %323
    %325 = vrot.lane.b32.xlu0 %v319, 126
    %v326 = vpop.permute.xlu0 %325
    %327 = vrot.lane.b32.xlu0 %v320, 126
    %v328 = vpop.permute.xlu0 %327
    %v333 = vadd.f32 %v299, %v322
    %v334 = vadd.f32 %v300, %v324
    %v335 = vadd.f32 %v301, %v326
    %v336 = vadd.f32 %v302, %v328
    %s337 = sld [smem:[#allocation6 + $0x6]]
    %v338 = vstv %s337
    %v339 = vmul.f32 %v338, %v128
    %v340 = vmul.f32 %v338, %v129
    %v341 = vmul.f32 %v338, %v130
    %v342 = vmul.f32 %v338, %v131
    %vm347 = vcmask 1045504
    %v348 = vrot.slane %v339, 2
    %v349 = vrot.slane %v340, 2
    %v350 = vsel %vm347, %v348, %v349
    %v351 = vsel %vm347, %v349, %v348
    %v352 = vrot.slane %v341, 2
    %v353 = vrot.slane %v342, 2
    %v354 = vsel %vm347, %v352, %v353
    %v355 = vsel %vm347, %v353, %v352
    %v360 = vadd.f32 %v333, %v350
    %v361 = vadd.f32 %v334, %v351
    %v362 = vadd.f32 %v335, %v354
    %v363 = vadd.f32 %v336, %v355
    %s364 = sld [smem:[#allocation6 + $0x7]]
    %v365 = vstv %s364
    %v366 = vmul.f32 %v365, %v128
    %v367 = vmul.f32 %v365, %v129
    %v368 = vmul.f32 %v365, %v130
    %v369 = vmul.f32 %v365, %v131
    %v374 = vrot.slane %v366, 2
    %v375 = vrot.slane %v367, 2
    %v376 = vsel %vm347, %v374, %v375
    %v377 = vsel %vm347, %v375, %v374
    %v378 = vrot.slane %v368, 2
    %v379 = vrot.slane %v369, 2
    %v380 = vsel %vm347, %v378, %v379
    %v381 = vsel %vm347, %v379, %v378
    %382 = vrot.lane.b32.xlu0 %v376, 127
    %v383 = vpop.permute.xlu0 %382
    %384 = vrot.lane.b32.xlu0 %v377, 127
    %v385 = vpop.permute.xlu0 %384
    %386 = vrot.lane.b32.xlu0 %v380, 127
    %v387 = vpop.permute.xlu0 %386
    %388 = vrot.lane.b32.xlu0 %v381, 127
    %v389 = vpop.permute.xlu0 %388
    %v394 = vadd.f32 %v360, %v383
    %v395 = vadd.f32 %v361, %v385
    %v396 = vadd.f32 %v362, %v387
    %v397 = vadd.f32 %v363, %v389
    %s398 = sld [smem:[#allocation6 + $0x8]]
    %v399 = vstv %s398
    %v400 = vmul.f32 %v399, %v128
    %v401 = vmul.f32 %v399, %v129
    %v402 = vmul.f32 %v399, %v130
    %v403 = vmul.f32 %v399, %v131
    %v408 = vrot.slane %v400, 2
    %v409 = vrot.slane %v401, 2
    %v410 = vsel %vm347, %v408, %v409
    %v411 = vsel %vm347, %v409, %v408
    %v412 = vrot.slane %v402, 2
    %v413 = vrot.slane %v403, 2
    %v414 = vsel %vm347, %v412, %v413
    %v415 = vsel %vm347, %v413, %v412
    %416 = vrot.lane.b32.xlu0 %v410, 126
    %v417 = vpop.permute.xlu0 %416
    %418 = vrot.lane.b32.xlu0 %v411, 126
    %v419 = vpop.permute.xlu0 %418
    %420 = vrot.lane.b32.xlu0 %v414, 126
    %v421 = vpop.permute.xlu0 %420
    %422 = vrot.lane.b32.xlu0 %v415, 126
    %v423 = vpop.permute.xlu0 %422
    %v428 = vadd.f32 %v394, %v417
    %v429 = vadd.f32 %v395, %v419
    %v430 = vadd.f32 %v396, %v421
    %v431 = vadd.f32 %v397, %v423
    %s432 = sld [smem:[#allocation6 + $0x9]]
    %v433 = vstv %s432
    %v434 = vmul.f32 %v433, %v180
    %v435 = vmul.f32 %v433, %v181
    %v436 = vmul.f32 %v433, %v182
    %v437 = vmul.f32 %v433, %v183
    %v438 = vadd.f32 %v428, %v434
    %v439 = vadd.f32 %v429, %v435
    %v440 = vadd.f32 %v430, %v436
    %v441 = vadd.f32 %v431, %v437
    %s442 = sld [smem:[#allocation6 + $0xa]]
    %v443 = vstv %s442
    %v444 = vmul.f32 %v443, %v180
    %v445 = vmul.f32 %v443, %v181
    %v446 = vmul.f32 %v443, %v182
    %v447 = vmul.f32 %v443, %v183
    %452 = vrot.lane.b32.xlu0 %v444, 127
    %v453 = vpop.permute.xlu0 %452
    %454 = vrot.lane.b32.xlu0 %v445, 127
    %v455 = vpop.permute.xlu0 %454
    %456 = vrot.lane.b32.xlu0 %v446, 127
    %v457 = vpop.permute.xlu0 %456
    %458 = vrot.lane.b32.xlu0 %v447, 127
    %v459 = vpop.permute.xlu0 %458
    %v464 = vadd.f32 %v438, %v453
    %v465 = vadd.f32 %v439, %v455
    %v466 = vadd.f32 %v440, %v457
    %v467 = vadd.f32 %v441, %v459
    %s468 = sld [smem:[#allocation6 + $0xb]]
    %v469 = vstv %s468
    %v470 = vmul.f32 %v469, %v180
    %v471 = vmul.f32 %v469, %v181
    %v472 = vmul.f32 %v469, %v182
    %v473 = vmul.f32 %v469, %v183
    %478 = vrot.lane.b32.xlu0 %v470, 126
    %v479 = vpop.permute.xlu0 %478
    %480 = vrot.lane.b32.xlu0 %v471, 126
    %v481 = vpop.permute.xlu0 %480
    %482 = vrot.lane.b32.xlu0 %v472, 126
    %v483 = vpop.permute.xlu0 %482
    %484 = vrot.lane.b32.xlu0 %v473, 126
    %v485 = vpop.permute.xlu0 %484
    %v490 = vadd.f32 %v464, %v479
    %v491 = vadd.f32 %v465, %v481
    %v492 = vadd.f32 %v466, %v483
    %v493 = vadd.f32 %v467, %v485
    %s494 = sld [smem:[#allocation6 + $0xc]]
    %v495 = vstv %s494
    %v496 = vmul.f32 %v495, %v180
    %v497 = vmul.f32 %v495, %v181
    %v498 = vmul.f32 %v495, %v182
    %v499 = vmul.f32 %v495, %v183
    %v504 = vrot.slane %v496, 1
    %v505 = vrot.slane %v497, 1
    %v506 = vsel %vm252, %v504, %v505
    %v507 = vsel %vm252, %v505, %v504
    %v508 = vrot.slane %v498, 1
    %v509 = vrot.slane %v499, 1
    %v510 = vsel %vm252, %v508, %v509
    %v511 = vsel %vm252, %v509, %v508
    %v516 = vadd.f32 %v490, %v506
    %v517 = vadd.f32 %v491, %v507
    %v518 = vadd.f32 %v492, %v510
    %v519 = vadd.f32 %v493, %v511
    %s520 = sld [smem:[#allocation6 + $0xd]]
    %v521 = vstv %s520
    %v522 = vmul.f32 %v521, %v180
    %v523 = vmul.f32 %v521, %v181
    %v524 = vmul.f32 %v521, %v182
    %v525 = vmul.f32 %v521, %v183
    %v530 = vrot.slane %v522, 1
    %v531 = vrot.slane %v523, 1
    %v532 = vsel %vm252, %v530, %v531
    %v533 = vsel %vm252, %v531, %v530
    %v534 = vrot.slane %v524, 1
    %v535 = vrot.slane %v525, 1
    %v536 = vsel %vm252, %v534, %v535
    %v537 = vsel %vm252, %v535, %v534
    %538 = vrot.lane.b32.xlu0 %v532, 127
    %v539 = vpop.permute.xlu0 %538
    %540 = vrot.lane.b32.xlu0 %v533, 127
    %v541 = vpop.permute.xlu0 %540
    %542 = vrot.lane.b32.xlu0 %v536, 127
    %v543 = vpop.permute.xlu0 %542
    %544 = vrot.lane.b32.xlu0 %v537, 127
    %v545 = vpop.permute.xlu0 %544
    %v550 = vadd.f32 %v516, %v539
    %v551 = vadd.f32 %v517, %v541
    %v552 = vadd.f32 %v518, %v543
    %v553 = vadd.f32 %v519, %v545
    %s554 = sld [smem:[#allocation6 + $0xe]]
    %v555 = vstv %s554
    %v556 = vmul.f32 %v555, %v180
    %v557 = vmul.f32 %v555, %v181
    %v558 = vmul.f32 %v555, %v182
    %v559 = vmul.f32 %v555, %v183
    %v564 = vrot.slane %v556, 1
    %v565 = vrot.slane %v557, 1
    %v566 = vsel %vm252, %v564, %v565
    %v567 = vsel %vm252, %v565, %v564
    %v568 = vrot.slane %v558, 1
    %v569 = vrot.slane %v559, 1
    %v570 = vsel %vm252, %v568, %v569
    %v571 = vsel %vm252, %v569, %v568
    %572 = vrot.lane.b32.xlu0 %v566, 126
    %v573 = vpop.permute.xlu0 %572
    %574 = vrot.lane.b32.xlu0 %v567, 126
    %v575 = vpop.permute.xlu0 %574
    %576 = vrot.lane.b32.xlu0 %v570, 126
    %v577 = vpop.permute.xlu0 %576
    %578 = vrot.lane.b32.xlu0 %v571, 126
    %v579 = vpop.permute.xlu0 %578
    %v584 = vadd.f32 %v550, %v573
    %v585 = vadd.f32 %v551, %v575
    %v586 = vadd.f32 %v552, %v577
    %v587 = vadd.f32 %v553, %v579
    %s588 = sld [smem:[#allocation6 + $0xf]]
    %v589 = vstv %s588
    %v590 = vmul.f32 %v589, %v180
    %v591 = vmul.f32 %v589, %v181
    %v592 = vmul.f32 %v589, %v182
    %v593 = vmul.f32 %v589, %v183
    %v598 = vrot.slane %v590, 2
    %v599 = vrot.slane %v591, 2
    %v600 = vsel %vm347, %v598, %v599
    %v601 = vsel %vm347, %v599, %v598
    %v602 = vrot.slane %v592, 2
    %v603 = vrot.slane %v593, 2
    %v604 = vsel %vm347, %v602, %v603
    %v605 = vsel %vm347, %v603, %v602
    %v610 = vadd.f32 %v584, %v600
    %v611 = vadd.f32 %v585, %v601
    %v612 = vadd.f32 %v586, %v604
    %v613 = vadd.f32 %v587, %v605
    %s614 = sld [smem:[#allocation6 + $0x10]]
    %v615 = vstv %s614
    %v616 = vmul.f32 %v615, %v180
    %v617 = vmul.f32 %v615, %v181
    %v618 = vmul.f32 %v615, %v182
    %v619 = vmul.f32 %v615, %v183
    %v624 = vrot.slane %v616, 2
    %v625 = vrot.slane %v617, 2
    %v626 = vsel %vm347, %v624, %v625
    %v627 = vsel %vm347, %v625, %v624
    %v628 = vrot.slane %v618, 2
    %v629 = vrot.slane %v619, 2
    %v630 = vsel %vm347, %v628, %v629
    %v631 = vsel %vm347, %v629, %v628
    %632 = vrot.lane.b32.xlu0 %v626, 127
    %v633 = vpop.permute.xlu0 %632
    %634 = vrot.lane.b32.xlu0 %v627, 127
    %v635 = vpop.permute.xlu0 %634
    %636 = vrot.lane.b32.xlu0 %v630, 127
    %v637 = vpop.permute.xlu0 %636
    %638 = vrot.lane.b32.xlu0 %v631, 127
    %v639 = vpop.permute.xlu0 %638
    %v644 = vadd.f32 %v610, %v633
    %v645 = vadd.f32 %v611, %v635
    %v646 = vadd.f32 %v612, %v637
    %v647 = vadd.f32 %v613, %v639
    %s648 = sld [smem:[#allocation6 + $0x11]]
    %v649 = vstv %s648
    %v650 = vmul.f32 %v649, %v180
    %v651 = vmul.f32 %v649, %v181
    %v652 = vmul.f32 %v649, %v182
    %v653 = vmul.f32 %v649, %v183
    %v658 = vrot.slane %v650, 2
    %v659 = vrot.slane %v651, 2
    %v660 = vsel %vm347, %v658, %v659
    %v661 = vsel %vm347, %v659, %v658
    %v662 = vrot.slane %v652, 2
    %v663 = vrot.slane %v653, 2
    %v664 = vsel %vm347, %v662, %v663
    %v665 = vsel %vm347, %v663, %v662
    %666 = vrot.lane.b32.xlu0 %v660, 126
    %v667 = vpop.permute.xlu0 %666
    %668 = vrot.lane.b32.xlu0 %v661, 126
    %v669 = vpop.permute.xlu0 %668
    %670 = vrot.lane.b32.xlu0 %v664, 126
    %v671 = vpop.permute.xlu0 %670
    %672 = vrot.lane.b32.xlu0 %v665, 126
    %v673 = vpop.permute.xlu0 %672
    %v678 = vadd.f32 %v644, %v667
    %v679 = vadd.f32 %v645, %v669
    %v680 = vadd.f32 %v646, %v671
    %v681 = vadd.f32 %v647, %v673
    %vm682 = vcmask 130048
    %v683 = vsel %vm682, %v678, 0.0
    %v684 = vsel %vm682, %v679, 0.0
    %v685 = vadd.f32 %v683, %v684
    %v686 = vsel %vm682, %v680, 0.0
    %v687 = vadd.f32 %v685, %v686
    %v688 = vsel %vm682, %v681, 0.0
    %v689 = vadd.f32 %v687, %v688
    %690 = vadd.xlane.f32.xlu0 %v689
    %v691 = vpop.xlane.xlu0 %690
    %v692 = vrot.slane %v691, 4
    %v693 = vadd.f32 %v691, %v692
    %v694 = vrot.slane %v693, 2
    %v695 = vadd.f32 %v693, %v694
    %v696 = vrot.slane %v695, 1
    %v697 = vadd.f32 %v695, %v696
    %s698 = vtos %v697
    %v699 = vmul.f32 %v678, %v678
    %v700 = vmul.f32 %v679, %v679
    %v701 = vmul.f32 %v680, %v680
    %v702 = vmul.f32 %v681, %v681
    %v703 = vsel %vm682, %v699, 0.0
    %v704 = vsel %vm682, %v700, 0.0
    %v705 = vadd.f32 %v703, %v704
    %v706 = vsel %vm682, %v701, 0.0
    %v707 = vadd.f32 %v705, %v706
    %v708 = vsel %vm682, %v702, 0.0
    %v709 = vadd.f32 %v707, %v708
    %710 = vadd.xlane.f32.xlu0 %v709
    %v711 = vpop.xlane.xlu0 %710
    %v712 = vrot.slane %v711, 4
    %v713 = vadd.f32 %v711, %v712
    %v714 = vrot.slane %v713, 2
    %v715 = vadd.f32 %v713, %v714
    %v716 = vrot.slane %v715, 1
    %v717 = vadd.f32 %v715, %v716
    %s718 = vtos %v717
    %s719 = smul.f32 %s698, 0.001953125
    %s720 = smul.f32 %s718, 0.001953125
    %s721 = smul.f32 %s719, %s719
    %s722 = ssub.f32 %s720, %s721
    %s723 = smax.f32 %s722, 0.0
    %s724 = sld [smem:[#allocation7]]
    %s725 = sadd.f32 %s723, 1e-05
    %v726 = vstv %s725
    %v727 = vrsqrt.pop %v726
    %s728 = vtos %v727
    %s729 = smul.f32 %s724, %s728
    %s730 = sld [smem:[#allocation9]]
    %s731 = smul.f32 %s719, %s729
    %s732 = ssub.f32 %s730, %s731
    %v733 = vstv %s729
    %v734 = vmul.f32 %v678, %v733
    %v735 = vmul.f32 %v679, %v733
    %v736 = vmul.f32 %v680, %v733
    %v737 = vmul.f32 %v681, %v733
    %v738 = vstv %s732
    %v739 = vadd.f32 %v734, %v738
    %v740 = vadd.f32 %v735, %v738
    %v741 = vadd.f32 %v736, %v738
    %v742 = vadd.f32 %v737, %v738
    %v743 = vmax.f32 %v739, 0.0
    %v744 = vmax.f32 %v740, 0.0
    %v745 = vmax.f32 %v741, 0.0
    %v746 = vmax.f32 %v742, 0.0
    %v749 = vrot.slane %v744, 7
    %v750 = vrot.slane %v746, 7
    %v755 = vrot.slane %v743, 7
    %v756 = vsel %vm85, %v755, %v749
    %v757 = vrot.slane %v745, 7
    %v758 = vsel %vm85, %v757, %v750
    %v763 = vsel %vm85, %v749, %v755
    %v764 = vsel %vm85, %v750, %v757
    %767 = vrot.lane.b32.xlu0 %v763, 1
    %v768 = vpop.permute.xlu0 %767
    %769 = vrot.lane.b32.xlu0 %v756, 1
    %v770 = vpop.permute.xlu0 %769
    %771 = vrot.lane.b32.xlu0 %v764, 1
    %v772 = vpop.permute.xlu0 %771
    %773 = vrot.lane.b32.xlu0 %v758, 1
    %v774 = vpop.permute.xlu0 %773
    %779 = vrot.lane.b32.xlu0 %v763, 2
    %v780 = vpop.permute.xlu0 %779
    %781 = vrot.lane.b32.xlu0 %v756, 2
    %v782 = vpop.permute.xlu0 %781
    %783 = vrot.lane.b32.xlu0 %v764, 2
    %v784 = vpop.permute.xlu0 %783
    %785 = vrot.lane.b32.xlu0 %v758, 2
    %v786 = vpop.permute.xlu0 %785
    %v791 = vsel %vm122, %v763, %v768
    %v792 = vsel %vm122, %v756, %v770
    %v793 = vsel %vm122, %v764, %v772
    %v794 = vsel %vm122, %v758, %v774
    %v795 = vsel %vm127, %v791, %v780
    %v796 = vsel %vm127, %v792, %v782
    %v797 = vsel %vm127, %v793, %v784
    %v798 = vsel %vm127, %v794, %v786
    %s799 = sld [smem:[#allocation6 + $0x12]]
    %v800 = vstv %s799
    %v801 = vmul.f32 %v800, %v795
    %v802 = vmul.f32 %v800, %v796
    %v803 = vmul.f32 %v800, %v797
    %v804 = vmul.f32 %v800, %v798
    %s805 = sld [smem:[#allocation6 + $0x13]]
    %v806 = vstv %s805
    %v807 = vmul.f32 %v806, %v795
    %v808 = vmul.f32 %v806, %v796
    %v809 = vmul.f32 %v806, %v797
    %v810 = vmul.f32 %v806, %v798
    %815 = vrot.lane.b32.xlu0 %v807, 127
    %v816 = vpop.permute.xlu0 %815
    %817 = vrot.lane.b32.xlu0 %v808, 127
    %v818 = vpop.permute.xlu0 %817
    %819 = vrot.lane.b32.xlu0 %v809, 127
    %v820 = vpop.permute.xlu0 %819
    %821 = vrot.lane.b32.xlu0 %v810, 127
    %v822 = vpop.permute.xlu0 %821
    %v827 = vadd.f32 %v801, %v816
    %v828 = vadd.f32 %v802, %v818
    %v829 = vadd.f32 %v803, %v820
    %v830 = vadd.f32 %v804, %v822
    %s831 = sld [smem:[#allocation6 + $0x14]]
    %v832 = vstv %s831
    %v833 = vmul.f32 %v832, %v795
    %v834 = vmul.f32 %v832, %v796
    %v835 = vmul.f32 %v832, %v797
    %v836 = vmul.f32 %v832, %v798
    %841 = vrot.lane.b32.xlu0 %v833, 126
    %v842 = vpop.permute.xlu0 %841
    %843 = vrot.lane.b32.xlu0 %v834, 126
    %v844 = vpop.permute.xlu0 %843
    %845 = vrot.lane.b32.xlu0 %v835, 126
    %v846 = vpop.permute.xlu0 %845
    %847 = vrot.lane.b32.xlu0 %v836, 126
    %v848 = vpop.permute.xlu0 %847
    %v853 = vadd.f32 %v827, %v842
    %v854 = vadd.f32 %v828, %v844
    %v855 = vadd.f32 %v829, %v846
    %v856 = vadd.f32 %v830, %v848
    %s857 = sld [smem:[#allocation6 + $0x15]]
    %v858 = vstv %s857
    %v859 = vmul.f32 %v858, %v795
    %v860 = vmul.f32 %v858, %v796
    %v861 = vmul.f32 %v858, %v797
    %v862 = vmul.f32 %v858, %v798
    %v867 = vrot.slane %v859, 1
    %v868 = vrot.slane %v860, 1
    %v869 = vsel %vm252, %v867, %v868
    %v870 = vsel %vm252, %v868, %v867
    %v871 = vrot.slane %v861, 1
    %v872 = vrot.slane %v862, 1
    %v873 = vsel %vm252, %v871, %v872
    %v874 = vsel %vm252, %v872, %v871
    %v879 = vadd.f32 %v853, %v869
    %v880 = vadd.f32 %v854, %v870
    %v881 = vadd.f32 %v855, %v873
    %v882 = vadd.f32 %v856, %v874
    %s883 = sld [smem:[#allocation6 + $0x16]]
    %v884 = vstv %s883
    %v885 = vmul.f32 %v884, %v795
    %v886 = vmul.f32 %v884, %v796
    %v887 = vmul.f32 %v884, %v797
    %v888 = vmul.f32 %v884, %v798
    %v893 = vrot.slane %v885, 1
    %v894 = vrot.slane %v886, 1
    %v895 = vsel %vm252, %v893, %v894
    %v896 = vsel %vm252, %v894, %v893
    %v897 = vrot.slane %v887, 1
    %v898 = vrot.slane %v888, 1
    %v899 = vsel %vm252, %v897, %v898
    %v900 = vsel %vm252, %v898, %v897
    %901 = vrot.lane.b32.xlu0 %v895, 127
    %v902 = vpop.permute.xlu0 %901
    %903 = vrot.lane.b32.xlu0 %v896, 127
    %v904 = vpop.permute.xlu0 %903
    %905 = vrot.lane.b32.xlu0 %v899, 127
    %v906 = vpop.permute.xlu0 %905
    %907 = vrot.lane.b32.xlu0 %v900, 127
    %v908 = vpop.permute.xlu0 %907
    %v913 = vadd.f32 %v879, %v902
    %v914 = vadd.f32 %v880, %v904
    %v915 = vadd.f32 %v881, %v906
    %v916 = vadd.f32 %v882, %v908
    %s917 = sld [smem:[#allocation6 + $0x17]]
    %v918 = vstv %s917
    %v919 = vmul.f32 %v918, %v795
    %v920 = vmul.f32 %v918, %v796
    %v921 = vmul.f32 %v918, %v797
    %v922 = vmul.f32 %v918, %v798
    %v927 = vrot.slane %v919, 1
    %v928 = vrot.slane %v920, 1
    %v929 = vsel %vm252, %v927, %v928
    %v930 = vsel %vm252, %v928, %v927
    %v931 = vrot.slane %v921, 1
    %v932 = vrot.slane %v922, 1
    %v933 = vsel %vm252, %v931, %v932
    %v934 = vsel %vm252, %v932, %v931
    %935 = vrot.lane.b32.xlu0 %v929, 126
    %v936 = vpop.permute.xlu0 %935
    %937 = vrot.lane.b32.xlu0 %v930, 126
    %v938 = vpop.permute.xlu0 %937
    %939 = vrot.lane.b32.xlu0 %v933, 126
    %v940 = vpop.permute.xlu0 %939
    %941 = vrot.lane.b32.xlu0 %v934, 126
    %v942 = vpop.permute.xlu0 %941
    %v947 = vadd.f32 %v913, %v936
    %v948 = vadd.f32 %v914, %v938
    %v949 = vadd.f32 %v915, %v940
    %v950 = vadd.f32 %v916, %v942
    %s951 = sld [smem:[#allocation6 + $0x18]]
    %v952 = vstv %s951
    %v953 = vmul.f32 %v952, %v795
    %v954 = vmul.f32 %v952, %v796
    %v955 = vmul.f32 %v952, %v797
    %v956 = vmul.f32 %v952, %v798
    %v961 = vrot.slane %v953, 2
    %v962 = vrot.slane %v954, 2
    %v963 = vsel %vm347, %v961, %v962
    %v964 = vsel %vm347, %v962, %v961
    %v965 = vrot.slane %v955, 2
    %v966 = vrot.slane %v956, 2
    %v967 = vsel %vm347, %v965, %v966
    %v968 = vsel %vm347, %v966, %v965
    %v973 = vadd.f32 %v947, %v963
    %v974 = vadd.f32 %v948, %v964
    %v975 = vadd.f32 %v949, %v967
    %v976 = vadd.f32 %v950, %v968
    %s977 = sld [smem:[#allocation6 + $0x19]]
    %v978 = vstv %s977
    %v979 = vmul.f32 %v978, %v795
    %v980 = vmul.f32 %v978, %v796
    %v981 = vmul.f32 %v978, %v797
    %v982 = vmul.f32 %v978, %v798
    %v987 = vrot.slane %v979, 2
    %v988 = vrot.slane %v980, 2
    %v989 = vsel %vm347, %v987, %v988
    %v990 = vsel %vm347, %v988, %v987
    %v991 = vrot.slane %v981, 2
    %v992 = vrot.slane %v982, 2
    %v993 = vsel %vm347, %v991, %v992
    %v994 = vsel %vm347, %v992, %v991
    %995 = vrot.lane.b32.xlu0 %v989, 127
    %v996 = vpop.permute.xlu0 %995
    %997 = vrot.lane.b32.xlu0 %v990, 127
    %v998 = vpop.permute.xlu0 %997
    %999 = vrot.lane.b32.xlu0 %v993, 127
    %v1000 = vpop.permute.xlu0 %999
    %1001 = vrot.lane.b32.xlu0 %v994, 127
    %v1002 = vpop.permute.xlu0 %1001
    %v1007 = vadd.f32 %v973, %v996
    %v1008 = vadd.f32 %v974, %v998
    %v1009 = vadd.f32 %v975, %v1000
    %v1010 = vadd.f32 %v976, %v1002
    %s1011 = sld [smem:[#allocation6 + $0x1a]]
    %v1012 = vstv %s1011
    %v1013 = vmul.f32 %v1012, %v795
    %v1014 = vmul.f32 %v1012, %v796
    %v1015 = vmul.f32 %v1012, %v797
    %v1016 = vmul.f32 %v1012, %v798
    %v1021 = vrot.slane %v1013, 2
    %v1022 = vrot.slane %v1014, 2
    %v1023 = vsel %vm347, %v1021, %v1022
    %v1024 = vsel %vm347, %v1022, %v1021
    %v1025 = vrot.slane %v1015, 2
    %v1026 = vrot.slane %v1016, 2
    %v1027 = vsel %vm347, %v1025, %v1026
    %v1028 = vsel %vm347, %v1026, %v1025
    %1029 = vrot.lane.b32.xlu0 %v1023, 126
    %v1030 = vpop.permute.xlu0 %1029
    %1031 = vrot.lane.b32.xlu0 %v1024, 126
    %v1032 = vpop.permute.xlu0 %1031
    %1033 = vrot.lane.b32.xlu0 %v1027, 126
    %v1034 = vpop.permute.xlu0 %1033
    %1035 = vrot.lane.b32.xlu0 %v1028, 126
    %v1036 = vpop.permute.xlu0 %1035
    %v1041 = vadd.f32 %v1007, %v1030
    %v1042 = vadd.f32 %v1008, %v1032
    %v1043 = vadd.f32 %v1009, %v1034
    %v1044 = vadd.f32 %v1010, %v1036
    %v1045 = vsel %vm682, %v1041, 0.0
    %v1046 = vsel %vm682, %v1042, 0.0
    %v1047 = vadd.f32 %v1045, %v1046
    %v1048 = vsel %vm682, %v1043, 0.0
    %v1049 = vadd.f32 %v1047, %v1048
    %v1050 = vsel %vm682, %v1044, 0.0
    %v1051 = vadd.f32 %v1049, %v1050
    %1052 = vadd.xlane.f32.xlu0 %v1051
    %v1053 = vpop.xlane.xlu0 %1052
    %v1054 = vrot.slane %v1053, 4
    %v1055 = vadd.f32 %v1053, %v1054
    %v1056 = vrot.slane %v1055, 2
    %v1057 = vadd.f32 %v1055, %v1056
    %v1058 = vrot.slane %v1057, 1
    %v1059 = vadd.f32 %v1057, %v1058
    %s1060 = vtos %v1059
    %v1061 = vmul.f32 %v1041, %v1041
    %v1062 = vmul.f32 %v1042, %v1042
    %v1063 = vmul.f32 %v1043, %v1043
    %v1064 = vmul.f32 %v1044, %v1044
    %v1065 = vsel %vm682, %v1061, 0.0
    %v1066 = vsel %vm682, %v1062, 0.0
    %v1067 = vadd.f32 %v1065, %v1066
    %v1068 = vsel %vm682, %v1063, 0.0
    %v1069 = vadd.f32 %v1067, %v1068
    %v1070 = vsel %vm682, %v1064, 0.0
    %v1071 = vadd.f32 %v1069, %v1070
    %1072 = vadd.xlane.f32.xlu0 %v1071
    %v1073 = vpop.xlane.xlu0 %1072
    %v1074 = vrot.slane %v1073, 4
    %v1075 = vadd.f32 %v1073, %v1074
    %v1076 = vrot.slane %v1075, 2
    %v1077 = vadd.f32 %v1075, %v1076
    %v1078 = vrot.slane %v1077, 1
    %v1079 = vadd.f32 %v1077, %v1078
    %s1080 = vtos %v1079
    %s1081 = smul.f32 %s1060, 0.001953125
    %s1082 = smul.f32 %s1080, 0.001953125
    %s1083 = smul.f32 %s1081, %s1081
    %s1084 = ssub.f32 %s1082, %s1083
    %s1085 = smax.f32 %s1084, 0.0
    %s1086 = sld [smem:[#allocation7 + $0x1]]
    %s1087 = sadd.f32 %s1085, 1e-05
    %v1088 = vstv %s1087
    %v1089 = vrsqrt.pop %v1088
    %s1090 = vtos %v1089
    %s1091 = smul.f32 %s1086, %s1090
    %s1092 = sld [smem:[#allocation9 + $0x1]]
    %s1093 = smul.f32 %s1081, %s1091
    %s1094 = ssub.f32 %s1092, %s1093
    %v1095 = vstv %s1091
    %v1096 = vmul.f32 %v1041, %v1095
    %v1097 = vmul.f32 %v1042, %v1095
    %v1098 = vmul.f32 %v1043, %v1095
    %v1099 = vmul.f32 %v1044, %v1095
    %v1100 = vstv %s1094
    %v1101 = vadd.f32 %v1096, %v1100
    %v1102 = vadd.f32 %v1097, %v1100
    %v1103 = vadd.f32 %v1098, %v1100
    %v1104 = vadd.f32 %v1099, %v1100
    %v1105 = vmax.f32 %v1101, 0.0
    %v1106 = vmax.f32 %v1102, 0.0
    %v1107 = vmax.f32 %v1103, 0.0
    %v1108 = vmax.f32 %v1104, 0.0
    %v1109 = vrot.slane %v744, 6
    %v1110 = vrot.slane %v746, 6
    %vm1113 = vcmask 1041408
    %v1114 = vrot.slane %v743, 6
    %v1115 = vsel %vm1113, %v1114, %v1109
    %v1116 = vrot.slane %v745, 6
    %v1117 = vsel %vm1113, %v1116, %v1110
    %v1120 = vsel %vm1113, %v1109, %v1114
    %v1121 = vsel %vm1113, %v1110, %v1116
    %1123 = vset.pattern.permute.xlu0 0
    %1124 = vperm.xlu0 %1123, %v1120
    %v1125 = vpop.permute.xlu0 %1124
    %1127 = vset.pattern.permute.xlu0 0
    %1128 = vperm.xlu0 %1127, %v1115
    %v1129 = vpop.permute.xlu0 %1128
    %1132 = vset.pattern.permute.xlu0 0
    %1133 = vperm.xlu0 %1132, %v1121
    %v1134 = vpop.permute.xlu0 %1133
    %1136 = vset.pattern.permute.xlu0 0
    %1137 = vperm.xlu0 %1136, %v1117
    %v1138 = vpop.permute.xlu0 %1137
    %1140 = vset.pattern.permute.xlu0 15
    %1141 = vperm.xlu0 %1140, %v1120
    %v1142 = vpop.permute.xlu0 %1141
    %1144 = vset.pattern.permute.xlu0 15
    %1145 = vperm.xlu0 %1144, %v1115
    %v1146 = vpop.permute.xlu0 %1145
    %1148 = vset.pattern.permute.xlu0 15
    %1149 = vperm.xlu0 %1148, %v1121
    %v1150 = vpop.permute.xlu0 %1149
    %1152 = vset.pattern.permute.xlu0 15
    %1153 = vperm.xlu0 %1152, %v1117
    %v1154 = vpop.permute.xlu0 %1153
    %1156 = vrot.lane.b32.xlu0 %v1120, 2
    %v1157 = vpop.permute.xlu0 %1156
    %1158 = vrot.lane.b32.xlu0 %v1115, 2
    %v1159 = vpop.permute.xlu0 %1158
    %1160 = vrot.lane.b32.xlu0 %v1121, 2
    %v1161 = vpop.permute.xlu0 %1160
    %1162 = vrot.lane.b32.xlu0 %v1117, 2
    %v1163 = vpop.permute.xlu0 %1162
    %vm1168 = vcmask 15360
    %v1169 = vsel %vm1168, %v1125, %v1157
    %v1170 = vsel %vm1168, %v1129, %v1159
    %v1171 = vsel %vm1168, %v1134, %v1161
    %v1172 = vsel %vm1168, %v1138, %v1163
    %vm1173 = vcmask 146432
    %v1174 = vsel %vm1173, %v1169, %v1142
    %v1175 = vsel %vm1173, %v1170, %v1146
    %v1176 = vsel %vm1173, %v1171, %v1150
    %v1177 = vsel %vm1173, %v1172, %v1154
    %v1180 = vrot.slane %v1106, 6
    %v1181 = vrot.slane %v1108, 6
    %v1186 = vrot.slane %v1105, 6
    %v1187 = vsel %vm1113, %v1186, %v1180
    %v1188 = vrot.slane %v1107, 6
    %v1189 = vsel %vm1113, %v1188, %v1181
    %v1192 = vsel %vm1113, %v1180, %v1186
    %v1193 = vsel %vm1113, %v1181, %v1188
    %1195 = vset.pattern.permute.xlu0 0
    %1196 = vperm.xlu0 %1195, %v1192
    %v1197 = vpop.permute.xlu0 %1196
    %1199 = vset.pattern.permute.xlu0 0
    %1200 = vperm.xlu0 %1199, %v1187
    %v1201 = vpop.permute.xlu0 %1200
    %1204 = vset.pattern.permute.xlu0 0
    %1205 = vperm.xlu0 %1204, %v1193
    %v1206 = vpop.permute.xlu0 %1205
    %1208 = vset.pattern.permute.xlu0 0
    %1209 = vperm.xlu0 %1208, %v1189
    %v1210 = vpop.permute.xlu0 %1209
    %1212 = vset.pattern.permute.xlu0 15
    %1213 = vperm.xlu0 %1212, %v1192
    %v1214 = vpop.permute.xlu0 %1213
    %1216 = vset.pattern.permute.xlu0 15
    %1217 = vperm.xlu0 %1216, %v1187
    %v1218 = vpop.permute.xlu0 %1217
    %1220 = vset.pattern.permute.xlu0 15
    %1221 = vperm.xlu0 %1220, %v1193
    %v1222 = vpop.permute.xlu0 %1221
    %1224 = vset.pattern.permute.xlu0 15
    %1225 = vperm.xlu0 %1224, %v1189
    %v1226 = vpop.permute.xlu0 %1225
    %1228 = vrot.lane.b32.xlu0 %v1192, 2
    %v1229 = vpop.permute.xlu0 %1228
    %1230 = vrot.lane.b32.xlu0 %v1187, 2
    %v1231 = vpop.permute.xlu0 %1230
    %1232 = vrot.lane.b32.xlu0 %v1193, 2
    %v1233 = vpop.permute.xlu0 %1232
    %1234 = vrot.lane.b32.xlu0 %v1189, 2
    %v1235 = vpop.permute.xlu0 %1234
    %v1240 = vsel %vm1168, %v1197, %v1229
    %v1241 = vsel %vm1168, %v1201, %v1231
    %v1242 = vsel %vm1168, %v1206, %v1233
    %v1243 = vsel %vm1168, %v1210, %v1235
    %v1244 = vsel %vm1173, %v1240, %v1214
    %v1245 = vsel %vm1173, %v1241, %v1218
    %v1246 = vsel %vm1173, %v1242, %v1222
    %v1247 = vsel %vm1173, %v1243, %v1226
    %s1248 = sld [smem:[#allocation6 + $0x1b]]
    %v1249 = vstv %s1248
    %v1250 = vmul.f32 %v1249, %v1174
    %v1251 = vmul.f32 %v1249, %v1175
    %v1252 = vmul.f32 %v1249, %v1176
    %v1253 = vmul.f32 %v1249, %v1177
    %s1254 = sld [smem:[#allocation6 + $0x1c]]
    %v1255 = vstv %s1254
    %v1256 = vmul.f32 %v1255, %v1174
    %v1257 = vmul.f32 %v1255, %v1175
    %v1258 = vmul.f32 %v1255, %v1176
    %v1259 = vmul.f32 %v1255, %v1177
    %1264 = vrot.lane.b32.xlu0 %v1256, 126
    %v1265 = vpop.permute.xlu0 %1264
    %1266 = vrot.lane.b32.xlu0 %v1257, 126
    %v1267 = vpop.permute.xlu0 %1266
    %1268 = vrot.lane.b32.xlu0 %v1258, 126
    %v1269 = vpop.permute.xlu0 %1268
    %1270 = vrot.lane.b32.xlu0 %v1259, 126
    %v1271 = vpop.permute.xlu0 %1270
    %v1276 = vadd.f32 %v1250, %v1265
    %v1277 = vadd.f32 %v1251, %v1267
    %v1278 = vadd.f32 %v1252, %v1269
    %v1279 = vadd.f32 %v1253, %v1271
    %s1280 = sld [smem:[#allocation6 + $0x1d]]
    %v1281 = vstv %s1280
    %v1282 = vmul.f32 %v1281, %v1174
    %v1283 = vmul.f32 %v1281, %v1175
    %v1284 = vmul.f32 %v1281, %v1176
    %v1285 = vmul.f32 %v1281, %v1177
    %1290 = vrot.lane.b32.xlu0 %v1282, 124
    %v1291 = vpop.permute.xlu0 %1290
    %1292 = vrot.lane.b32.xlu0 %v1283, 124
    %v1293 = vpop.permute.xlu0 %1292
    %1294 = vrot.lane.b32.xlu0 %v1284, 124
    %v1295 = vpop.permute.xlu0 %1294
    %1296 = vrot.lane.b32.xlu0 %v1285, 124
    %v1297 = vpop.permute.xlu0 %1296
    %v1302 = vadd.f32 %v1276, %v1291
    %v1303 = vadd.f32 %v1277, %v1293
    %v1304 = vadd.f32 %v1278, %v1295
    %v1305 = vadd.f32 %v1279, %v1297
    %s1306 = sld [smem:[#allocation6 + $0x1e]]
    %v1307 = vstv %s1306
    %v1308 = vmul.f32 %v1307, %v1174
    %v1309 = vmul.f32 %v1307, %v1175
    %v1310 = vmul.f32 %v1307, %v1176
    %v1311 = vmul.f32 %v1307, %v1177
    %v1316 = vrot.slane %v1308, 2
    %v1317 = vrot.slane %v1309, 2
    %v1318 = vsel %vm347, %v1316, %v1317
    %v1319 = vsel %vm347, %v1317, %v1316
    %v1320 = vrot.slane %v1310, 2
    %v1321 = vrot.slane %v1311, 2
    %v1322 = vsel %vm347, %v1320, %v1321
    %v1323 = vsel %vm347, %v1321, %v1320
    %v1328 = vadd.f32 %v1302, %v1318
    %v1329 = vadd.f32 %v1303, %v1319
    %v1330 = vadd.f32 %v1304, %v1322
    %v1331 = vadd.f32 %v1305, %v1323
    %s1332 = sld [smem:[#allocation6 + $0x1f]]
    %v1333 = vstv %s1332
    %v1334 = vmul.f32 %v1333, %v1174
    %v1335 = vmul.f32 %v1333, %v1175
    %v1336 = vmul.f32 %v1333, %v1176
    %v1337 = vmul.f32 %v1333, %v1177
    %v1342 = vrot.slane %v1334, 2
    %v1343 = vrot.slane %v1335, 2
    %v1344 = vsel %vm347, %v1342, %v1343
    %v1345 = vsel %vm347, %v1343, %v1342
    %v1346 = vrot.slane %v1336, 2
    %v1347 = vrot.slane %v1337, 2
    %v1348 = vsel %vm347, %v1346, %v1347
    %v1349 = vsel %vm347, %v1347, %v1346
    %1350 = vrot.lane.b32.xlu0 %v1344, 126
    %v1351 = vpop.permute.xlu0 %1350
    %1352 = vrot.lane.b32.xlu0 %v1345, 126
    %v1353 = vpop.permute.xlu0 %1352
    %1354 = vrot.lane.b32.xlu0 %v1348, 126
    %v1355 = vpop.permute.xlu0 %1354
    %1356 = vrot.lane.b32.xlu0 %v1349, 126
    %v1357 = vpop.permute.xlu0 %1356
    %v1362 = vadd.f32 %v1328, %v1351
    %v1363 = vadd.f32 %v1329, %v1353
    %v1364 = vadd.f32 %v1330, %v1355
    %v1365 = vadd.f32 %v1331, %v1357
    %s1366 = sld [smem:[#allocation6 + $0x20]]
    %v1367 = vstv %s1366
    %v1368 = vmul.f32 %v1367, %v1174
    %v1369 = vmul.f32 %v1367, %v1175
    %v1370 = vmul.f32 %v1367, %v1176
    %v1371 = vmul.f32 %v1367, %v1177
    %v1376 = vrot.slane %v1368, 2
    %v1377 = vrot.slane %v1369, 2
    %v1378 = vsel %vm347, %v1376, %v1377
    %v1379 = vsel %vm347, %v1377, %v1376
    %v1380 = vrot.slane %v1370, 2
    %v1381 = vrot.slane %v1371, 2
    %v1382 = vsel %vm347, %v1380, %v1381
    %v1383 = vsel %vm347, %v1381, %v1380
    %1384 = vrot.lane.b32.xlu0 %v1378, 124
    %v1385 = vpop.permute.xlu0 %1384
    %1386 = vrot.lane.b32.xlu0 %v1379, 124
    %v1387 = vpop.permute.xlu0 %1386
    %1388 = vrot.lane.b32.xlu0 %v1382, 124
    %v1389 = vpop.permute.xlu0 %1388
    %1390 = vrot.lane.b32.xlu0 %v1383, 124
    %v1391 = vpop.permute.xlu0 %1390
    %v1396 = vadd.f32 %v1362, %v1385
    %v1397 = vadd.f32 %v1363, %v1387
    %v1398 = vadd.f32 %v1364, %v1389
    %v1399 = vadd.f32 %v1365, %v1391
    %s1400 = sld [smem:[#allocation6 + $0x21]]
    %v1401 = vstv %s1400
    %v1402 = vmul.f32 %v1401, %v1174
    %v1403 = vmul.f32 %v1401, %v1175
    %v1404 = vmul.f32 %v1401, %v1176
    %v1405 = vmul.f32 %v1401, %v1177
    %vm1410 = vcmask 1043456
    %v1411 = vrot.slane %v1402, 4
    %v1412 = vrot.slane %v1403, 4
    %v1413 = vsel %vm1410, %v1411, %v1412
    %v1414 = vsel %vm1410, %v1412, %v1411
    %v1415 = vrot.slane %v1404, 4
    %v1416 = vrot.slane %v1405, 4
    %v1417 = vsel %vm1410, %v1415, %v1416
    %v1418 = vsel %vm1410, %v1416, %v1415
    %v1423 = vadd.f32 %v1396, %v1413
    %v1424 = vadd.f32 %v1397, %v1414
    %v1425 = vadd.f32 %v1398, %v1417
    %v1426 = vadd.f32 %v1399, %v1418
    %s1427 = sld [smem:[#allocation6 + $0x22]]
    %v1428 = vstv %s1427
    %v1429 = vmul.f32 %v1428, %v1174
    %v1430 = vmul.f32 %v1428, %v1175
    %v1431 = vmul.f32 %v1428, %v1176
    %v1432 = vmul.f32 %v1428, %v1177
    %v1437 = vrot.slane %v1429, 4
    %v1438 = vrot.slane %v1430, 4
    %v1439 = vsel %vm1410, %v1437, %v1438
    %v1440 = vsel %vm1410, %v1438, %v1437
    %v1441 = vrot.slane %v1431, 4
    %v1442 = vrot.slane %v1432, 4
    %v1443 = vsel %vm1410, %v1441, %v1442
    %v1444 = vsel %vm1410, %v1442, %v1441
    %1445 = vrot.lane.b32.xlu0 %v1439, 126
    %v1446 = vpop.permute.xlu0 %1445
    %1447 = vrot.lane.b32.xlu0 %v1440, 126
    %v1448 = vpop.permute.xlu0 %1447
    %1449 = vrot.lane.b32.xlu0 %v1443, 126
    %v1450 = vpop.permute.xlu0 %1449
    %1451 = vrot.lane.b32.xlu0 %v1444, 126
    %v1452 = vpop.permute.xlu0 %1451
    %v1457 = vadd.f32 %v1423, %v1446
    %v1458 = vadd.f32 %v1424, %v1448
    %v1459 = vadd.f32 %v1425, %v1450
    %v1460 = vadd.f32 %v1426, %v1452
    %s1461 = sld [smem:[#allocation6 + $0x23]]
    %v1462 = vstv %s1461
    %v1463 = vmul.f32 %v1462, %v1174
    %v1464 = vmul.f32 %v1462, %v1175
    %v1465 = vmul.f32 %v1462, %v1176
    %v1466 = vmul.f32 %v1462, %v1177
    %v1471 = vrot.slane %v1463, 4
    %v1472 = vrot.slane %v1464, 4
    %v1473 = vsel %vm1410, %v1471, %v1472
    %v1474 = vsel %vm1410, %v1472, %v1471
    %v1475 = vrot.slane %v1465, 4
    %v1476 = vrot.slane %v1466, 4
    %v1477 = vsel %vm1410, %v1475, %v1476
    %v1478 = vsel %vm1410, %v1476, %v1475
    %1479 = vrot.lane.b32.xlu0 %v1473, 124
    %v1480 = vpop.permute.xlu0 %1479
    %1481 = vrot.lane.b32.xlu0 %v1474, 124
    %v1482 = vpop.permute.xlu0 %1481
    %1483 = vrot.lane.b32.xlu0 %v1477, 124
    %v1484 = vpop.permute.xlu0 %1483
    %1485 = vrot.lane.b32.xlu0 %v1478, 124
    %v1486 = vpop.permute.xlu0 %1485
    %v1491 = vadd.f32 %v1457, %v1480
    %v1492 = vadd.f32 %v1458, %v1482
    %v1493 = vadd.f32 %v1459, %v1484
    %v1494 = vadd.f32 %v1460, %v1486
    %s1495 = sld [smem:[#allocation6 + $0x24]]
    %v1496 = vstv %s1495
    %v1497 = vmul.f32 %v1496, %v1244
    %v1498 = vmul.f32 %v1496, %v1245
    %v1499 = vmul.f32 %v1496, %v1246
    %v1500 = vmul.f32 %v1496, %v1247
    %v1501 = vadd.f32 %v1491, %v1497
    %v1502 = vadd.f32 %v1492, %v1498
    %v1503 = vadd.f32 %v1493, %v1499
    %v1504 = vadd.f32 %v1494, %v1500
    %s1505 = sld [smem:[#allocation6 + $0x25]]
    %v1506 = vstv %s1505
    %v1507 = vmul.f32 %v1506, %v1244
    %v1508 = vmul.f32 %v1506, %v1245
    %v1509 = vmul.f32 %v1506, %v1246
    %v1510 = vmul.f32 %v1506, %v1247
    %1515 = vrot.lane.b32.xlu0 %v1507, 126
    %v1516 = vpop.permute.xlu0 %1515
    %1517 = vrot.lane.b32.xlu0 %v1508, 126
    %v1518 = vpop.permute.xlu0 %1517
    %1519 = vrot.lane.b32.xlu0 %v1509, 126
    %v1520 = vpop.permute.xlu0 %1519
    %1521 = vrot.lane.b32.xlu0 %v1510, 126
    %v1522 = vpop.permute.xlu0 %1521
    %v1527 = vadd.f32 %v1501, %v1516
    %v1528 = vadd.f32 %v1502, %v1518
    %v1529 = vadd.f32 %v1503, %v1520
    %v1530 = vadd.f32 %v1504, %v1522
    %s1531 = sld [smem:[#allocation6 + $0x26]]
    %v1532 = vstv %s1531
    %v1533 = vmul.f32 %v1532, %v1244
    %v1534 = vmul.f32 %v1532, %v1245
    %v1535 = vmul.f32 %v1532, %v1246
    %v1536 = vmul.f32 %v1532, %v1247
    %1541 = vrot.lane.b32.xlu0 %v1533, 124
    %v1542 = vpop.permute.xlu0 %1541
    %1543 = vrot.lane.b32.xlu0 %v1534, 124
    %v1544 = vpop.permute.xlu0 %1543
    %1545 = vrot.lane.b32.xlu0 %v1535, 124
    %v1546 = vpop.permute.xlu0 %1545
    %1547 = vrot.lane.b32.xlu0 %v1536, 124
    %v1548 = vpop.permute.xlu0 %1547
    %v1553 = vadd.f32 %v1527, %v1542
    %v1554 = vadd.f32 %v1528, %v1544
    %v1555 = vadd.f32 %v1529, %v1546
    %v1556 = vadd.f32 %v1530, %v1548
    %s1557 = sld [smem:[#allocation6 + $0x27]]
    %v1558 = vstv %s1557
    %v1559 = vmul.f32 %v1558, %v1244
    %v1560 = vmul.f32 %v1558, %v1245
    %v1561 = vmul.f32 %v1558, %v1246
    %v1562 = vmul.f32 %v1558, %v1247
    %v1567 = vrot.slane %v1559, 2
    %v1568 = vrot.slane %v1560, 2
    %v1569 = vsel %vm347, %v1567, %v1568
    %v1570 = vsel %vm347, %v1568, %v1567
    %v1571 = vrot.slane %v1561, 2
    %v1572 = vrot.slane %v1562, 2
    %v1573 = vsel %vm347, %v1571, %v1572
    %v1574 = vsel %vm347, %v1572, %v1571
    %v1579 = vadd.f32 %v1553, %v1569
    %v1580 = vadd.f32 %v1554, %v1570
    %v1581 = vadd.f32 %v1555, %v1573
    %v1582 = vadd.f32 %v1556, %v1574
    %s1583 = sld [smem:[#allocation6 + $0x28]]
    %v1584 = vstv %s1583
    %v1585 = vmul.f32 %v1584, %v1244
    %v1586 = vmul.f32 %v1584, %v1245
    %v1587 = vmul.f32 %v1584, %v1246
    %v1588 = vmul.f32 %v1584, %v1247
    %v1593 = vrot.slane %v1585, 2
    %v1594 = vrot.slane %v1586, 2
    %v1595 = vsel %vm347, %v1593, %v1594
    %v1596 = vsel %vm347, %v1594, %v1593
    %v1597 = vrot.slane %v1587, 2
    %v1598 = vrot.slane %v1588, 2
    %v1599 = vsel %vm347, %v1597, %v1598
    %v1600 = vsel %vm347, %v1598, %v1597
    %1601 = vrot.lane.b32.xlu0 %v1595, 126
    %v1602 = vpop.permute.xlu0 %1601
    %1603 = vrot.lane.b32.xlu0 %v1596, 126
    %v1604 = vpop.permute.xlu0 %1603
    %1605 = vrot.lane.b32.xlu0 %v1599, 126
    %v1606 = vpop.permute.xlu0 %1605
    %1607 = vrot.lane.b32.xlu0 %v1600, 126
    %v1608 = vpop.permute.xlu0 %1607
    %v1613 = vadd.f32 %v1579, %v1602
    %v1614 = vadd.f32 %v1580, %v1604
    %v1615 = vadd.f32 %v1581, %v1606
    %v1616 = vadd.f32 %v1582, %v1608
    %s1617 = sld [smem:[#allocation6 + $0x29]]
    %v1618 = vstv %s1617
    %v1619 = vmul.f32 %v1618, %v1244
    %v1620 = vmul.f32 %v1618, %v1245
    %v1621 = vmul.f32 %v1618, %v1246
    %v1622 = vmul.f32 %v1618, %v1247
    %v1627 = vrot.slane %v1619, 2
    %v1628 = vrot.slane %v1620, 2
    %v1629 = vsel %vm347, %v1627, %v1628
    %v1630 = vsel %vm347, %v1628, %v1627
    %v1631 = vrot.slane %v1621, 2
    %v1632 = vrot.slane %v1622, 2
    %v1633 = vsel %vm347, %v1631, %v1632
    %v1634 = vsel %vm347, %v1632, %v1631
    %1635 = vrot.lane.b32.xlu0 %v1629, 124
    %v1636 = vpop.permute.xlu0 %1635
    %1637 = vrot.lane.b32.xlu0 %v1630, 124
    %v1638 = vpop.permute.xlu0 %1637
    %1639 = vrot.lane.b32.xlu0 %v1633, 124
    %v1640 = vpop.permute.xlu0 %1639
    %1641 = vrot.lane.b32.xlu0 %v1634, 124
    %v1642 = vpop.permute.xlu0 %1641
    %v1647 = vadd.f32 %v1613, %v1636
    %v1648 = vadd.f32 %v1614, %v1638
    %v1649 = vadd.f32 %v1615, %v1640
    %v1650 = vadd.f32 %v1616, %v1642
    %s1651 = sld [smem:[#allocation6 + $0x2a]]
    %v1652 = vstv %s1651
    %v1653 = vmul.f32 %v1652, %v1244
    %v1654 = vmul.f32 %v1652, %v1245
    %v1655 = vmul.f32 %v1652, %v1246
    %v1656 = vmul.f32 %v1652, %v1247
    %v1661 = vrot.slane %v1653, 4
    %v1662 = vrot.slane %v1654, 4
    %v1663 = vsel %vm1410, %v1661, %v1662
    %v1664 = vsel %vm1410, %v1662, %v1661
    %v1665 = vrot.slane %v1655, 4
    %v1666 = vrot.slane %v1656, 4
    %v1667 = vsel %vm1410, %v1665, %v1666
    %v1668 = vsel %vm1410, %v1666, %v1665
    %v1673 = vadd.f32 %v1647, %v1663
    %v1674 = vadd.f32 %v1648, %v1664
    %v1675 = vadd.f32 %v1649, %v1667
    %v1676 = vadd.f32 %v1650, %v1668
    %s1677 = sld [smem:[#allocation6 + $0x2b]]
    %v1678 = vstv %s1677
    %v1679 = vmul.f32 %v1678, %v1244
    %v1680 = vmul.f32 %v1678, %v1245
    %v1681 = vmul.f32 %v1678, %v1246
    %v1682 = vmul.f32 %v1678, %v1247
    %v1687 = vrot.slane %v1679, 4
    %v1688 = vrot.slane %v1680, 4
    %v1689 = vsel %vm1410, %v1687, %v1688
    %v1690 = vsel %vm1410, %v1688, %v1687
    %v1691 = vrot.slane %v1681, 4
    %v1692 = vrot.slane %v1682, 4
    %v1693 = vsel %vm1410, %v1691, %v1692
    %v1694 = vsel %vm1410, %v1692, %v1691
    %1695 = vrot.lane.b32.xlu0 %v1689, 126
    %v1696 = vpop.permute.xlu0 %1695
    %1697 = vrot.lane.b32.xlu0 %v1690, 126
    %v1698 = vpop.permute.xlu0 %1697
    %1699 = vrot.lane.b32.xlu0 %v1693, 126
    %v1700 = vpop.permute.xlu0 %1699
    %1701 = vrot.lane.b32.xlu0 %v1694, 126
    %v1702 = vpop.permute.xlu0 %1701
    %v1707 = vadd.f32 %v1673, %v1696
    %v1708 = vadd.f32 %v1674, %v1698
    %v1709 = vadd.f32 %v1675, %v1700
    %v1710 = vadd.f32 %v1676, %v1702
    %s1711 = sld [smem:[#allocation6 + $0x2c]]
    %v1712 = vstv %s1711
    %v1713 = vmul.f32 %v1712, %v1244
    %v1714 = vmul.f32 %v1712, %v1245
    %v1715 = vmul.f32 %v1712, %v1246
    %v1716 = vmul.f32 %v1712, %v1247
    %v1721 = vrot.slane %v1713, 4
    %v1722 = vrot.slane %v1714, 4
    %v1723 = vsel %vm1410, %v1721, %v1722
    %v1724 = vsel %vm1410, %v1722, %v1721
    %v1725 = vrot.slane %v1715, 4
    %v1726 = vrot.slane %v1716, 4
    %v1727 = vsel %vm1410, %v1725, %v1726
    %v1728 = vsel %vm1410, %v1726, %v1725
    %1729 = vrot.lane.b32.xlu0 %v1723, 124
    %v1730 = vpop.permute.xlu0 %1729
    %1731 = vrot.lane.b32.xlu0 %v1724, 124
    %v1732 = vpop.permute.xlu0 %1731
    %1733 = vrot.lane.b32.xlu0 %v1727, 124
    %v1734 = vpop.permute.xlu0 %1733
    %1735 = vrot.lane.b32.xlu0 %v1728, 124
    %v1736 = vpop.permute.xlu0 %1735
    %v1741 = vadd.f32 %v1707, %v1730
    %v1742 = vadd.f32 %v1708, %v1732
    %v1743 = vadd.f32 %v1709, %v1734
    %v1744 = vadd.f32 %v1710, %v1736
    %v1745 = vsel %vm682, %v1741, 0.0
    %v1746 = vsel %vm682, %v1742, 0.0
    %v1747 = vadd.f32 %v1745, %v1746
    %v1748 = vsel %vm682, %v1743, 0.0
    %v1749 = vadd.f32 %v1747, %v1748
    %v1750 = vsel %vm682, %v1744, 0.0
    %v1751 = vadd.f32 %v1749, %v1750
    %1752 = vadd.xlane.f32.xlu0 %v1751
    %v1753 = vpop.xlane.xlu0 %1752
    %v1754 = vrot.slane %v1753, 4
    %v1755 = vadd.f32 %v1753, %v1754
    %v1756 = vrot.slane %v1755, 2
    %v1757 = vadd.f32 %v1755, %v1756
    %v1758 = vrot.slane %v1757, 1
    %v1759 = vadd.f32 %v1757, %v1758
    %s1760 = vtos %v1759
    %v1761 = vmul.f32 %v1741, %v1741
    %v1762 = vmul.f32 %v1742, %v1742
    %v1763 = vmul.f32 %v1743, %v1743
    %v1764 = vmul.f32 %v1744, %v1744
    %v1765 = vsel %vm682, %v1761, 0.0
    %v1766 = vsel %vm682, %v1762, 0.0
    %v1767 = vadd.f32 %v1765, %v1766
    %v1768 = vsel %vm682, %v1763, 0.0
    %v1769 = vadd.f32 %v1767, %v1768
    %v1770 = vsel %vm682, %v1764, 0.0
    %v1771 = vadd.f32 %v1769, %v1770
    %1772 = vadd.xlane.f32.xlu0 %v1771
    %v1773 = vpop.xlane.xlu0 %1772
    %v1774 = vrot.slane %v1773, 4
    %v1775 = vadd.f32 %v1773, %v1774
    %v1776 = vrot.slane %v1775, 2
    %v1777 = vadd.f32 %v1775, %v1776
    %v1778 = vrot.slane %v1777, 1
    %v1779 = vadd.f32 %v1777, %v1778
    %s1780 = vtos %v1779
    %s1781 = smul.f32 %s1760, 0.001953125
    %s1782 = smul.f32 %s1780, 0.001953125
    %s1783 = smul.f32 %s1781, %s1781
    %s1784 = ssub.f32 %s1782, %s1783
    %s1785 = smax.f32 %s1784, 0.0
    %s1786 = sld [smem:[#allocation7 + $0x2]]
    %s1787 = sadd.f32 %s1785, 1e-05
    %v1788 = vstv %s1787
    %v1789 = vrsqrt.pop %v1788
    %s1790 = vtos %v1789
    %s1791 = smul.f32 %s1786, %s1790
    %s1792 = sld [smem:[#allocation9 + $0x2]]
    %s1793 = smul.f32 %s1781, %s1791
    %s1794 = ssub.f32 %s1792, %s1793
    %v1795 = vstv %s1791
    %v1796 = vmul.f32 %v1741, %v1795
    %v1797 = vmul.f32 %v1742, %v1795
    %v1798 = vmul.f32 %v1743, %v1795
    %v1799 = vmul.f32 %v1744, %v1795
    %v1800 = vstv %s1794
    %v1801 = vadd.f32 %v1796, %v1800
    %v1802 = vadd.f32 %v1797, %v1800
    %v1803 = vadd.f32 %v1798, %v1800
    %v1804 = vadd.f32 %v1799, %v1800
    %v1805 = vmax.f32 %v1801, 0.0
    %v1806 = vmax.f32 %v1802, 0.0
    %v1807 = vmax.f32 %v1803, 0.0
    %v1808 = vmax.f32 %v1804, 0.0
    %1809 = vset.pattern.permute.xlu0 0
    %1810 = vperm.xlu0 %1809, %v763
    %v1811 = vpop.permute.xlu0 %1810
    %1813 = vset.pattern.permute.xlu0 0
    %1814 = vperm.xlu0 %1813, %v756
    %v1815 = vpop.permute.xlu0 %1814
    %1817 = vset.pattern.permute.xlu0 0
    %1818 = vperm.xlu0 %1817, %v764
    %v1819 = vpop.permute.xlu0 %1818
    %1821 = vset.pattern.permute.xlu0 0
    %1822 = vperm.xlu0 %1821, %v758
    %v1823 = vpop.permute.xlu0 %1822
    %1825 = vset.pattern.permute.xlu0 15
    %1826 = vperm.xlu0 %1825, %v763
    %v1827 = vpop.permute.xlu0 %1826
    %1829 = vset.pattern.permute.xlu0 15
    %1830 = vperm.xlu0 %1829, %v756
    %v1831 = vpop.permute.xlu0 %1830
    %1833 = vset.pattern.permute.xlu0 15
    %1834 = vperm.xlu0 %1833, %v764
    %v1835 = vpop.permute.xlu0 %1834
    %1837 = vset.pattern.permute.xlu0 15
    %1838 = vperm.xlu0 %1837, %v758
    %v1839 = vpop.permute.xlu0 %1838
    %1841 = vrot.lane.b32.xlu0 %v763, 3
    %v1842 = vpop.permute.xlu0 %1841
    %1843 = vrot.lane.b32.xlu0 %v756, 3
    %v1844 = vpop.permute.xlu0 %1843
    %1845 = vrot.lane.b32.xlu0 %v764, 3
    %v1846 = vpop.permute.xlu0 %1845
    %1847 = vrot.lane.b32.xlu0 %v758, 3
    %v1848 = vpop.permute.xlu0 %1847
    %vm1853 = vcmask 23552
    %v1854 = vsel %vm1853, %v1811, %v1842
    %v1855 = vsel %vm1853, %v1815, %v1844
    %v1856 = vsel %vm1853, %v1819, %v1846
    %v1857 = vsel %vm1853, %v1823, %v1848
    %vm1858 = vcmask 154624
    %v1859 = vsel %vm1858, %v1854, %v1827
    %v1860 = vsel %vm1858, %v1855, %v1831
    %v1861 = vsel %vm1858, %v1856, %v1835
    %v1862 = vsel %vm1858, %v1857, %v1839
    %v1863 = vrot.slane %v1106, 7
    %v1864 = vrot.slane %v1108, 7
    %v1867 = vrot.slane %v1105, 7
    %v1868 = vsel %vm85, %v1867, %v1863
    %v1869 = vrot.slane %v1107, 7
    %v1870 = vsel %vm85, %v1869, %v1864
    %v1873 = vsel %vm85, %v1863, %v1867
    %v1874 = vsel %vm85, %v1864, %v1869
    %1876 = vset.pattern.permute.xlu0 0
    %1877 = vperm.xlu0 %1876, %v1873
    %v1878 = vpop.permute.xlu0 %1877
    %1880 = vset.pattern.permute.xlu0 0
    %1881 = vperm.xlu0 %1880, %v1868
    %v1882 = vpop.permute.xlu0 %1881
    %1885 = vset.pattern.permute.xlu0 0
    %1886 = vperm.xlu0 %1885, %v1874
    %v1887 = vpop.permute.xlu0 %1886
    %1889 = vset.pattern.permute.xlu0 0
    %1890 = vperm.xlu0 %1889, %v1870
    %v1891 = vpop.permute.xlu0 %1890
    %1893 = vset.pattern.permute.xlu0 15
    %1894 = vperm.xlu0 %1893, %v1873
    %v1895 = vpop.permute.xlu0 %1894
    %1897 = vset.pattern.permute.xlu0 15
    %1898 = vperm.xlu0 %1897, %v1868
    %v1899 = vpop.permute.xlu0 %1898
    %1901 = vset.pattern.permute.xlu0 15
    %1902 = vperm.xlu0 %1901, %v1874
    %v1903 = vpop.permute.xlu0 %1902
    %1905 = vset.pattern.permute.xlu0 15
    %1906 = vperm.xlu0 %1905, %v1870
    %v1907 = vpop.permute.xlu0 %1906
    %1909 = vrot.lane.b32.xlu0 %v1873, 3
    %v1910 = vpop.permute.xlu0 %1909
    %1911 = vrot.lane.b32.xlu0 %v1868, 3
    %v1912 = vpop.permute.xlu0 %1911
    %1913 = vrot.lane.b32.xlu0 %v1874, 3
    %v1914 = vpop.permute.xlu0 %1913
    %1915 = vrot.lane.b32.xlu0 %v1870, 3
    %v1916 = vpop.permute.xlu0 %1915
    %v1921 = vsel %vm1853, %v1878, %v1910
    %v1922 = vsel %vm1853, %v1882, %v1912
    %v1923 = vsel %vm1853, %v1887, %v1914
    %v1924 = vsel %vm1853, %v1891, %v1916
    %v1925 = vsel %vm1858, %v1921, %v1895
    %v1926 = vsel %vm1858, %v1922, %v1899
    %v1927 = vsel %vm1858, %v1923, %v1903
    %v1928 = vsel %vm1858, %v1924, %v1907
    %v1931 = vrot.slane %v1806, 7
    %v1932 = vrot.slane %v1808, 7
    %v1937 = vrot.slane %v1805, 7
    %v1938 = vsel %vm85, %v1937, %v1931
    %v1939 = vrot.slane %v1807, 7
    %v1940 = vsel %vm85, %v1939, %v1932
    %v1943 = vsel %vm85, %v1931, %v1937
    %v1944 = vsel %vm85, %v1932, %v1939
    %1946 = vset.pattern.permute.xlu0 0
    %1947 = vperm.xlu0 %1946, %v1943
    %v1948 = vpop.permute.xlu0 %1947
    %1950 = vset.pattern.permute.xlu0 0
    %1951 = vperm.xlu0 %1950, %v1938
    %v1952 = vpop.permute.xlu0 %1951
    %1955 = vset.pattern.permute.xlu0 0
    %1956 = vperm.xlu0 %1955, %v1944
    %v1957 = vpop.permute.xlu0 %1956
    %1959 = vset.pattern.permute.xlu0 0
    %1960 = vperm.xlu0 %1959, %v1940
    %v1961 = vpop.permute.xlu0 %1960
    %1963 = vset.pattern.permute.xlu0 15
    %1964 = vperm.xlu0 %1963, %v1943
    %v1965 = vpop.permute.xlu0 %1964
    %1967 = vset.pattern.permute.xlu0 15
    %1968 = vperm.xlu0 %1967, %v1938
    %v1969 = vpop.permute.xlu0 %1968
    %1971 = vset.pattern.permute.xlu0 15
    %1972 = vperm.xlu0 %1971, %v1944
    %v1973 = vpop.permute.xlu0 %1972
    %1975 = vset.pattern.permute.xlu0 15
    %1976 = vperm.xlu0 %1975, %v1940
    %v1977 = vpop.permute.xlu0 %1976
    %1979 = vrot.lane.b32.xlu0 %v1943, 3
    %v1980 = vpop.permute.xlu0 %1979
    %1981 = vrot.lane.b32.xlu0 %v1938, 3
    %v1982 = vpop.permute.xlu0 %1981
    %1983 = vrot.lane.b32.xlu0 %v1944, 3
    %v1984 = vpop.permute.xlu0 %1983
    %1985 = vrot.lane.b32.xlu0 %v1940, 3
    %v1986 = vpop.permute.xlu0 %1985
    %v1991 = vsel %vm1853, %v1948, %v1980
    %v1992 = vsel %vm1853, %v1952, %v1982
    %v1993 = vsel %vm1853, %v1957, %v1984
    %v1994 = vsel %vm1853, %v1961, %v1986
    %v1995 = vsel %vm1858, %v1991, %v1965
    %v1996 = vsel %vm1858, %v1992, %v1969
    %v1997 = vsel %vm1858, %v1993, %v1973
    %v1998 = vsel %vm1858, %v1994, %v1977
    %s1999 = sld [smem:[#allocation6 + $0x2d]]
    %v2000 = vstv %s1999
    %v2001 = vmul.f32 %v2000, %v1859
    %v2002 = vmul.f32 %v2000, %v1860
    %v2003 = vmul.f32 %v2000, %v1861
    %v2004 = vmul.f32 %v2000, %v1862
    %s2005 = sld [smem:[#allocation6 + $0x2e]]
    %v2006 = vstv %s2005
    %v2007 = vmul.f32 %v2006, %v1859
    %v2008 = vmul.f32 %v2006, %v1860
    %v2009 = vmul.f32 %v2006, %v1861
    %v2010 = vmul.f32 %v2006, %v1862
    %2015 = vrot.lane.b32.xlu0 %v2007, 125
    %v2016 = vpop.permute.xlu0 %2015
    %2017 = vrot.lane.b32.xlu0 %v2008, 125
    %v2018 = vpop.permute.xlu0 %2017
    %2019 = vrot.lane.b32.xlu0 %v2009, 125
    %v2020 = vpop.permute.xlu0 %2019
    %2021 = vrot.lane.b32.xlu0 %v2010, 125
    %v2022 = vpop.permute.xlu0 %2021
    %v2027 = vadd.f32 %v2001, %v2016
    %v2028 = vadd.f32 %v2002, %v2018
    %v2029 = vadd.f32 %v2003, %v2020
    %v2030 = vadd.f32 %v2004, %v2022
    %s2031 = sld [smem:[#allocation6 + $0x2f]]
    %v2032 = vstv %s2031
    %v2033 = vmul.f32 %v2032, %v1859
    %v2034 = vmul.f32 %v2032, %v1860
    %v2035 = vmul.f32 %v2032, %v1861
    %v2036 = vmul.f32 %v2032, %v1862
    %2041 = vrot.lane.b32.xlu0 %v2033, 122
    %v2042 = vpop.permute.xlu0 %2041
    %2043 = vrot.lane.b32.xlu0 %v2034, 122
    %v2044 = vpop.permute.xlu0 %2043
    %2045 = vrot.lane.b32.xlu0 %v2035, 122
    %v2046 = vpop.permute.xlu0 %2045
    %2047 = vrot.lane.b32.xlu0 %v2036, 122
    %v2048 = vpop.permute.xlu0 %2047
    %v2053 = vadd.f32 %v2027, %v2042
    %v2054 = vadd.f32 %v2028, %v2044
    %v2055 = vadd.f32 %v2029, %v2046
    %v2056 = vadd.f32 %v2030, %v2048
    %s2057 = sld [smem:[#allocation6 + $0x30]]
    %v2058 = vstv %s2057
    %v2059 = vmul.f32 %v2058, %v1859
    %v2060 = vmul.f32 %v2058, %v1860
    %v2061 = vmul.f32 %v2058, %v1861
    %v2062 = vmul.f32 %v2058, %v1862
    %v2067 = vrot.slane %v2059, 1
    %v2068 = vrot.slane %v2060, 1
    %v2069 = vsel %vm252, %v2067, %v2068
    %v2070 = vsel %vm252, %v2068, %v2067
    %v2071 = vrot.slane %v2061, 1
    %v2072 = vrot.slane %v2062, 1
    %v2073 = vsel %vm252, %v2071, %v2072
    %v2074 = vsel %vm252, %v2072, %v2071
    %v2079 = vadd.f32 %v2053, %v2069
    %v2080 = vadd.f32 %v2054, %v2070
    %v2081 = vadd.f32 %v2055, %v2073
    %v2082 = vadd.f32 %v2056, %v2074
    %s2083 = sld [smem:[#allocation6 + $0x31]]
    %v2084 = vstv %s2083
    %v2085 = vmul.f32 %v2084, %v1859
    %v2086 = vmul.f32 %v2084, %v1860
    %v2087 = vmul.f32 %v2084, %v1861
    %v2088 = vmul.f32 %v2084, %v1862
    %v2093 = vrot.slane %v2085, 1
    %v2094 = vrot.slane %v2086, 1
    %v2095 = vsel %vm252, %v2093, %v2094
    %v2096 = vsel %vm252, %v2094, %v2093
    %v2097 = vrot.slane %v2087, 1
    %v2098 = vrot.slane %v2088, 1
    %v2099 = vsel %vm252, %v2097, %v2098
    %v2100 = vsel %vm252, %v2098, %v2097
    %2101 = vrot.lane.b32.xlu0 %v2095, 125
    %v2102 = vpop.permute.xlu0 %2101
    %2103 = vrot.lane.b32.xlu0 %v2096, 125
    %v2104 = vpop.permute.xlu0 %2103
    %2105 = vrot.lane.b32.xlu0 %v2099, 125
    %v2106 = vpop.permute.xlu0 %2105
    %2107 = vrot.lane.b32.xlu0 %v2100, 125
    %v2108 = vpop.permute.xlu0 %2107
    %v2113 = vadd.f32 %v2079, %v2102
    %v2114 = vadd.f32 %v2080, %v2104
    %v2115 = vadd.f32 %v2081, %v2106
    %v2116 = vadd.f32 %v2082, %v2108
    %s2117 = sld [smem:[#allocation6 + $0x32]]
    %v2118 = vstv %s2117
    %v2119 = vmul.f32 %v2118, %v1859
    %v2120 = vmul.f32 %v2118, %v1860
    %v2121 = vmul.f32 %v2118, %v1861
    %v2122 = vmul.f32 %v2118, %v1862
    %v2127 = vrot.slane %v2119, 1
    %v2128 = vrot.slane %v2120, 1
    %v2129 = vsel %vm252, %v2127, %v2128
    %v2130 = vsel %vm252, %v2128, %v2127
    %v2131 = vrot.slane %v2121, 1
    %v2132 = vrot.slane %v2122, 1
    %v2133 = vsel %vm252, %v2131, %v2132
    %v2134 = vsel %vm252, %v2132, %v2131
    %2135 = vrot.lane.b32.xlu0 %v2129, 122
    %v2136 = vpop.permute.xlu0 %2135
    %2137 = vrot.lane.b32.xlu0 %v2130, 122
    %v2138 = vpop.permute.xlu0 %2137
    %2139 = vrot.lane.b32.xlu0 %v2133, 122
    %v2140 = vpop.permute.xlu0 %2139
    %2141 = vrot.lane.b32.xlu0 %v2134, 122
    %v2142 = vpop.permute.xlu0 %2141
    %v2147 = vadd.f32 %v2113, %v2136
    %v2148 = vadd.f32 %v2114, %v2138
    %v2149 = vadd.f32 %v2115, %v2140
    %v2150 = vadd.f32 %v2116, %v2142
    %s2151 = sld [smem:[#allocation6 + $0x33]]
    %v2152 = vstv %s2151
    %v2153 = vmul.f32 %v2152, %v1859
    %v2154 = vmul.f32 %v2152, %v1860
    %v2155 = vmul.f32 %v2152, %v1861
    %v2156 = vmul.f32 %v2152, %v1862
    %v2161 = vrot.slane %v2153, 2
    %v2162 = vrot.slane %v2154, 2
    %v2163 = vsel %vm347, %v2161, %v2162
    %v2164 = vsel %vm347, %v2162, %v2161
    %v2165 = vrot.slane %v2155, 2
    %v2166 = vrot.slane %v2156, 2
    %v2167 = vsel %vm347, %v2165, %v2166
    %v2168 = vsel %vm347, %v2166, %v2165
    %v2173 = vadd.f32 %v2147, %v2163
    %v2174 = vadd.f32 %v2148, %v2164
    %v2175 = vadd.f32 %v2149, %v2167
    %v2176 = vadd.f32 %v2150, %v2168
    %s2177 = sld [smem:[#allocation6 + $0x34]]
    %v2178 = vstv %s2177
    %v2179 = vmul.f32 %v2178, %v1859
    %v2180 = vmul.f32 %v2178, %v1860
    %v2181 = vmul.f32 %v2178, %v1861
    %v2182 = vmul.f32 %v2178, %v1862
    %v2187 = vrot.slane %v2179, 2
    %v2188 = vrot.slane %v2180, 2
    %v2189 = vsel %vm347, %v2187, %v2188
    %v2190 = vsel %vm347, %v2188, %v2187
    %v2191 = vrot.slane %v2181, 2
    %v2192 = vrot.slane %v2182, 2
    %v2193 = vsel %vm347, %v2191, %v2192
    %v2194 = vsel %vm347, %v2192, %v2191
    %2195 = vrot.lane.b32.xlu0 %v2189, 125
    %v2196 = vpop.permute.xlu0 %2195
    %2197 = vrot.lane.b32.xlu0 %v2190, 125
    %v2198 = vpop.permute.xlu0 %2197
    %2199 = vrot.lane.b32.xlu0 %v2193, 125
    %v2200 = vpop.permute.xlu0 %2199
    %2201 = vrot.lane.b32.xlu0 %v2194, 125
    %v2202 = vpop.permute.xlu0 %2201
    %v2207 = vadd.f32 %v2173, %v2196
    %v2208 = vadd.f32 %v2174, %v2198
    %v2209 = vadd.f32 %v2175, %v2200
    %v2210 = vadd.f32 %v2176, %v2202
    %s2211 = sld [smem:[#allocation6 + $0x35]]
    %v2212 = vstv %s2211
    %v2213 = vmul.f32 %v2212, %v1859
    %v2214 = vmul.f32 %v2212, %v1860
    %v2215 = vmul.f32 %v2212, %v1861
    %v2216 = vmul.f32 %v2212, %v1862
    %v2221 = vrot.slane %v2213, 2
    %v2222 = vrot.slane %v2214, 2
    %v2223 = vsel %vm347, %v2221, %v2222
    %v2224 = vsel %vm347, %v2222, %v2221
    %v2225 = vrot.slane %v2215, 2
    %v2226 = vrot.slane %v2216, 2
    %v2227 = vsel %vm347, %v2225, %v2226
    %v2228 = vsel %vm347, %v2226, %v2225
    %2229 = vrot.lane.b32.xlu0 %v2223, 122
    %v2230 = vpop.permute.xlu0 %2229
    %2231 = vrot.lane.b32.xlu0 %v2224, 122
    %v2232 = vpop.permute.xlu0 %2231
    %2233 = vrot.lane.b32.xlu0 %v2227, 122
    %v2234 = vpop.permute.xlu0 %2233
    %2235 = vrot.lane.b32.xlu0 %v2228, 122
    %v2236 = vpop.permute.xlu0 %2235
    %v2241 = vadd.f32 %v2207, %v2230
    %v2242 = vadd.f32 %v2208, %v2232
    %v2243 = vadd.f32 %v2209, %v2234
    %v2244 = vadd.f32 %v2210, %v2236
    %s2245 = sld [smem:[#allocation6 + $0x36]]
    %v2246 = vstv %s2245
    %v2247 = vmul.f32 %v2246, %v1925
    %v2248 = vmul.f32 %v2246, %v1926
    %v2249 = vmul.f32 %v2246, %v1927
    %v2250 = vmul.f32 %v2246, %v1928
    %v2251 = vadd.f32 %v2241, %v2247
    %v2252 = vadd.f32 %v2242, %v2248
    %v2253 = vadd.f32 %v2243, %v2249
    %v2254 = vadd.f32 %v2244, %v2250
    %s2255 = sld [smem:[#allocation6 + $0x37]]
    %v2256 = vstv %s2255
    %v2257 = vmul.f32 %v2256, %v1925
    %v2258 = vmul.f32 %v2256, %v1926
    %v2259 = vmul.f32 %v2256, %v1927
    %v2260 = vmul.f32 %v2256, %v1928
    %2265 = vrot.lane.b32.xlu0 %v2257, 125
    %v2266 = vpop.permute.xlu0 %2265
    %2267 = vrot.lane.b32.xlu0 %v2258, 125
    %v2268 = vpop.permute.xlu0 %2267
    %2269 = vrot.lane.b32.xlu0 %v2259, 125
    %v2270 = vpop.permute.xlu0 %2269
    %2271 = vrot.lane.b32.xlu0 %v2260, 125
    %v2272 = vpop.permute.xlu0 %2271
    %v2277 = vadd.f32 %v2251, %v2266
    %v2278 = vadd.f32 %v2252, %v2268
    %v2279 = vadd.f32 %v2253, %v2270
    %v2280 = vadd.f32 %v2254, %v2272
    %s2281 = sld [smem:[#allocation6 + $0x38]]
    %v2282 = vstv %s2281
    %v2283 = vmul.f32 %v2282, %v1925
    %v2284 = vmul.f32 %v2282, %v1926
    %v2285 = vmul.f32 %v2282, %v1927
    %v2286 = vmul.f32 %v2282, %v1928
    %2291 = vrot.lane.b32.xlu0 %v2283, 122
    %v2292 = vpop.permute.xlu0 %2291
    %2293 = vrot.lane.b32.xlu0 %v2284, 122
    %v2294 = vpop.permute.xlu0 %2293
    %2295 = vrot.lane.b32.xlu0 %v2285, 122
    %v2296 = vpop.permute.xlu0 %2295
    %2297 = vrot.lane.b32.xlu0 %v2286, 122
    %v2298 = vpop.permute.xlu0 %2297
    %v2303 = vadd.f32 %v2277, %v2292
    %v2304 = vadd.f32 %v2278, %v2294
    %v2305 = vadd.f32 %v2279, %v2296
    %v2306 = vadd.f32 %v2280, %v2298
    %s2307 = sld [smem:[#allocation6 + $0x39]]
    %v2308 = vstv %s2307
    %v2309 = vmul.f32 %v2308, %v1925
    %v2310 = vmul.f32 %v2308, %v1926
    %v2311 = vmul.f32 %v2308, %v1927
    %v2312 = vmul.f32 %v2308, %v1928
    %v2317 = vrot.slane %v2309, 1
    %v2318 = vrot.slane %v2310, 1
    %v2319 = vsel %vm252, %v2317, %v2318
    %v2320 = vsel %vm252, %v2318, %v2317
    %v2321 = vrot.slane %v2311, 1
    %v2322 = vrot.slane %v2312, 1
    %v2323 = vsel %vm252, %v2321, %v2322
    %v2324 = vsel %vm252, %v2322, %v2321
    %v2329 = vadd.f32 %v2303, %v2319
    %v2330 = vadd.f32 %v2304, %v2320
    %v2331 = vadd.f32 %v2305, %v2323
    %v2332 = vadd.f32 %v2306, %v2324
    %s2333 = sld [smem:[#allocation6 + $0x3a]]
    %v2334 = vstv %s2333
    %v2335 = vmul.f32 %v2334, %v1925
    %v2336 = vmul.f32 %v2334, %v1926
    %v2337 = vmul.f32 %v2334, %v1927
    %v2338 = vmul.f32 %v2334, %v1928
    %v2343 = vrot.slane %v2335, 1
    %v2344 = vrot.slane %v2336, 1
    %v2345 = vsel %vm252, %v2343, %v2344
    %v2346 = vsel %vm252, %v2344, %v2343
    %v2347 = vrot.slane %v2337, 1
    %v2348 = vrot.slane %v2338, 1
    %v2349 = vsel %vm252, %v2347, %v2348
    %v2350 = vsel %vm252, %v2348, %v2347
    %2351 = vrot.lane.b32.xlu0 %v2345, 125
    %v2352 = vpop.permute.xlu0 %2351
    %2353 = vrot.lane.b32.xlu0 %v2346, 125
    %v2354 = vpop.permute.xlu0 %2353
    %2355 = vrot.lane.b32.xlu0 %v2349, 125
    %v2356 = vpop.permute.xlu0 %2355
    %2357 = vrot.lane.b32.xlu0 %v2350, 125
    %v2358 = vpop.permute.xlu0 %2357
    %v2363 = vadd.f32 %v2329, %v2352
    %v2364 = vadd.f32 %v2330, %v2354
    %v2365 = vadd.f32 %v2331, %v2356
    %v2366 = vadd.f32 %v2332, %v2358
    %s2367 = sld [smem:[#allocation6 + $0x3b]]
    %v2368 = vstv %s2367
    %v2369 = vmul.f32 %v2368, %v1925
    %v2370 = vmul.f32 %v2368, %v1926
    %v2371 = vmul.f32 %v2368, %v1927
    %v2372 = vmul.f32 %v2368, %v1928
    %v2377 = vrot.slane %v2369, 1
    %v2378 = vrot.slane %v2370, 1
    %v2379 = vsel %vm252, %v2377, %v2378
    %v2380 = vsel %vm252, %v2378, %v2377
    %v2381 = vrot.slane %v2371, 1
    %v2382 = vrot.slane %v2372, 1
    %v2383 = vsel %vm252, %v2381, %v2382
    %v2384 = vsel %vm252, %v2382, %v2381
    %2385 = vrot.lane.b32.xlu0 %v2379, 122
    %v2386 = vpop.permute.xlu0 %2385
    %2387 = vrot.lane.b32.xlu0 %v2380, 122
    %v2388 = vpop.permute.xlu0 %2387
    %2389 = vrot.lane.b32.xlu0 %v2383, 122
    %v2390 = vpop.permute.xlu0 %2389
    %2391 = vrot.lane.b32.xlu0 %v2384, 122
    %v2392 = vpop.permute.xlu0 %2391
    %v2397 = vadd.f32 %v2363, %v2386
    %v2398 = vadd.f32 %v2364, %v2388
    %v2399 = vadd.f32 %v2365, %v2390
    %v2400 = vadd.f32 %v2366, %v2392
    %s2401 = sld [smem:[#allocation6 + $0x3c]]
    %v2402 = vstv %s2401
    %v2403 = vmul.f32 %v2402, %v1925
    %v2404 = vmul.f32 %v2402, %v1926
    %v2405 = vmul.f32 %v2402, %v1927
    %v2406 = vmul.f32 %v2402, %v1928
    %v2411 = vrot.slane %v2403, 2
    %v2412 = vrot.slane %v2404, 2
    %v2413 = vsel %vm347, %v2411, %v2412
    %v2414 = vsel %vm347, %v2412, %v2411
    %v2415 = vrot.slane %v2405, 2
    %v2416 = vrot.slane %v2406, 2
    %v2417 = vsel %vm347, %v2415, %v2416
    %v2418 = vsel %vm347, %v2416, %v2415
    %v2423 = vadd.f32 %v2397, %v2413
    %v2424 = vadd.f32 %v2398, %v2414
    %v2425 = vadd.f32 %v2399, %v2417
    %v2426 = vadd.f32 %v2400, %v2418
    %s2427 = sld [smem:[#allocation6 + $0x3d]]
    %v2428 = vstv %s2427
    %v2429 = vmul.f32 %v2428, %v1925
    %v2430 = vmul.f32 %v2428, %v1926
    %v2431 = vmul.f32 %v2428, %v1927
    %v2432 = vmul.f32 %v2428, %v1928
    %v2437 = vrot.slane %v2429, 2
    %v2438 = vrot.slane %v2430, 2
    %v2439 = vsel %vm347, %v2437, %v2438
    %v2440 = vsel %vm347, %v2438, %v2437
    %v2441 = vrot.slane %v2431, 2
    %v2442 = vrot.slane %v2432, 2
    %v2443 = vsel %vm347, %v2441, %v2442
    %v2444 = vsel %vm347, %v2442, %v2441
    %2445 = vrot.lane.b32.xlu0 %v2439, 125
    %v2446 = vpop.permute.xlu0 %2445
    %2447 = vrot.lane.b32.xlu0 %v2440, 125
    %v2448 = vpop.permute.xlu0 %2447
    %2449 = vrot.lane.b32.xlu0 %v2443, 125
    %v2450 = vpop.permute.xlu0 %2449
    %2451 = vrot.lane.b32.xlu0 %v2444, 125
    %v2452 = vpop.permute.xlu0 %2451
    %v2457 = vadd.f32 %v2423, %v2446
    %v2458 = vadd.f32 %v2424, %v2448
    %v2459 = vadd.f32 %v2425, %v2450
    %v2460 = vadd.f32 %v2426, %v2452
    %s2461 = sld [smem:[#allocation6 + $0x3e]]
    %v2462 = vstv %s2461
    %v2463 = vmul.f32 %v2462, %v1925
    %v2464 = vmul.f32 %v2462, %v1926
    %v2465 = vmul.f32 %v2462, %v1927
    %v2466 = vmul.f32 %v2462, %v1928
    %v2471 = vrot.slane %v2463, 2
    %v2472 = vrot.slane %v2464, 2
    %v2473 = vsel %vm347, %v2471, %v2472
    %v2474 = vsel %vm347, %v2472, %v2471
    %v2475 = vrot.slane %v2465, 2
    %v2476 = vrot.slane %v2466, 2
    %v2477 = vsel %vm347, %v2475, %v2476
    %v2478 = vsel %vm347, %v2476, %v2475
    %2479 = vrot.lane.b32.xlu0 %v2473, 122
    %v2480 = vpop.permute.xlu0 %2479
    %2481 = vrot.lane.b32.xlu0 %v2474, 122
    %v2482 = vpop.permute.xlu0 %2481
    %2483 = vrot.lane.b32.xlu0 %v2477, 122
    %v2484 = vpop.permute.xlu0 %2483
    %2485 = vrot.lane.b32.xlu0 %v2478, 122
    %v2486 = vpop.permute.xlu0 %2485
    %v2491 = vadd.f32 %v2457, %v2480
    %v2492 = vadd.f32 %v2458, %v2482
    %v2493 = vadd.f32 %v2459, %v2484
    %v2494 = vadd.f32 %v2460, %v2486
    %s2495 = sld [smem:[#allocation6 + $0x3f]]
    %v2496 = vstv %s2495
    %v2497 = vmul.f32 %v2496, %v1995
    %v2498 = vmul.f32 %v2496, %v1996
    %v2499 = vmul.f32 %v2496, %v1997
    %v2500 = vmul.f32 %v2496, %v1998
    %v2501 = vadd.f32 %v2491, %v2497
    %v2502 = vadd.f32 %v2492, %v2498
    %v2503 = vadd.f32 %v2493, %v2499
    %v2504 = vadd.f32 %v2494, %v2500
    %s2505 = sld [smem:[#allocation6 + $0x40]]
    %v2506 = vstv %s2505
    %v2507 = vmul.f32 %v2506, %v1995
    %v2508 = vmul.f32 %v2506, %v1996
    %v2509 = vmul.f32 %v2506, %v1997
    %v2510 = vmul.f32 %v2506, %v1998
    %2515 = vrot.lane.b32.xlu0 %v2507, 125
    %v2516 = vpop.permute.xlu0 %2515
    %2517 = vrot.lane.b32.xlu0 %v2508, 125
    %v2518 = vpop.permute.xlu0 %2517
    %2519 = vrot.lane.b32.xlu0 %v2509, 125
    %v2520 = vpop.permute.xlu0 %2519
    %2521 = vrot.lane.b32.xlu0 %v2510, 125
    %v2522 = vpop.permute.xlu0 %2521
    %v2527 = vadd.f32 %v2501, %v2516
    %v2528 = vadd.f32 %v2502, %v2518
    %v2529 = vadd.f32 %v2503, %v2520
    %v2530 = vadd.f32 %v2504, %v2522
    %s2531 = sld [smem:[#allocation6 + $0x41]]
    %v2532 = vstv %s2531
    %v2533 = vmul.f32 %v2532, %v1995
    %v2534 = vmul.f32 %v2532, %v1996
    %v2535 = vmul.f32 %v2532, %v1997
    %v2536 = vmul.f32 %v2532, %v1998
    %2541 = vrot.lane.b32.xlu0 %v2533, 122
    %v2542 = vpop.permute.xlu0 %2541
    %2543 = vrot.lane.b32.xlu0 %v2534, 122
    %v2544 = vpop.permute.xlu0 %2543
    %2545 = vrot.lane.b32.xlu0 %v2535, 122
    %v2546 = vpop.permute.xlu0 %2545
    %2547 = vrot.lane.b32.xlu0 %v2536, 122
    %v2548 = vpop.permute.xlu0 %2547
    %v2553 = vadd.f32 %v2527, %v2542
    %v2554 = vadd.f32 %v2528, %v2544
    %v2555 = vadd.f32 %v2529, %v2546
    %v2556 = vadd.f32 %v2530, %v2548
    %s2557 = sld [smem:[#allocation6 + $0x42]]
    %v2558 = vstv %s2557
    %v2559 = vmul.f32 %v2558, %v1995
    %v2560 = vmul.f32 %v2558, %v1996
    %v2561 = vmul.f32 %v2558, %v1997
    %v2562 = vmul.f32 %v2558, %v1998
    %v2567 = vrot.slane %v2559, 1
    %v2568 = vrot.slane %v2560, 1
    %v2569 = vsel %vm252, %v2567, %v2568
    %v2570 = vsel %vm252, %v2568, %v2567
    %v2571 = vrot.slane %v2561, 1
    %v2572 = vrot.slane %v2562, 1
    %v2573 = vsel %vm252, %v2571, %v2572
    %v2574 = vsel %vm252, %v2572, %v2571
    %v2579 = vadd.f32 %v2553, %v2569
    %v2580 = vadd.f32 %v2554, %v2570
    %v2581 = vadd.f32 %v2555, %v2573
    %v2582 = vadd.f32 %v2556, %v2574
    %s2583 = sld [smem:[#allocation6 + $0x43]]
    %v2584 = vstv %s2583
    %v2585 = vmul.f32 %v2584, %v1995
    %v2586 = vmul.f32 %v2584, %v1996
    %v2587 = vmul.f32 %v2584, %v1997
    %v2588 = vmul.f32 %v2584, %v1998
    %v2593 = vrot.slane %v2585, 1
    %v2594 = vrot.slane %v2586, 1
    %v2595 = vsel %vm252, %v2593, %v2594
    %v2596 = vsel %vm252, %v2594, %v2593
    %v2597 = vrot.slane %v2587, 1
    %v2598 = vrot.slane %v2588, 1
    %v2599 = vsel %vm252, %v2597, %v2598
    %v2600 = vsel %vm252, %v2598, %v2597
    %2601 = vrot.lane.b32.xlu0 %v2595, 125
    %v2602 = vpop.permute.xlu0 %2601
    %2603 = vrot.lane.b32.xlu0 %v2596, 125
    %v2604 = vpop.permute.xlu0 %2603
    %2605 = vrot.lane.b32.xlu0 %v2599, 125
    %v2606 = vpop.permute.xlu0 %2605
    %2607 = vrot.lane.b32.xlu0 %v2600, 125
    %v2608 = vpop.permute.xlu0 %2607
    %v2613 = vadd.f32 %v2579, %v2602
    %v2614 = vadd.f32 %v2580, %v2604
    %v2615 = vadd.f32 %v2581, %v2606
    %v2616 = vadd.f32 %v2582, %v2608
    %s2617 = sld [smem:[#allocation6 + $0x44]]
    %v2618 = vstv %s2617
    %v2619 = vmul.f32 %v2618, %v1995
    %v2620 = vmul.f32 %v2618, %v1996
    %v2621 = vmul.f32 %v2618, %v1997
    %v2622 = vmul.f32 %v2618, %v1998
    %v2627 = vrot.slane %v2619, 1
    %v2628 = vrot.slane %v2620, 1
    %v2629 = vsel %vm252, %v2627, %v2628
    %v2630 = vsel %vm252, %v2628, %v2627
    %v2631 = vrot.slane %v2621, 1
    %v2632 = vrot.slane %v2622, 1
    %v2633 = vsel %vm252, %v2631, %v2632
    %v2634 = vsel %vm252, %v2632, %v2631
    %2635 = vrot.lane.b32.xlu0 %v2629, 122
    %v2636 = vpop.permute.xlu0 %2635
    %2637 = vrot.lane.b32.xlu0 %v2630, 122
    %v2638 = vpop.permute.xlu0 %2637
    %2639 = vrot.lane.b32.xlu0 %v2633, 122
    %v2640 = vpop.permute.xlu0 %2639
    %2641 = vrot.lane.b32.xlu0 %v2634, 122
    %v2642 = vpop.permute.xlu0 %2641
    %v2647 = vadd.f32 %v2613, %v2636
    %v2648 = vadd.f32 %v2614, %v2638
    %v2649 = vadd.f32 %v2615, %v2640
    %v2650 = vadd.f32 %v2616, %v2642
    %s2651 = sld [smem:[#allocation6 + $0x45]]
    %v2652 = vstv %s2651
    %v2653 = vmul.f32 %v2652, %v1995
    %v2654 = vmul.f32 %v2652, %v1996
    %v2655 = vmul.f32 %v2652, %v1997
    %v2656 = vmul.f32 %v2652, %v1998
    %v2661 = vrot.slane %v2653, 2
    %v2662 = vrot.slane %v2654, 2
    %v2663 = vsel %vm347, %v2661, %v2662
    %v2664 = vsel %vm347, %v2662, %v2661
    %v2665 = vrot.slane %v2655, 2
    %v2666 = vrot.slane %v2656, 2
    %v2667 = vsel %vm347, %v2665, %v2666
    %v2668 = vsel %vm347, %v2666, %v2665
    %v2673 = vadd.f32 %v2647, %v2663
    %v2674 = vadd.f32 %v2648, %v2664
    %v2675 = vadd.f32 %v2649, %v2667
    %v2676 = vadd.f32 %v2650, %v2668
    %s2677 = sld [smem:[#allocation6 + $0x46]]
    %v2678 = vstv %s2677
    %v2679 = vmul.f32 %v2678, %v1995
    %v2680 = vmul.f32 %v2678, %v1996
    %v2681 = vmul.f32 %v2678, %v1997
    %v2682 = vmul.f32 %v2678, %v1998
    %v2687 = vrot.slane %v2679, 2
    %v2688 = vrot.slane %v2680, 2
    %v2689 = vsel %vm347, %v2687, %v2688
    %v2690 = vsel %vm347, %v2688, %v2687
    %v2691 = vrot.slane %v2681, 2
    %v2692 = vrot.slane %v2682, 2
    %v2693 = vsel %vm347, %v2691, %v2692
    %v2694 = vsel %vm347, %v2692, %v2691
    %2695 = vrot.lane.b32.xlu0 %v2689, 125
    %v2696 = vpop.permute.xlu0 %2695
    %2697 = vrot.lane.b32.xlu0 %v2690, 125
    %v2698 = vpop.permute.xlu0 %2697
    %2699 = vrot.lane.b32.xlu0 %v2693, 125
    %v2700 = vpop.permute.xlu0 %2699
    %2701 = vrot.lane.b32.xlu0 %v2694, 125
    %v2702 = vpop.permute.xlu0 %2701
    %v2707 = vadd.f32 %v2673, %v2696
    %v2708 = vadd.f32 %v2674, %v2698
    %v2709 = vadd.f32 %v2675, %v2700
    %v2710 = vadd.f32 %v2676, %v2702
    %s2711 = sld [smem:[#allocation6 + $0x47]]
    %v2712 = vstv %s2711
    %v2713 = vmul.f32 %v2712, %v1995
    %v2714 = vmul.f32 %v2712, %v1996
    %v2715 = vmul.f32 %v2712, %v1997
    %v2716 = vmul.f32 %v2712, %v1998
    %v2721 = vrot.slane %v2713, 2
    %v2722 = vrot.slane %v2714, 2
    %v2723 = vsel %vm347, %v2721, %v2722
    %v2724 = vsel %vm347, %v2722, %v2721
    %v2725 = vrot.slane %v2715, 2
    %v2726 = vrot.slane %v2716, 2
    %v2727 = vsel %vm347, %v2725, %v2726
    %v2728 = vsel %vm347, %v2726, %v2725
    %2729 = vrot.lane.b32.xlu0 %v2723, 122
    %v2730 = vpop.permute.xlu0 %2729
    %2731 = vrot.lane.b32.xlu0 %v2724, 122
    %v2732 = vpop.permute.xlu0 %2731
    %2733 = vrot.lane.b32.xlu0 %v2727, 122
    %v2734 = vpop.permute.xlu0 %2733
    %2735 = vrot.lane.b32.xlu0 %v2728, 122
    %v2736 = vpop.permute.xlu0 %2735
    %v2741 = vadd.f32 %v2707, %v2730
    %v2742 = vadd.f32 %v2708, %v2732
    %v2743 = vadd.f32 %v2709, %v2734
    %v2744 = vadd.f32 %v2710, %v2736
    %v2745 = vsel %vm682, %v2741, 0.0
    %v2746 = vsel %vm682, %v2742, 0.0
    %v2747 = vadd.f32 %v2745, %v2746
    %v2748 = vsel %vm682, %v2743, 0.0
    %v2749 = vadd.f32 %v2747, %v2748
    %v2750 = vsel %vm682, %v2744, 0.0
    %v2751 = vadd.f32 %v2749, %v2750
    %2752 = vadd.xlane.f32.xlu0 %v2751
    %v2753 = vpop.xlane.xlu0 %2752
    %v2754 = vrot.slane %v2753, 4
    %v2755 = vadd.f32 %v2753, %v2754
    %v2756 = vrot.slane %v2755, 2
    %v2757 = vadd.f32 %v2755, %v2756
    %v2758 = vrot.slane %v2757, 1
    %v2759 = vadd.f32 %v2757, %v2758
    %s2760 = vtos %v2759
    %v2761 = vmul.f32 %v2741, %v2741
    %v2762 = vmul.f32 %v2742, %v2742
    %v2763 = vmul.f32 %v2743, %v2743
    %v2764 = vmul.f32 %v2744, %v2744
    %v2765 = vsel %vm682, %v2761, 0.0
    %v2766 = vsel %vm682, %v2762, 0.0
    %v2767 = vadd.f32 %v2765, %v2766
    %v2768 = vsel %vm682, %v2763, 0.0
    %v2769 = vadd.f32 %v2767, %v2768
    %v2770 = vsel %vm682, %v2764, 0.0
    %v2771 = vadd.f32 %v2769, %v2770
    %2772 = vadd.xlane.f32.xlu0 %v2771
    %v2773 = vpop.xlane.xlu0 %2772
    %v2774 = vrot.slane %v2773, 4
    %v2775 = vadd.f32 %v2773, %v2774
    %v2776 = vrot.slane %v2775, 2
    %v2777 = vadd.f32 %v2775, %v2776
    %v2778 = vrot.slane %v2777, 1
    %v2779 = vadd.f32 %v2777, %v2778
    %s2780 = vtos %v2779
    %s2781 = smul.f32 %s2760, 0.001953125
    %s2782 = smul.f32 %s2780, 0.001953125
    %s2783 = smul.f32 %s2781, %s2781
    %s2784 = ssub.f32 %s2782, %s2783
    %s2785 = smax.f32 %s2784, 0.0
    %s2786 = sld [smem:[#allocation7 + $0x3]]
    %s2787 = sadd.f32 %s2785, 1e-05
    %v2788 = vstv %s2787
    %v2789 = vrsqrt.pop %v2788
    %s2790 = vtos %v2789
    %s2791 = smul.f32 %s2786, %s2790
    %s2792 = sld [smem:[#allocation9 + $0x3]]
    %s2793 = smul.f32 %s2781, %s2791
    %s2794 = ssub.f32 %s2792, %s2793
    %v2795 = vstv %s2791
    %v2796 = vmul.f32 %v2741, %v2795
    %v2797 = vmul.f32 %v2742, %v2795
    %v2798 = vmul.f32 %v2743, %v2795
    %v2799 = vmul.f32 %v2744, %v2795
    %v2800 = vstv %s2794
    %v2801 = vadd.f32 %v2796, %v2800
    %v2802 = vadd.f32 %v2797, %v2800
    %v2803 = vadd.f32 %v2798, %v2800
    %v2804 = vadd.f32 %v2799, %v2800
    %v2805 = vmax.f32 %v2801, 0.0
    %v2806 = vmax.f32 %v2802, 0.0
    %v2807 = vmax.f32 %v2803, 0.0
    %v2808 = vmax.f32 %v2804, 0.0
    %s2809 = sld [smem:[#allocation6 + $0x48]]
    %v2810 = vstv %s2809
    %v2811 = vmul.f32 %v2810, %v743
    %v2812 = vmul.f32 %v2810, %v744
    %v2813 = vmul.f32 %v2810, %v745
    %v2814 = vmul.f32 %v2810, %v746
    %s2815 = sld [smem:[#allocation6 + $0x49]]
    %v2816 = vstv %s2815
    %v2817 = vmul.f32 %v2816, %v1105
    %v2818 = vmul.f32 %v2816, %v1106
    %v2819 = vmul.f32 %v2816, %v1107
    %v2820 = vmul.f32 %v2816, %v1108
    %v2821 = vadd.f32 %v2811, %v2817
    %v2822 = vadd.f32 %v2812, %v2818
    %v2823 = vadd.f32 %v2813, %v2819
    %v2824 = vadd.f32 %v2814, %v2820
    %s2825 = sld [smem:[#allocation6 + $0x4a]]
    %v2826 = vstv %s2825
    %v2827 = vmul.f32 %v2826, %v1805
    %v2828 = vmul.f32 %v2826, %v1806
    %v2829 = vmul.f32 %v2826, %v1807
    %v2830 = vmul.f32 %v2826, %v1808
    %v2831 = vadd.f32 %v2821, %v2827
    %v2832 = vadd.f32 %v2822, %v2828
    %v2833 = vadd.f32 %v2823, %v2829
    %v2834 = vadd.f32 %v2824, %v2830
    %s2835 = sld [smem:[#allocation6 + $0x4b]]
    %v2836 = vstv %s2835
    %v2837 = vmul.f32 %v2836, %v2805
    %v2838 = vmul.f32 %v2836, %v2806
    %v2839 = vmul.f32 %v2836, %v2807
    %v2840 = vmul.f32 %v2836, %v2808
    %v2841 = vadd.f32 %v2831, %v2837
    %v2842 = vadd.f32 %v2832, %v2838
    %v2843 = vadd.f32 %v2833, %v2839
    %v2844 = vadd.f32 %v2834, %v2840
    %s2845 = sld [smem:[#allocation6 + $0x4c]]
    %v2846 = vstv %s2845
    %v2847 = vmul.f32 %v2846, %v68
    %v2848 = vmul.f32 %v2846, %v69
    %v2849 = vmul.f32 %v2846, %v70
    %v2850 = vmul.f32 %v2846, %v71
    %v2851 = vadd.f32 %v2841, %v2847
    %v2852 = vadd.f32 %v2842, %v2848
    %v2853 = vadd.f32 %v2843, %v2849
    %v2854 = vadd.f32 %v2844, %v2850
    %s2855 = sld [smem:[#allocation6 + $0x4d]]
    %v2856 = vstv %s2855
    %v2857 = vmul.f32 %v2856, %v73
    %v2858 = vmul.f32 %v2856, %v74
    %v2859 = vmul.f32 %v2856, %v75
    %v2860 = vmul.f32 %v2856, %v76
    %v2861 = vadd.f32 %v2851, %v2857
    %v2862 = vadd.f32 %v2852, %v2858
    %v2863 = vadd.f32 %v2853, %v2859
    %v2864 = vadd.f32 %v2854, %v2860
    %v2865 = vsel %vm682, %v2861, 0.0
    %v2866 = vsel %vm682, %v2862, 0.0
    %v2867 = vadd.f32 %v2865, %v2866
    %v2868 = vsel %vm682, %v2863, 0.0
    %v2869 = vadd.f32 %v2867, %v2868
    %v2870 = vsel %vm682, %v2864, 0.0
    %v2871 = vadd.f32 %v2869, %v2870
    %2872 = vadd.xlane.f32.xlu0 %v2871
    %v2873 = vpop.xlane.xlu0 %2872
    %v2874 = vrot.slane %v2873, 4
    %v2875 = vadd.f32 %v2873, %v2874
    %v2876 = vrot.slane %v2875, 2
    %v2877 = vadd.f32 %v2875, %v2876
    %v2878 = vrot.slane %v2877, 1
    %v2879 = vadd.f32 %v2877, %v2878
    %s2880 = vtos %v2879
    %v2881 = vmul.f32 %v2861, %v2861
    %v2882 = vmul.f32 %v2862, %v2862
    %v2883 = vmul.f32 %v2863, %v2863
    %v2884 = vmul.f32 %v2864, %v2864
    %v2885 = vsel %vm682, %v2881, 0.0
    %v2886 = vsel %vm682, %v2882, 0.0
    %v2887 = vadd.f32 %v2885, %v2886
    %v2888 = vsel %vm682, %v2883, 0.0
    %v2889 = vadd.f32 %v2887, %v2888
    %v2890 = vsel %vm682, %v2884, 0.0
    %v2891 = vadd.f32 %v2889, %v2890
    %2892 = vadd.xlane.f32.xlu0 %v2891
    %v2893 = vpop.xlane.xlu0 %2892
    %v2894 = vrot.slane %v2893, 4
    %v2895 = vadd.f32 %v2893, %v2894
    %v2896 = vrot.slane %v2895, 2
    %v2897 = vadd.f32 %v2895, %v2896
    %v2898 = vrot.slane %v2897, 1
    %v2899 = vadd.f32 %v2897, %v2898
    %s2900 = vtos %v2899
    %s2901 = smul.f32 %s2880, 0.001953125
    %s2902 = smul.f32 %s2900, 0.001953125
    %s2903 = smul.f32 %s2901, %s2901
    %s2904 = ssub.f32 %s2902, %s2903
    %s2905 = smax.f32 %s2904, 0.0
    %s2906 = sld [smem:[#allocation7 + $0x4]]
    %s2907 = sadd.f32 %s2905, 1e-05
    %v2908 = vstv %s2907
    %v2909 = vrsqrt.pop %v2908
    %s2910 = vtos %v2909
    %s2911 = smul.f32 %s2906, %s2910
    %s2912 = sld [smem:[#allocation9 + $0x4]]
    %s2913 = smul.f32 %s2901, %s2911
    %s2914 = ssub.f32 %s2912, %s2913
    %v2915 = vstv %s2911
    %v2916 = vmul.f32 %v2861, %v2915
    %v2917 = vmul.f32 %v2862, %v2915
    %v2918 = vmul.f32 %v2863, %v2915
    %v2919 = vmul.f32 %v2864, %v2915
    %v2920 = vstv %s2914
    %v2921 = vadd.f32 %v2916, %v2920
    %v2922 = vadd.f32 %v2917, %v2920
    %v2923 = vadd.f32 %v2918, %v2920
    %v2924 = vadd.f32 %v2919, %v2920
    %2925 = vst.msk [vmem:[#allocation10] sm:$0xff] %vm682, %v2921
    %2926 = vst.msk [vmem:[#allocation10 + $0x8] sm:$0xff] %vm682, %v2922
    %2927 = vst.msk [vmem:[#allocation10 + $0x30] sm:$0xff] %vm682, %v2923
    %2928 = vst.msk [vmem:[#allocation10 + $0x38] sm:$0xff] %vm682, %v2924
    %s2929 = sld [smem:[#allocation6 + $0x4e]]
    %v2930 = vstv %s2929
    %v2931 = vmul.f32 %v2930, %v743
    %v2932 = vmul.f32 %v2930, %v744
    %v2933 = vmul.f32 %v2930, %v745
    %v2934 = vmul.f32 %v2930, %v746
    %s2935 = sld [smem:[#allocation6 + $0x4f]]
    %v2936 = vstv %s2935
    %v2937 = vmul.f32 %v2936, %v1105
    %v2938 = vmul.f32 %v2936, %v1106
    %v2939 = vmul.f32 %v2936, %v1107
    %v2940 = vmul.f32 %v2936, %v1108
    %v2941 = vadd.f32 %v2931, %v2937
    %v2942 = vadd.f32 %v2932, %v2938
    %v2943 = vadd.f32 %v2933, %v2939
    %v2944 = vadd.f32 %v2934, %v2940
    %s2945 = sld [smem:[#allocation6 + $0x50]]
    %v2946 = vstv %s2945
    %v2947 = vmul.f32 %v2946, %v1805
    %v2948 = vmul.f32 %v2946, %v1806
    %v2949 = vmul.f32 %v2946, %v1807
    %v2950 = vmul.f32 %v2946, %v1808
    %v2951 = vadd.f32 %v2941, %v2947
    %v2952 = vadd.f32 %v2942, %v2948
    %v2953 = vadd.f32 %v2943, %v2949
    %v2954 = vadd.f32 %v2944, %v2950
    %s2955 = sld [smem:[#allocation6 + $0x51]]
    %v2956 = vstv %s2955
    %v2957 = vmul.f32 %v2956, %v2805
    %v2958 = vmul.f32 %v2956, %v2806
    %v2959 = vmul.f32 %v2956, %v2807
    %v2960 = vmul.f32 %v2956, %v2808
    %v2961 = vadd.f32 %v2951, %v2957
    %v2962 = vadd.f32 %v2952, %v2958
    %v2963 = vadd.f32 %v2953, %v2959
    %v2964 = vadd.f32 %v2954, %v2960
    %s2965 = sld [smem:[#allocation6 + $0x52]]
    %v2966 = vstv %s2965
    %v2967 = vmul.f32 %v2966, %v68
    %v2968 = vmul.f32 %v2966, %v69
    %v2969 = vmul.f32 %v2966, %v70
    %v2970 = vmul.f32 %v2966, %v71
    %v2971 = vadd.f32 %v2961, %v2967
    %v2972 = vadd.f32 %v2962, %v2968
    %v2973 = vadd.f32 %v2963, %v2969
    %v2974 = vadd.f32 %v2964, %v2970
    %s2975 = sld [smem:[#allocation6 + $0x53]]
    %v2976 = vstv %s2975
    %v2977 = vmul.f32 %v2976, %v73
    %v2978 = vmul.f32 %v2976, %v74
    %v2979 = vmul.f32 %v2976, %v75
    %v2980 = vmul.f32 %v2976, %v76
    %v2981 = vadd.f32 %v2971, %v2977
    %v2982 = vadd.f32 %v2972, %v2978
    %v2983 = vadd.f32 %v2973, %v2979
    %v2984 = vadd.f32 %v2974, %v2980
    %v2985 = vsel %vm682, %v2981, 0.0
    %v2986 = vsel %vm682, %v2982, 0.0
    %v2987 = vadd.f32 %v2985, %v2986
    %v2988 = vsel %vm682, %v2983, 0.0
    %v2989 = vadd.f32 %v2987, %v2988
    %v2990 = vsel %vm682, %v2984, 0.0
    %v2991 = vadd.f32 %v2989, %v2990
    %2992 = vadd.xlane.f32.xlu0 %v2991
    %v2993 = vpop.xlane.xlu0 %2992
    %v2994 = vrot.slane %v2993, 4
    %v2995 = vadd.f32 %v2993, %v2994
    %v2996 = vrot.slane %v2995, 2
    %v2997 = vadd.f32 %v2995, %v2996
    %v2998 = vrot.slane %v2997, 1
    %v2999 = vadd.f32 %v2997, %v2998
    %s3000 = vtos %v2999
    %v3001 = vmul.f32 %v2981, %v2981
    %v3002 = vmul.f32 %v2982, %v2982
    %v3003 = vmul.f32 %v2983, %v2983
    %v3004 = vmul.f32 %v2984, %v2984
    %v3005 = vsel %vm682, %v3001, 0.0
    %v3006 = vsel %vm682, %v3002, 0.0
    %v3007 = vadd.f32 %v3005, %v3006
    %v3008 = vsel %vm682, %v3003, 0.0
    %v3009 = vadd.f32 %v3007, %v3008
    %v3010 = vsel %vm682, %v3004, 0.0
    %v3011 = vadd.f32 %v3009, %v3010
    %3012 = vadd.xlane.f32.xlu0 %v3011
    %v3013 = vpop.xlane.xlu0 %3012
    %v3014 = vrot.slane %v3013, 4
    %v3015 = vadd.f32 %v3013, %v3014
    %v3016 = vrot.slane %v3015, 2
    %v3017 = vadd.f32 %v3015, %v3016
    %v3018 = vrot.slane %v3017, 1
    %v3019 = vadd.f32 %v3017, %v3018
    %s3020 = vtos %v3019
    %s3021 = smul.f32 %s3000, 0.001953125
    %s3022 = smul.f32 %s3020, 0.001953125
    %s3023 = smul.f32 %s3021, %s3021
    %s3024 = ssub.f32 %s3022, %s3023
    %s3025 = smax.f32 %s3024, 0.0
    %s3026 = sld [smem:[#allocation7 + $0x5]]
    %s3027 = sadd.f32 %s3025, 1e-05
    %v3028 = vstv %s3027
    %v3029 = vrsqrt.pop %v3028
    %s3030 = vtos %v3029
    %s3031 = smul.f32 %s3026, %s3030
    %s3032 = sld [smem:[#allocation9 + $0x5]]
    %s3033 = smul.f32 %s3021, %s3031
    %s3034 = ssub.f32 %s3032, %s3033
    %v3035 = vstv %s3031
    %v3036 = vmul.f32 %v2981, %v3035
    %v3037 = vmul.f32 %v2982, %v3035
    %v3038 = vmul.f32 %v2983, %v3035
    %v3039 = vmul.f32 %v2984, %v3035
    %v3040 = vstv %s3034
    %v3041 = vadd.f32 %v3036, %v3040
    %v3042 = vadd.f32 %v3037, %v3040
    %v3043 = vadd.f32 %v3038, %v3040
    %v3044 = vadd.f32 %v3039, %v3040
    %s3045 = scalar_lea.vmem [#allocation10], 16
    %3046 = vst.msk [vmem:[%s3045] sm:$0xff] %vm682, %v3041
    %3047 = vst.msk [vmem:[%s3045 + $0x8] sm:$0xff] %vm682, %v3042
    %3048 = vst.msk [vmem:[%s3045 + $0x30] sm:$0xff] %vm682, %v3043
    %3049 = vst.msk [vmem:[%s3045 + $0x38] sm:$0xff] %vm682, %v3044
    %s3050 = sld [smem:[#allocation6 + $0x54]]
    %v3051 = vstv %s3050
    %v3052 = vmul.f32 %v3051, %v743
    %v3053 = vmul.f32 %v3051, %v744
    %v3054 = vmul.f32 %v3051, %v745
    %v3055 = vmul.f32 %v3051, %v746
    %s3056 = sld [smem:[#allocation6 + $0x55]]
    %v3057 = vstv %s3056
    %v3058 = vmul.f32 %v3057, %v1105
    %v3059 = vmul.f32 %v3057, %v1106
    %v3060 = vmul.f32 %v3057, %v1107
    %v3061 = vmul.f32 %v3057, %v1108
    %v3062 = vadd.f32 %v3052, %v3058
    %v3063 = vadd.f32 %v3053, %v3059
    %v3064 = vadd.f32 %v3054, %v3060
    %v3065 = vadd.f32 %v3055, %v3061
    %s3066 = sld [smem:[#allocation6 + $0x56]]
    %v3067 = vstv %s3066
    %v3068 = vmul.f32 %v3067, %v1805
    %v3069 = vmul.f32 %v3067, %v1806
    %v3070 = vmul.f32 %v3067, %v1807
    %v3071 = vmul.f32 %v3067, %v1808
    %v3072 = vadd.f32 %v3062, %v3068
    %v3073 = vadd.f32 %v3063, %v3069
    %v3074 = vadd.f32 %v3064, %v3070
    %v3075 = vadd.f32 %v3065, %v3071
    %s3076 = sld [smem:[#allocation6 + $0x57]]
    %v3077 = vstv %s3076
    %v3078 = vmul.f32 %v3077, %v2805
    %v3079 = vmul.f32 %v3077, %v2806
    %v3080 = vmul.f32 %v3077, %v2807
    %v3081 = vmul.f32 %v3077, %v2808
    %v3082 = vadd.f32 %v3072, %v3078
    %v3083 = vadd.f32 %v3073, %v3079
    %v3084 = vadd.f32 %v3074, %v3080
    %v3085 = vadd.f32 %v3075, %v3081
    %s3086 = sld [smem:[#allocation6 + $0x58]]
    %v3087 = vstv %s3086
    %v3088 = vmul.f32 %v3087, %v68
    %v3089 = vmul.f32 %v3087, %v69
    %v3090 = vmul.f32 %v3087, %v70
    %v3091 = vmul.f32 %v3087, %v71
    %v3092 = vadd.f32 %v3082, %v3088
    %v3093 = vadd.f32 %v3083, %v3089
    %v3094 = vadd.f32 %v3084, %v3090
    %v3095 = vadd.f32 %v3085, %v3091
    %s3096 = sld [smem:[#allocation6 + $0x59]]
    %v3097 = vstv %s3096
    %v3098 = vmul.f32 %v3097, %v73
    %v3099 = vmul.f32 %v3097, %v74
    %v3100 = vmul.f32 %v3097, %v75
    %v3101 = vmul.f32 %v3097, %v76
    %v3102 = vadd.f32 %v3092, %v3098
    %v3103 = vadd.f32 %v3093, %v3099
    %v3104 = vadd.f32 %v3094, %v3100
    %v3105 = vadd.f32 %v3095, %v3101
    %v3106 = vsel %vm682, %v3102, 0.0
    %v3107 = vsel %vm682, %v3103, 0.0
    %v3108 = vadd.f32 %v3106, %v3107
    %v3109 = vsel %vm682, %v3104, 0.0
    %v3110 = vadd.f32 %v3108, %v3109
    %v3111 = vsel %vm682, %v3105, 0.0
    %v3112 = vadd.f32 %v3110, %v3111
    %3113 = vadd.xlane.f32.xlu0 %v3112
    %v3114 = vpop.xlane.xlu0 %3113
    %v3115 = vrot.slane %v3114, 4
    %v3116 = vadd.f32 %v3114, %v3115
    %v3117 = vrot.slane %v3116, 2
    %v3118 = vadd.f32 %v3116, %v3117
    %v3119 = vrot.slane %v3118, 1
    %v3120 = vadd.f32 %v3118, %v3119
    %s3121 = vtos %v3120
    %v3122 = vmul.f32 %v3102, %v3102
    %v3123 = vmul.f32 %v3103, %v3103
    %v3124 = vmul.f32 %v3104, %v3104
    %v3125 = vmul.f32 %v3105, %v3105
    %v3126 = vsel %vm682, %v3122, 0.0
    %v3127 = vsel %vm682, %v3123, 0.0
    %v3128 = vadd.f32 %v3126, %v3127
    %v3129 = vsel %vm682, %v3124, 0.0
    %v3130 = vadd.f32 %v3128, %v3129
    %v3131 = vsel %vm682, %v3125, 0.0
    %v3132 = vadd.f32 %v3130, %v3131
    %3133 = vadd.xlane.f32.xlu0 %v3132
    %v3134 = vpop.xlane.xlu0 %3133
    %v3135 = vrot.slane %v3134, 4
    %v3136 = vadd.f32 %v3134, %v3135
    %v3137 = vrot.slane %v3136, 2
    %v3138 = vadd.f32 %v3136, %v3137
    %v3139 = vrot.slane %v3138, 1
    %v3140 = vadd.f32 %v3138, %v3139
    %s3141 = vtos %v3140
    %s3142 = smul.f32 %s3121, 0.001953125
    %s3143 = smul.f32 %s3141, 0.001953125
    %s3144 = smul.f32 %s3142, %s3142
    %s3145 = ssub.f32 %s3143, %s3144
    %s3146 = smax.f32 %s3145, 0.0
    %s3147 = sld [smem:[#allocation7 + $0x6]]
    %s3148 = sadd.f32 %s3146, 1e-05
    %v3149 = vstv %s3148
    %v3150 = vrsqrt.pop %v3149
    %s3151 = vtos %v3150
    %s3152 = smul.f32 %s3147, %s3151
    %s3153 = sld [smem:[#allocation9 + $0x6]]
    %s3154 = smul.f32 %s3142, %s3152
    %s3155 = ssub.f32 %s3153, %s3154
    %v3156 = vstv %s3152
    %v3157 = vmul.f32 %v3102, %v3156
    %v3158 = vmul.f32 %v3103, %v3156
    %v3159 = vmul.f32 %v3104, %v3156
    %v3160 = vmul.f32 %v3105, %v3156
    %v3161 = vstv %s3155
    %v3162 = vadd.f32 %v3157, %v3161
    %v3163 = vadd.f32 %v3158, %v3161
    %v3164 = vadd.f32 %v3159, %v3161
    %v3165 = vadd.f32 %v3160, %v3161
    %s3166 = scalar_lea.vmem [#allocation10], 32
    %3167 = vst.msk [vmem:[%s3166] sm:$0xff] %vm682, %v3162
    %3168 = vst.msk [vmem:[%s3166 + $0x8] sm:$0xff] %vm682, %v3163
    %3169 = vst.msk [vmem:[%s3166 + $0x30] sm:$0xff] %vm682, %v3164
    %3170 = vst.msk [vmem:[%s3166 + $0x38] sm:$0xff] %vm682, %v3165
    // Predicated region
    $region34: #{msdnet_forward_fused.1} parent=1 // pred_check
      _
    $region35: #{msdnet_forward_fused.1} parent=1 // pred_check_branch
      %3172 = sbr.rel (0) target = $region37
    $region36: #{msdnet_forward_fused.1} parent=1 // pred_region
      %s3174 = ssub.s32 1536, 1536
      %3175 = vsyncadd [#allocation4], %s3174
      %s3176 = sshll.u32 [#allocation10], 4
      %s3177 = int_to_ptr.vmem [resolvable:$true] %s3176
      %3182 = dma.vmem_to_hbm [thread:$0]  %s3177, 1536, %s4, [#allocation4], 128, 128, 8
    $region37: #{msdnet_forward_fused.1} parent=1 // pred_fallthru
      _
    // Predicated region
    $region38: #{msdnet_forward_fused.1} parent=1 // pred_check
      _
    $region39: #{msdnet_forward_fused.1} parent=1 // pred_check_branch
      %3184 = sbr.rel (0) target = $region41
    $region40: #{msdnet_forward_fused.1} parent=1 // pred_region
      %3185 = dma.done [#allocation4], 1536
    $region41: #{msdnet_forward_fused.1} parent=1 // pred_fallthru
      _
    %3186 = vsyncpa [#allocation3], 1
    %3187 = vsyncpa [#allocation4], 1
    %3188 = vsyncpa [#allocation5], 1
    %3189 = vsyncpa [#allocation8], 1

</llo_original>
